<compile_context>
chip_gen: v6e
topology: v6e:2x2x1
jax: 0.10.0
libtpu: 0.0.40
codegen_flags: <defaults>
</compile_context>

<pallas_src>
import jax
import jax.numpy as jnp
from jax.experimental import pallas as pl
from jax.experimental.pallas import tpu as pltpu


def _double_conv_kernel(xp_ref, w1_ref, b1_ref, w2_ref, b2_ref, o_ref, hpad_ref):
    # xp_ref  : (1, Cin, OH+2, OW+2)   pooled + replicate-padded input (one batch elem)
    # w1_ref  : (Cin*9,  Cmid, OH, OW) BN1-folded conv1 weights, pre-broadcast over (OH,OW)
    # b1_ref  : (Cmid, OH, OW)         BN1-folded conv1 bias,    pre-broadcast
    # w2_ref  : (Cmid*9, Cout, OH, OW) BN2-folded conv2 weights, pre-broadcast
    # b2_ref  : (Cout, OH, OW)         BN2-folded conv2 bias,    pre-broadcast
    # o_ref   : (1, Cout, OH, OW)
    # hpad_ref: (Cmid, OH+2, OW+2)     VMEM scratch: replicate-padded mid activation
    cmid, hp, wp = hpad_ref.shape
    oh, ow = hp - 2, wp - 2

    # ---- conv1 (3x3, replicate pad) + folded BN1 + ReLU: unrolled VPU FMAs ----
    acc = b1_ref[...]                                        # (Cmid, OH, OW) f32
    for t in range(w1_ref.shape[0]):
        ci, r = divmod(t, 9)
        kh, kw = divmod(r, 3)
        tap = xp_ref[0, ci, kh:kh + oh, kw:kw + ow]          # (OH, OW)
        acc = acc + w1_ref[t] * tap                          # leading-dim broadcast only
    mid = jnp.maximum(acc, 0.0)                              # ReLU

    # ---- in-kernel replicate padding of the mid activation (static slice stores) ----
    hpad_ref[:, 1:oh + 1, 1:ow + 1] = mid
    hpad_ref[:, 0:1, 1:ow + 1] = mid[:, 0:1, :]              # top row
    hpad_ref[:, oh + 1:hp, 1:ow + 1] = mid[:, oh - 1:oh, :]  # bottom row
    hpad_ref[:, :, 0:1] = hpad_ref[:, :, 1:2]                # left col (incl. corners)
    hpad_ref[:, :, ow + 1:wp] = hpad_ref[:, :, ow:ow + 1]    # right col (incl. corners)

    # ---- conv2 (3x3, replicate pad) + folded BN2 + ReLU ----
    acc2 = b2_ref[...]                                       # (Cout, OH, OW) f32
    for t in range(w2_ref.shape[0]):
        cm, r = divmod(t, 9)
        kh, kw = divmod(r, 3)
        tap = hpad_ref[cm, kh:kh + oh, kw:kw + ow]           # (OH, OW)
        acc2 = acc2 + w2_ref[t] * tap
    o_ref[0] = jnp.maximum(acc2, 0.0).astype(o_ref.dtype)


def _fold_bn(w, b, gamma, beta, mean, var, eps):
    """Fold eval-mode BatchNorm2d into conv weight/bias."""
    s = gamma / jnp.sqrt(var + eps)
    return w * s[:, None, None, None], (b - mean) * s + beta


def _expand_weights(wf, oh, ow):
    """(Cout, Cin, 3, 3) -> (Cin*9, Cout, OH, OW): per-tap weight planes so the
    in-kernel FMA is a plain elementwise multiply (no lane/sublane scalar splats)."""
    cout, cin = wf.shape[0], wf.shape[1]
    wt = jnp.transpose(wf, (1, 2, 3, 0)).reshape(cin * 9, cout)
    return jnp.broadcast_to(wt[:, :, None, None], (cin * 9, cout, oh, ow))


def down_forward(x, params, *, eps=1e-5):
    """Forward of Down: MaxPool2d(2) -> (Conv3x3(replicate pad) -> BN -> ReLU) x 2.

    x: (N, Cin, H, W) float32 in NCHW (PyTorch layout).  Returns (N, Cout, H//2, W//2).
    """
    (w1, b1, g1, be1, m1, v1, w2, b2, g2, be2, m2, v2) = params
    n, cin, h, w = x.shape
    cmid, cout = w1.shape[0], w2.shape[0]
    oh, ow = h // 2, w // 2
    hp, wp = oh + 2, ow + 2

    # MaxPool2d(2): metadata-only reshape + max, stays NCHW (no transpose, floors odd dims).
    pooled = x[:, :, :oh * 2, :ow * 2].reshape(n, cin, oh, 2, ow, 2).max(axis=(3, 5))
    # Replicate padding for conv1 (cheap XLA op on the already-4x-smaller tensor).
    xp = jnp.pad(pooled, ((0, 0), (0, 0), (1, 1), (1, 1)), mode="edge")

    # Fold eval-mode BatchNorm into the convs, then pre-broadcast for the kernel.
    w1f, b1f = _fold_bn(w1, b1, g1, be1, m1, v1, eps)
    w2f, b2f = _fold_bn(w2, b2, g2, be2, m2, v2, eps)
    w1e = _expand_weights(w1f, oh, ow)
    w2e = _expand_weights(w2f, oh, ow)
    b1e = jnp.broadcast_to(b1f[:, None, None], (cmid, oh, ow))
    b2e = jnp.broadcast_to(b2f[:, None, None], (cout, oh, ow))

    flops = 2 * n * oh * ow * 9 * (cin * cmid + cmid * cout)
    bytes_accessed = 4 * (xp.size + w1e.size + b1e.size + w2e.size + b2e.size
                          + n * cout * oh * ow)

    out = pl.pallas_call(
        _double_conv_kernel,
        out_shape=jax.ShapeDtypeStruct((n, cout, oh, ow), x.dtype),
        grid_spec=pltpu.PrefetchScalarGridSpec(
            num_scalar_prefetch=0,
            grid=(n,),
            in_specs=[
                pl.BlockSpec((1, cin, hp, wp), lambda b: (b, 0, 0, 0)),
                pl.BlockSpec((cin * 9, cmid, oh, ow), lambda b: (0, 0, 0, 0)),
                pl.BlockSpec((cmid, oh, ow), lambda b: (0, 0, 0)),
                pl.BlockSpec((cmid * 9, cout, oh, ow), lambda b: (0, 0, 0, 0)),
                pl.BlockSpec((cout, oh, ow), lambda b: (0, 0, 0)),
            ],
            out_specs=pl.BlockSpec((1, cout, oh, ow), lambda b: (b, 0, 0, 0)),
            scratch_shapes=[pltpu.VMEM((cmid, hp, wp), jnp.float32)],
        ),
        compiler_params=pltpu.CompilerParams(
            dimension_semantics=("parallel",),
            vmem_limit_bytes=32 * 1024 * 1024,
        ),
        cost_estimate=pl.CostEstimate(
            flops=flops, transcendentals=0, bytes_accessed=bytes_accessed),
    )(xp, w1e, b1e, w2e, b2e)
    return out


def down_reference(x, params, *, eps=1e-5):
    """Plain-JAX reference matching the PyTorch module (eval-mode BN)."""
    (w1, b1, g1, be1, m1, v1, w2, b2, g2, be2, m2, v2) = params
    n, cin, h, w = x.shape
    oh, ow = h // 2, w // 2
    pooled = x[:, :, :oh * 2, :ow * 2].reshape(n, cin, oh, 2, ow, 2).max(axis=(3, 5))

    def conv_bn_relu(a, cw, cb, gamma, beta, mean, var):
        ap = jnp.pad(a, ((0, 0), (0, 0), (1, 1), (1, 1)), mode="edge")
        y = jax.lax.conv_general_dilated(
            ap, cw, window_strides=(1, 1), padding="VALID",
            dimension_numbers=("NCHW", "OIHW", "NCHW"))
        y = y + cb[None, :, None, None]
        y = ((y - mean[None, :, None, None])
             * (gamma[None, :, None, None] / jnp.sqrt(var[None, :, None, None] + eps))
             + beta[None, :, None, None])
        return jnp.maximum(y, 0.0)

    a = conv_bn_relu(pooled, w1, b1, g1, be1, m1, v1)
    return conv_bn_relu(a, w2, b2, g2, be2, m2, v2)


if __name__ == "__main__":
    key = jax.random.PRNGKey(0)
    ks = jax.random.split(key, 13)

    # Down(4, 8): in=4, mid=out=8; NCHW input (2, 4, 16, 16).
    N, C_IN, C_OUT, H, W = 2, 4, 8, 16, 16
    C_MID = C_OUT

    x = jax.random.normal(ks[0], (N, C_IN, H, W), dtype=jnp.float32)

    w1 = jax.random.normal(ks[1], (C_MID, C_IN, 3, 3), dtype=jnp.float32) * 0.2
    b1 = jax.random.normal(ks[2], (C_MID,), dtype=jnp.float32) * 0.1
    g1 = 1.0 + 0.1 * jax.random.normal(ks[3], (C_MID,), dtype=jnp.float32)
    be1 = 0.1 * jax.random.normal(ks[4], (C_MID,), dtype=jnp.float32)
    m1 = 0.1 * jax.random.normal(ks[5], (C_MID,), dtype=jnp.float32)
    v1 = jax.random.uniform(ks[6], (C_MID,), dtype=jnp.float32, minval=0.5, maxval=1.5)

    w2 = jax.random.normal(ks[7], (C_OUT, C_MID, 3, 3), dtype=jnp.float32) * 0.2
    b2 = jax.random.normal(ks[8], (C_OUT,), dtype=jnp.float32) * 0.1
    g2 = 1.0 + 0.1 * jax.random.normal(ks[9], (C_OUT,), dtype=jnp.float32)
    be2 = 0.1 * jax.random.normal(ks[10], (C_OUT,), dtype=jnp.float32)
    m2 = 0.1 * jax.random.normal(ks[11], (C_OUT,), dtype=jnp.float32)
    v2 = jax.random.uniform(ks[12], (C_OUT,), dtype=jnp.float32, minval=0.5, maxval=1.5)

    params = (w1, b1, g1, be1, m1, v1, w2, b2, g2, be2, m2, v2)

    y = jax.jit(down_forward)(x, params)
    y = jax.block_until_ready(y)

    ref = down_reference(x, params)
    assert y.shape == (N, C_OUT, H // 2, W // 2), y.shape
    assert jnp.allclose(y, ref, atol=1e-4, rtol=1e-4), float(jnp.max(jnp.abs(y - ref)))

    print("KERNEL_OK")
</pallas_src>

<mosaic_0001>
module attributes {stable_mosaic.version = 11 : i64} {
  func.func @_double_conv_kernel(%arg0: i32, %arg1: memref<1x4x10x10xf32, #tpu.memory_space<vmem>>, %arg2: memref<36x8x8x8xf32, #tpu.memory_space<vmem>>, %arg3: memref<8x8x8xf32, #tpu.memory_space<vmem>>, %arg4: memref<72x8x8x8xf32, #tpu.memory_space<vmem>>, %arg5: memref<8x8x8xf32, #tpu.memory_space<vmem>>, %arg6: memref<1x8x8x8xf32, #tpu.memory_space<vmem>>, %arg7: memref<8x10x10xf32, #tpu.memory_space<vmem>>) attributes {dimension_semantics = [#tpu.dimension_semantics<parallel>], iteration_bounds = array<i64: 2>, scalar_prefetch = 0 : i64, scratch_operands = 1 : i64, tpu.core_type = #tpu.core_type<tc>, window_params = [{transform_indices = @transform_0, window_bounds = array<i64: 1, 4, 10, 10>}, {pipeline_mode = #tpu.pipeline_mode<synchronous>, transform_indices = @transform_1, window_bounds = array<i64: 36, 8, 8, 8>}, {pipeline_mode = #tpu.pipeline_mode<synchronous>, transform_indices = @transform_2, window_bounds = array<i64: 8, 8, 8>}, {pipeline_mode = #tpu.pipeline_mode<synchronous>, transform_indices = @transform_3, window_bounds = array<i64: 72, 8, 8, 8>}, {pipeline_mode = #tpu.pipeline_mode<synchronous>, transform_indices = @transform_4, window_bounds = array<i64: 8, 8, 8>}, {transform_indices = @transform_5, window_bounds = array<i64: 1, 8, 8, 8>}]} {
    %c0 = arith.constant 0 : index
    %c0_0 = arith.constant 0 : index
    %c0_1 = arith.constant 0 : index
    %0 = vector.load %arg3[%c0, %c0_0, %c0_1] : memref<8x8x8xf32, #tpu.memory_space<vmem>>, vector<8x8x8xf32>
    %c0_2 = arith.constant 0 : index
    %c0_3 = arith.constant 0 : index
    %c0_4 = arith.constant 0 : index
    %c0_5 = arith.constant 0 : index
    %1 = vector.load %arg1[%c0_2, %c0_3, %c0_4, %c0_5] : memref<1x4x10x10xf32, #tpu.memory_space<vmem>>, vector<1x1x8x8xf32>
    %2 = vector.shape_cast %1 : vector<1x1x8x8xf32> to vector<8x8xf32>
    %c0_6 = arith.constant 0 : index
    %c0_7 = arith.constant 0 : index
    %c0_8 = arith.constant 0 : index
    %c0_9 = arith.constant 0 : index
    %3 = vector.load %arg2[%c0_6, %c0_7, %c0_8, %c0_9] : memref<36x8x8x8xf32, #tpu.memory_space<vmem>>, vector<1x8x8x8xf32>
    %4 = vector.shape_cast %3 : vector<1x8x8x8xf32> to vector<8x8x8xf32>
    %5 = vector.shape_cast %2 : vector<8x8xf32> to vector<1x8x8xf32>
    %6 = vector.broadcast %5 : vector<1x8x8xf32> to vector<8x8x8xf32>
    %7 = arith.mulf %4, %6 : vector<8x8x8xf32>
    %8 = arith.addf %0, %7 : vector<8x8x8xf32>
    %c0_10 = arith.constant 0 : index
    %c0_11 = arith.constant 0 : index
    %c0_12 = arith.constant 0 : index
    %c1 = arith.constant 1 : index
    %9 = vector.load %arg1[%c0_10, %c0_11, %c0_12, %c1] : memref<1x4x10x10xf32, #tpu.memory_space<vmem>>, vector<1x1x8x8xf32>
    %10 = vector.shape_cast %9 : vector<1x1x8x8xf32> to vector<8x8xf32>
    %c1_13 = arith.constant 1 : index
    %c0_14 = arith.constant 0 : index
    %c0_15 = arith.constant 0 : index
    %c0_16 = arith.constant 0 : index
    %11 = vector.load %arg2[%c1_13, %c0_14, %c0_15, %c0_16] : memref<36x8x8x8xf32, #tpu.memory_space<vmem>>, vector<1x8x8x8xf32>
    %12 = vector.shape_cast %11 : vector<1x8x8x8xf32> to vector<8x8x8xf32>
    %13 = vector.shape_cast %10 : vector<8x8xf32> to vector<1x8x8xf32>
    %14 = vector.broadcast %13 : vector<1x8x8xf32> to vector<8x8x8xf32>
    %15 = arith.mulf %12, %14 : vector<8x8x8xf32>
    %16 = arith.addf %8, %15 : vector<8x8x8xf32>
    %c0_17 = arith.constant 0 : index
    %c0_18 = arith.constant 0 : index
    %c0_19 = arith.constant 0 : index
    %c2 = arith.constant 2 : index
    %17 = vector.load %arg1[%c0_17, %c0_18, %c0_19, %c2] : memref<1x4x10x10xf32, #tpu.memory_space<vmem>>, vector<1x1x8x8xf32>
    %18 = vector.shape_cast %17 : vector<1x1x8x8xf32> to vector<8x8xf32>
    %c2_20 = arith.constant 2 : index
    %c0_21 = arith.constant 0 : index
    %c0_22 = arith.constant 0 : index
    %c0_23 = arith.constant 0 : index
    %19 = vector.load %arg2[%c2_20, %c0_21, %c0_22, %c0_23] : memref<36x8x8x8xf32, #tpu.memory_space<vmem>>, vector<1x8x8x8xf32>
    %20 = vector.shape_cast %19 : vector<1x8x8x8xf32> to vector<8x8x8xf32>
    %21 = vector.shape_cast %18 : vector<8x8xf32> to vector<1x8x8xf32>
    %22 = vector.broadcast %21 : vector<1x8x8xf32> to vector<8x8x8xf32>
    %23 = arith.mulf %20, %22 : vector<8x8x8xf32>
    %24 = arith.addf %16, %23 : vector<8x8x8xf32>
    %c0_24 = arith.constant 0 : index
    %c0_25 = arith.constant 0 : index
    %c1_26 = arith.constant 1 : index
    %c0_27 = arith.constant 0 : index
    %25 = vector.load %arg1[%c0_24, %c0_25, %c1_26, %c0_27] : memref<1x4x10x10xf32, #tpu.memory_space<vmem>>, vector<1x1x8x8xf32>
    %26 = vector.shape_cast %25 : vector<1x1x8x8xf32> to vector<8x8xf32>
    %c3 = arith.constant 3 : index
    %c0_28 = arith.constant 0 : index
    %c0_29 = arith.constant 0 : index
    %c0_30 = arith.constant 0 : index
    %27 = vector.load %arg2[%c3, %c0_28, %c0_29, %c0_30] : memref<36x8x8x8xf32, #tpu.memory_space<vmem>>, vector<1x8x8x8xf32>
    %28 = vector.shape_cast %27 : vector<1x8x8x8xf32> to vector<8x8x8xf32>
    %29 = vector.shape_cast %26 : vector<8x8xf32> to vector<1x8x8xf32>
    %30 = vector.broadcast %29 : vector<1x8x8xf32> to vector<8x8x8xf32>
    %31 = arith.mulf %28, %30 : vector<8x8x8xf32>
    %32 = arith.addf %24, %31 : vector<8x8x8xf32>
    %c0_31 = arith.constant 0 : index
    %c0_32 = arith.constant 0 : index
    %c1_33 = arith.constant 1 : index
    %c1_34 = arith.constant 1 : index
    %33 = vector.load %arg1[%c0_31, %c0_32, %c1_33, %c1_34] : memref<1x4x10x10xf32, #tpu.memory_space<vmem>>, vector<1x1x8x8xf32>
    %34 = vector.shape_cast %33 : vector<1x1x8x8xf32> to vector<8x8xf32>
    %c4 = arith.constant 4 : index
    %c0_35 = arith.constant 0 : index
    %c0_36 = arith.constant 0 : index
    %c0_37 = arith.constant 0 : index
    %35 = vector.load %arg2[%c4, %c0_35, %c0_36, %c0_37] : memref<36x8x8x8xf32, #tpu.memory_space<vmem>>, vector<1x8x8x8xf32>
    %36 = vector.shape_cast %35 : vector<1x8x8x8xf32> to vector<8x8x8xf32>
    %37 = vector.shape_cast %34 : vector<8x8xf32> to vector<1x8x8xf32>
    %38 = vector.broadcast %37 : vector<1x8x8xf32> to vector<8x8x8xf32>
    %39 = arith.mulf %36, %38 : vector<8x8x8xf32>
    %40 = arith.addf %32, %39 : vector<8x8x8xf32>
    %c0_38 = arith.constant 0 : index
    %c0_39 = arith.constant 0 : index
    %c1_40 = arith.constant 1 : index
    %c2_41 = arith.constant 2 : index
    %41 = vector.load %arg1[%c0_38, %c0_39, %c1_40, %c2_41] : memref<1x4x10x10xf32, #tpu.memory_space<vmem>>, vector<1x1x8x8xf32>
    %42 = vector.shape_cast %41 : vector<1x1x8x8xf32> to vector<8x8xf32>
    %c5 = arith.constant 5 : index
    %c0_42 = arith.constant 0 : index
    %c0_43 = arith.constant 0 : index
    %c0_44 = arith.constant 0 : index
    %43 = vector.load %arg2[%c5, %c0_42, %c0_43, %c0_44] : memref<36x8x8x8xf32, #tpu.memory_space<vmem>>, vector<1x8x8x8xf32>
    %44 = vector.shape_cast %43 : vector<1x8x8x8xf32> to vector<8x8x8xf32>
    %45 = vector.shape_cast %42 : vector<8x8xf32> to vector<1x8x8xf32>
    %46 = vector.broadcast %45 : vector<1x8x8xf32> to vector<8x8x8xf32>
    %47 = arith.mulf %44, %46 : vector<8x8x8xf32>
    %48 = arith.addf %40, %47 : vector<8x8x8xf32>
    %c0_45 = arith.constant 0 : index
    %c0_46 = arith.constant 0 : index
    %c2_47 = arith.constant 2 : index
    %c0_48 = arith.constant 0 : index
    %49 = vector.load %arg1[%c0_45, %c0_46, %c2_47, %c0_48] : memref<1x4x10x10xf32, #tpu.memory_space<vmem>>, vector<1x1x8x8xf32>
    %50 = vector.shape_cast %49 : vector<1x1x8x8xf32> to vector<8x8xf32>
    %c6 = arith.constant 6 : index
    %c0_49 = arith.constant 0 : index
    %c0_50 = arith.constant 0 : index
    %c0_51 = arith.constant 0 : index
    %51 = vector.load %arg2[%c6, %c0_49, %c0_50, %c0_51] : memref<36x8x8x8xf32, #tpu.memory_space<vmem>>, vector<1x8x8x8xf32>
    %52 = vector.shape_cast %51 : vector<1x8x8x8xf32> to vector<8x8x8xf32>
    %53 = vector.shape_cast %50 : vector<8x8xf32> to vector<1x8x8xf32>
    %54 = vector.broadcast %53 : vector<1x8x8xf32> to vector<8x8x8xf32>
    %55 = arith.mulf %52, %54 : vector<8x8x8xf32>
    %56 = arith.addf %48, %55 : vector<8x8x8xf32>
    %c0_52 = arith.constant 0 : index
    %c0_53 = arith.constant 0 : index
    %c2_54 = arith.constant 2 : index
    %c1_55 = arith.constant 1 : index
    %57 = vector.load %arg1[%c0_52, %c0_53, %c2_54, %c1_55] : memref<1x4x10x10xf32, #tpu.memory_space<vmem>>, vector<1x1x8x8xf32>
    %58 = vector.shape_cast %57 : vector<1x1x8x8xf32> to vector<8x8xf32>
    %c7 = arith.constant 7 : index
    %c0_56 = arith.constant 0 : index
    %c0_57 = arith.constant 0 : index
    %c0_58 = arith.constant 0 : index
    %59 = vector.load %arg2[%c7, %c0_56, %c0_57, %c0_58] : memref<36x8x8x8xf32, #tpu.memory_space<vmem>>, vector<1x8x8x8xf32>
    %60 = vector.shape_cast %59 : vector<1x8x8x8xf32> to vector<8x8x8xf32>
    %61 = vector.shape_cast %58 : vector<8x8xf32> to vector<1x8x8xf32>
    %62 = vector.broadcast %61 : vector<1x8x8xf32> to vector<8x8x8xf32>
    %63 = arith.mulf %60, %62 : vector<8x8x8xf32>
    %64 = arith.addf %56, %63 : vector<8x8x8xf32>
    %c0_59 = arith.constant 0 : index
    %c0_60 = arith.constant 0 : index
    %c2_61 = arith.constant 2 : index
    %c2_62 = arith.constant 2 : index
    %65 = vector.load %arg1[%c0_59, %c0_60, %c2_61, %c2_62] : memref<1x4x10x10xf32, #tpu.memory_space<vmem>>, vector<1x1x8x8xf32>
    %66 = vector.shape_cast %65 : vector<1x1x8x8xf32> to vector<8x8xf32>
    %c8 = arith.constant 8 : index
    %c0_63 = arith.constant 0 : index
    %c0_64 = arith.constant 0 : index
    %c0_65 = arith.constant 0 : index
    %67 = vector.load %arg2[%c8, %c0_63, %c0_64, %c0_65] : memref<36x8x8x8xf32, #tpu.memory_space<vmem>>, vector<1x8x8x8xf32>
    %68 = vector.shape_cast %67 : vector<1x8x8x8xf32> to vector<8x8x8xf32>
    %69 = vector.shape_cast %66 : vector<8x8xf32> to vector<1x8x8xf32>
    %70 = vector.broadcast %69 : vector<1x8x8xf32> to vector<8x8x8xf32>
    %71 = arith.mulf %68, %70 : vector<8x8x8xf32>
    %72 = arith.addf %64, %71 : vector<8x8x8xf32>
    %c0_66 = arith.constant 0 : index
    %c1_67 = arith.constant 1 : index
    %c0_68 = arith.constant 0 : index
    %c0_69 = arith.constant 0 : index
    %73 = vector.load %arg1[%c0_66, %c1_67, %c0_68, %c0_69] : memref<1x4x10x10xf32, #tpu.memory_space<vmem>>, vector<1x1x8x8xf32>
    %74 = vector.shape_cast %73 : vector<1x1x8x8xf32> to vector<8x8xf32>
    %c9 = arith.constant 9 : index
    %c0_70 = arith.constant 0 : index
    %c0_71 = arith.constant 0 : index
    %c0_72 = arith.constant 0 : index
    %75 = vector.load %arg2[%c9, %c0_70, %c0_71, %c0_72] : memref<36x8x8x8xf32, #tpu.memory_space<vmem>>, vector<1x8x8x8xf32>
    %76 = vector.shape_cast %75 : vector<1x8x8x8xf32> to vector<8x8x8xf32>
    %77 = vector.shape_cast %74 : vector<8x8xf32> to vector<1x8x8xf32>
    %78 = vector.broadcast %77 : vector<1x8x8xf32> to vector<8x8x8xf32>
    %79 = arith.mulf %76, %78 : vector<8x8x8xf32>
    %80 = arith.addf %72, %79 : vector<8x8x8xf32>
    %c0_73 = arith.constant 0 : index
    %c1_74 = arith.constant 1 : index
    %c0_75 = arith.constant 0 : index
    %c1_76 = arith.constant 1 : index
    %81 = vector.load %arg1[%c0_73, %c1_74, %c0_75, %c1_76] : memref<1x4x10x10xf32, #tpu.memory_space<vmem>>, vector<1x1x8x8xf32>
    %82 = vector.shape_cast %81 : vector<1x1x8x8xf32> to vector<8x8xf32>
    %c10 = arith.constant 10 : index
    %c0_77 = arith.constant 0 : index
    %c0_78 = arith.constant 0 : index
    %c0_79 = arith.constant 0 : index
    %83 = vector.load %arg2[%c10, %c0_77, %c0_78, %c0_79] : memref<36x8x8x8xf32, #tpu.memory_space<vmem>>, vector<1x8x8x8xf32>
    %84 = vector.shape_cast %83 : vector<1x8x8x8xf32> to vector<8x8x8xf32>
    %85 = vector.shape_cast %82 : vector<8x8xf32> to vector<1x8x8xf32>
    %86 = vector.broadcast %85 : vector<1x8x8xf32> to vector<8x8x8xf32>
    %87 = arith.mulf %84, %86 : vector<8x8x8xf32>
    %88 = arith.addf %80, %87 : vector<8x8x8xf32>
    %c0_80 = arith.constant 0 : index
    %c1_81 = arith.constant 1 : index
    %c0_82 = arith.constant 0 : index
    %c2_83 = arith.constant 2 : index
    %89 = vector.load %arg1[%c0_80, %c1_81, %c0_82, %c2_83] : memref<1x4x10x10xf32, #tpu.memory_space<vmem>>, vector<1x1x8x8xf32>
    %90 = vector.shape_cast %89 : vector<1x1x8x8xf32> to vector<8x8xf32>
    %c11 = arith.constant 11 : index
    %c0_84 = arith.constant 0 : index
    %c0_85 = arith.constant 0 : index
    %c0_86 = arith.constant 0 : index
    %91 = vector.load %arg2[%c11, %c0_84, %c0_85, %c0_86] : memref<36x8x8x8xf32, #tpu.memory_space<vmem>>, vector<1x8x8x8xf32>
    %92 = vector.shape_cast %91 : vector<1x8x8x8xf32> to vector<8x8x8xf32>
    %93 = vector.shape_cast %90 : vector<8x8xf32> to vector<1x8x8xf32>
    %94 = vector.broadcast %93 : vector<1x8x8xf32> to vector<8x8x8xf32>
    %95 = arith.mulf %92, %94 : vector<8x8x8xf32>
    %96 = arith.addf %88, %95 : vector<8x8x8xf32>
    %c0_87 = arith.constant 0 : index
    %c1_88 = arith.constant 1 : index
    %c1_89 = arith.constant 1 : index
    %c0_90 = arith.constant 0 : index
    %97 = vector.load %arg1[%c0_87, %c1_88, %c1_89, %c0_90] : memref<1x4x10x10xf32, #tpu.memory_space<vmem>>, vector<1x1x8x8xf32>
    %98 = vector.shape_cast %97 : vector<1x1x8x8xf32> to vector<8x8xf32>
    %c12 = arith.constant 12 : index
    %c0_91 = arith.constant 0 : index
    %c0_92 = arith.constant 0 : index
    %c0_93 = arith.constant 0 : index
    %99 = vector.load %arg2[%c12, %c0_91, %c0_92, %c0_93] : memref<36x8x8x8xf32, #tpu.memory_space<vmem>>, vector<1x8x8x8xf32>
    %100 = vector.shape_cast %99 : vector<1x8x8x8xf32> to vector<8x8x8xf32>
    %101 = vector.shape_cast %98 : vector<8x8xf32> to vector<1x8x8xf32>
    %102 = vector.broadcast %101 : vector<1x8x8xf32> to vector<8x8x8xf32>
    %103 = arith.mulf %100, %102 : vector<8x8x8xf32>
    %104 = arith.addf %96, %103 : vector<8x8x8xf32>
    %c0_94 = arith.constant 0 : index
    %c1_95 = arith.constant 1 : index
    %c1_96 = arith.constant 1 : index
    %c1_97 = arith.constant 1 : index
    %105 = vector.load %arg1[%c0_94, %c1_95, %c1_96, %c1_97] : memref<1x4x10x10xf32, #tpu.memory_space<vmem>>, vector<1x1x8x8xf32>
    %106 = vector.shape_cast %105 : vector<1x1x8x8xf32> to vector<8x8xf32>
    %c13 = arith.constant 13 : index
    %c0_98 = arith.constant 0 : index
    %c0_99 = arith.constant 0 : index
    %c0_100 = arith.constant 0 : index
    %107 = vector.load %arg2[%c13, %c0_98, %c0_99, %c0_100] : memref<36x8x8x8xf32, #tpu.memory_space<vmem>>, vector<1x8x8x8xf32>
    %108 = vector.shape_cast %107 : vector<1x8x8x8xf32> to vector<8x8x8xf32>
    %109 = vector.shape_cast %106 : vector<8x8xf32> to vector<1x8x8xf32>
    %110 = vector.broadcast %109 : vector<1x8x8xf32> to vector<8x8x8xf32>
    %111 = arith.mulf %108, %110 : vector<8x8x8xf32>
    %112 = arith.addf %104, %111 : vector<8x8x8xf32>
    %c0_101 = arith.constant 0 : index
    %c1_102 = arith.constant 1 : index
    %c1_103 = arith.constant 1 : index
    %c2_104 = arith.constant 2 : index
    %113 = vector.load %arg1[%c0_101, %c1_102, %c1_103, %c2_104] : memref<1x4x10x10xf32, #tpu.memory_space<vmem>>, vector<1x1x8x8xf32>
    %114 = vector.shape_cast %113 : vector<1x1x8x8xf32> to vector<8x8xf32>
    %c14 = arith.constant 14 : index
    %c0_105 = arith.constant 0 : index
    %c0_106 = arith.constant 0 : index
    %c0_107 = arith.constant 0 : index
    %115 = vector.load %arg2[%c14, %c0_105, %c0_106, %c0_107] : memref<36x8x8x8xf32, #tpu.memory_space<vmem>>, vector<1x8x8x8xf32>
    %116 = vector.shape_cast %115 : vector<1x8x8x8xf32> to vector<8x8x8xf32>
    %117 = vector.shape_cast %114 : vector<8x8xf32> to vector<1x8x8xf32>
    %118 = vector.broadcast %117 : vector<1x8x8xf32> to vector<8x8x8xf32>
    %119 = arith.mulf %116, %118 : vector<8x8x8xf32>
    %120 = arith.addf %112, %119 : vector<8x8x8xf32>
    %c0_108 = arith.constant 0 : index
    %c1_109 = arith.constant 1 : index
    %c2_110 = arith.constant 2 : index
    %c0_111 = arith.constant 0 : index
    %121 = vector.load %arg1[%c0_108, %c1_109, %c2_110, %c0_111] : memref<1x4x10x10xf32, #tpu.memory_space<vmem>>, vector<1x1x8x8xf32>
    %122 = vector.shape_cast %121 : vector<1x1x8x8xf32> to vector<8x8xf32>
    %c15 = arith.constant 15 : index
    %c0_112 = arith.constant 0 : index
    %c0_113 = arith.constant 0 : index
    %c0_114 = arith.constant 0 : index
    %123 = vector.load %arg2[%c15, %c0_112, %c0_113, %c0_114] : memref<36x8x8x8xf32, #tpu.memory_space<vmem>>, vector<1x8x8x8xf32>
    %124 = vector.shape_cast %123 : vector<1x8x8x8xf32> to vector<8x8x8xf32>
    %125 = vector.shape_cast %122 : vector<8x8xf32> to vector<1x8x8xf32>
    %126 = vector.broadcast %125 : vector<1x8x8xf32> to vector<8x8x8xf32>
    %127 = arith.mulf %124, %126 : vector<8x8x8xf32>
    %128 = arith.addf %120, %127 : vector<8x8x8xf32>
    %c0_115 = arith.constant 0 : index
    %c1_116 = arith.constant 1 : index
    %c2_117 = arith.constant 2 : index
    %c1_118 = arith.constant 1 : index
    %129 = vector.load %arg1[%c0_115, %c1_116, %c2_117, %c1_118] : memref<1x4x10x10xf32, #tpu.memory_space<vmem>>, vector<1x1x8x8xf32>
    %130 = vector.shape_cast %129 : vector<1x1x8x8xf32> to vector<8x8xf32>
    %c16 = arith.constant 16 : index
    %c0_119 = arith.constant 0 : index
    %c0_120 = arith.constant 0 : index
    %c0_121 = arith.constant 0 : index
    %131 = vector.load %arg2[%c16, %c0_119, %c0_120, %c0_121] : memref<36x8x8x8xf32, #tpu.memory_space<vmem>>, vector<1x8x8x8xf32>
    %132 = vector.shape_cast %131 : vector<1x8x8x8xf32> to vector<8x8x8xf32>
    %133 = vector.shape_cast %130 : vector<8x8xf32> to vector<1x8x8xf32>
    %134 = vector.broadcast %133 : vector<1x8x8xf32> to vector<8x8x8xf32>
    %135 = arith.mulf %132, %134 : vector<8x8x8xf32>
    %136 = arith.addf %128, %135 : vector<8x8x8xf32>
    %c0_122 = arith.constant 0 : index
    %c1_123 = arith.constant 1 : index
    %c2_124 = arith.constant 2 : index
    %c2_125 = arith.constant 2 : index
    %137 = vector.load %arg1[%c0_122, %c1_123, %c2_124, %c2_125] : memref<1x4x10x10xf32, #tpu.memory_space<vmem>>, vector<1x1x8x8xf32>
    %138 = vector.shape_cast %137 : vector<1x1x8x8xf32> to vector<8x8xf32>
    %c17 = arith.constant 17 : index
    %c0_126 = arith.constant 0 : index
    %c0_127 = arith.constant 0 : index
    %c0_128 = arith.constant 0 : index
    %139 = vector.load %arg2[%c17, %c0_126, %c0_127, %c0_128] : memref<36x8x8x8xf32, #tpu.memory_space<vmem>>, vector<1x8x8x8xf32>
    %140 = vector.shape_cast %139 : vector<1x8x8x8xf32> to vector<8x8x8xf32>
    %141 = vector.shape_cast %138 : vector<8x8xf32> to vector<1x8x8xf32>
    %142 = vector.broadcast %141 : vector<1x8x8xf32> to vector<8x8x8xf32>
    %143 = arith.mulf %140, %142 : vector<8x8x8xf32>
    %144 = arith.addf %136, %143 : vector<8x8x8xf32>
    %c0_129 = arith.constant 0 : index
    %c2_130 = arith.constant 2 : index
    %c0_131 = arith.constant 0 : index
    %c0_132 = arith.constant 0 : index
    %145 = vector.load %arg1[%c0_129, %c2_130, %c0_131, %c0_132] : memref<1x4x10x10xf32, #tpu.memory_space<vmem>>, vector<1x1x8x8xf32>
    %146 = vector.shape_cast %145 : vector<1x1x8x8xf32> to vector<8x8xf32>
    %c18 = arith.constant 18 : index
    %c0_133 = arith.constant 0 : index
    %c0_134 = arith.constant 0 : index
    %c0_135 = arith.constant 0 : index
    %147 = vector.load %arg2[%c18, %c0_133, %c0_134, %c0_135] : memref<36x8x8x8xf32, #tpu.memory_space<vmem>>, vector<1x8x8x8xf32>
    %148 = vector.shape_cast %147 : vector<1x8x8x8xf32> to vector<8x8x8xf32>
    %149 = vector.shape_cast %146 : vector<8x8xf32> to vector<1x8x8xf32>
    %150 = vector.broadcast %149 : vector<1x8x8xf32> to vector<8x8x8xf32>
    %151 = arith.mulf %148, %150 : vector<8x8x8xf32>
    %152 = arith.addf %144, %151 : vector<8x8x8xf32>
    %c0_136 = arith.constant 0 : index
    %c2_137 = arith.constant 2 : index
    %c0_138 = arith.constant 0 : index
    %c1_139 = arith.constant 1 : index
    %153 = vector.load %arg1[%c0_136, %c2_137, %c0_138, %c1_139] : memref<1x4x10x10xf32, #tpu.memory_space<vmem>>, vector<1x1x8x8xf32>
    %154 = vector.shape_cast %153 : vector<1x1x8x8xf32> to vector<8x8xf32>
    %c19 = arith.constant 19 : index
    %c0_140 = arith.constant 0 : index
    %c0_141 = arith.constant 0 : index
    %c0_142 = arith.constant 0 : index
    %155 = vector.load %arg2[%c19, %c0_140, %c0_141, %c0_142] : memref<36x8x8x8xf32, #tpu.memory_space<vmem>>, vector<1x8x8x8xf32>
    %156 = vector.shape_cast %155 : vector<1x8x8x8xf32> to vector<8x8x8xf32>
    %157 = vector.shape_cast %154 : vector<8x8xf32> to vector<1x8x8xf32>
    %158 = vector.broadcast %157 : vector<1x8x8xf32> to vector<8x8x8xf32>
    %159 = arith.mulf %156, %158 : vector<8x8x8xf32>
    %160 = arith.addf %152, %159 : vector<8x8x8xf32>
    %c0_143 = arith.constant 0 : index
    %c2_144 = arith.constant 2 : index
    %c0_145 = arith.constant 0 : index
    %c2_146 = arith.constant 2 : index
    %161 = vector.load %arg1[%c0_143, %c2_144, %c0_145, %c2_146] : memref<1x4x10x10xf32, #tpu.memory_space<vmem>>, vector<1x1x8x8xf32>
    %162 = vector.shape_cast %161 : vector<1x1x8x8xf32> to vector<8x8xf32>
    %c20 = arith.constant 20 : index
    %c0_147 = arith.constant 0 : index
    %c0_148 = arith.constant 0 : index
    %c0_149 = arith.constant 0 : index
    %163 = vector.load %arg2[%c20, %c0_147, %c0_148, %c0_149] : memref<36x8x8x8xf32, #tpu.memory_space<vmem>>, vector<1x8x8x8xf32>
    %164 = vector.shape_cast %163 : vector<1x8x8x8xf32> to vector<8x8x8xf32>
    %165 = vector.shape_cast %162 : vector<8x8xf32> to vector<1x8x8xf32>
    %166 = vector.broadcast %165 : vector<1x8x8xf32> to vector<8x8x8xf32>
    %167 = arith.mulf %164, %166 : vector<8x8x8xf32>
    %168 = arith.addf %160, %167 : vector<8x8x8xf32>
    %c0_150 = arith.constant 0 : index
    %c2_151 = arith.constant 2 : index
    %c1_152 = arith.constant 1 : index
    %c0_153 = arith.constant 0 : index
    %169 = vector.load %arg1[%c0_150, %c2_151, %c1_152, %c0_153] : memref<1x4x10x10xf32, #tpu.memory_space<vmem>>, vector<1x1x8x8xf32>
    %170 = vector.shape_cast %169 : vector<1x1x8x8xf32> to vector<8x8xf32>
    %c21 = arith.constant 21 : index
    %c0_154 = arith.constant 0 : index
    %c0_155 = arith.constant 0 : index
    %c0_156 = arith.constant 0 : index
    %171 = vector.load %arg2[%c21, %c0_154, %c0_155, %c0_156] : memref<36x8x8x8xf32, #tpu.memory_space<vmem>>, vector<1x8x8x8xf32>
    %172 = vector.shape_cast %171 : vector<1x8x8x8xf32> to vector<8x8x8xf32>
    %173 = vector.shape_cast %170 : vector<8x8xf32> to vector<1x8x8xf32>
    %174 = vector.broadcast %173 : vector<1x8x8xf32> to vector<8x8x8xf32>
    %175 = arith.mulf %172, %174 : vector<8x8x8xf32>
    %176 = arith.addf %168, %175 : vector<8x8x8xf32>
    %c0_157 = arith.constant 0 : index
    %c2_158 = arith.constant 2 : index
    %c1_159 = arith.constant 1 : index
    %c1_160 = arith.constant 1 : index
    %177 = vector.load %arg1[%c0_157, %c2_158, %c1_159, %c1_160] : memref<1x4x10x10xf32, #tpu.memory_space<vmem>>, vector<1x1x8x8xf32>
    %178 = vector.shape_cast %177 : vector<1x1x8x8xf32> to vector<8x8xf32>
    %c22 = arith.constant 22 : index
    %c0_161 = arith.constant 0 : index
    %c0_162 = arith.constant 0 : index
    %c0_163 = arith.constant 0 : index
    %179 = vector.load %arg2[%c22, %c0_161, %c0_162, %c0_163] : memref<36x8x8x8xf32, #tpu.memory_space<vmem>>, vector<1x8x8x8xf32>
    %180 = vector.shape_cast %179 : vector<1x8x8x8xf32> to vector<8x8x8xf32>
    %181 = vector.shape_cast %178 : vector<8x8xf32> to vector<1x8x8xf32>
    %182 = vector.broadcast %181 : vector<1x8x8xf32> to vector<8x8x8xf32>
    %183 = arith.mulf %180, %182 : vector<8x8x8xf32>
    %184 = arith.addf %176, %183 : vector<8x8x8xf32>
    %c0_164 = arith.constant 0 : index
    %c2_165 = arith.constant 2 : index
    %c1_166 = arith.constant 1 : index
    %c2_167 = arith.constant 2 : index
    %185 = vector.load %arg1[%c0_164, %c2_165, %c1_166, %c2_167] : memref<1x4x10x10xf32, #tpu.memory_space<vmem>>, vector<1x1x8x8xf32>
    %186 = vector.shape_cast %185 : vector<1x1x8x8xf32> to vector<8x8xf32>
    %c23 = arith.constant 23 : index
    %c0_168 = arith.constant 0 : index
    %c0_169 = arith.constant 0 : index
    %c0_170 = arith.constant 0 : index
    %187 = vector.load %arg2[%c23, %c0_168, %c0_169, %c0_170] : memref<36x8x8x8xf32, #tpu.memory_space<vmem>>, vector<1x8x8x8xf32>
    %188 = vector.shape_cast %187 : vector<1x8x8x8xf32> to vector<8x8x8xf32>
    %189 = vector.shape_cast %186 : vector<8x8xf32> to vector<1x8x8xf32>
    %190 = vector.broadcast %189 : vector<1x8x8xf32> to vector<8x8x8xf32>
    %191 = arith.mulf %188, %190 : vector<8x8x8xf32>
    %192 = arith.addf %184, %191 : vector<8x8x8xf32>
    %c0_171 = arith.constant 0 : index
    %c2_172 = arith.constant 2 : index
    %c2_173 = arith.constant 2 : index
    %c0_174 = arith.constant 0 : index
    %193 = vector.load %arg1[%c0_171, %c2_172, %c2_173, %c0_174] : memref<1x4x10x10xf32, #tpu.memory_space<vmem>>, vector<1x1x8x8xf32>
    %194 = vector.shape_cast %193 : vector<1x1x8x8xf32> to vector<8x8xf32>
    %c24 = arith.constant 24 : index
    %c0_175 = arith.constant 0 : index
    %c0_176 = arith.constant 0 : index
    %c0_177 = arith.constant 0 : index
    %195 = vector.load %arg2[%c24, %c0_175, %c0_176, %c0_177] : memref<36x8x8x8xf32, #tpu.memory_space<vmem>>, vector<1x8x8x8xf32>
    %196 = vector.shape_cast %195 : vector<1x8x8x8xf32> to vector<8x8x8xf32>
    %197 = vector.shape_cast %194 : vector<8x8xf32> to vector<1x8x8xf32>
    %198 = vector.broadcast %197 : vector<1x8x8xf32> to vector<8x8x8xf32>
    %199 = arith.mulf %196, %198 : vector<8x8x8xf32>
    %200 = arith.addf %192, %199 : vector<8x8x8xf32>
    %c0_178 = arith.constant 0 : index
    %c2_179 = arith.constant 2 : index
    %c2_180 = arith.constant 2 : index
    %c1_181 = arith.constant 1 : index
    %201 = vector.load %arg1[%c0_178, %c2_179, %c2_180, %c1_181] : memref<1x4x10x10xf32, #tpu.memory_space<vmem>>, vector<1x1x8x8xf32>
    %202 = vector.shape_cast %201 : vector<1x1x8x8xf32> to vector<8x8xf32>
    %c25 = arith.constant 25 : index
    %c0_182 = arith.constant 0 : index
    %c0_183 = arith.constant 0 : index
    %c0_184 = arith.constant 0 : index
    %203 = vector.load %arg2[%c25, %c0_182, %c0_183, %c0_184] : memref<36x8x8x8xf32, #tpu.memory_space<vmem>>, vector<1x8x8x8xf32>
    %204 = vector.shape_cast %203 : vector<1x8x8x8xf32> to vector<8x8x8xf32>
    %205 = vector.shape_cast %202 : vector<8x8xf32> to vector<1x8x8xf32>
    %206 = vector.broadcast %205 : vector<1x8x8xf32> to vector<8x8x8xf32>
    %207 = arith.mulf %204, %206 : vector<8x8x8xf32>
    %208 = arith.addf %200, %207 : vector<8x8x8xf32>
    %c0_185 = arith.constant 0 : index
    %c2_186 = arith.constant 2 : index
    %c2_187 = arith.constant 2 : index
    %c2_188 = arith.constant 2 : index
    %209 = vector.load %arg1[%c0_185, %c2_186, %c2_187, %c2_188] : memref<1x4x10x10xf32, #tpu.memory_space<vmem>>, vector<1x1x8x8xf32>
    %210 = vector.shape_cast %209 : vector<1x1x8x8xf32> to vector<8x8xf32>
    %c26 = arith.constant 26 : index
    %c0_189 = arith.constant 0 : index
    %c0_190 = arith.constant 0 : index
    %c0_191 = arith.constant 0 : index
    %211 = vector.load %arg2[%c26, %c0_189, %c0_190, %c0_191] : memref<36x8x8x8xf32, #tpu.memory_space<vmem>>, vector<1x8x8x8xf32>
    %212 = vector.shape_cast %211 : vector<1x8x8x8xf32> to vector<8x8x8xf32>
    %213 = vector.shape_cast %210 : vector<8x8xf32> to vector<1x8x8xf32>
    %214 = vector.broadcast %213 : vector<1x8x8xf32> to vector<8x8x8xf32>
    %215 = arith.mulf %212, %214 : vector<8x8x8xf32>
    %216 = arith.addf %208, %215 : vector<8x8x8xf32>
    %c0_192 = arith.constant 0 : index
    %c3_193 = arith.constant 3 : index
    %c0_194 = arith.constant 0 : index
    %c0_195 = arith.constant 0 : index
    %217 = vector.load %arg1[%c0_192, %c3_193, %c0_194, %c0_195] : memref<1x4x10x10xf32, #tpu.memory_space<vmem>>, vector<1x1x8x8xf32>
    %218 = vector.shape_cast %217 : vector<1x1x8x8xf32> to vector<8x8xf32>
    %c27 = arith.constant 27 : index
    %c0_196 = arith.constant 0 : index
    %c0_197 = arith.constant 0 : index
    %c0_198 = arith.constant 0 : index
    %219 = vector.load %arg2[%c27, %c0_196, %c0_197, %c0_198] : memref<36x8x8x8xf32, #tpu.memory_space<vmem>>, vector<1x8x8x8xf32>
    %220 = vector.shape_cast %219 : vector<1x8x8x8xf32> to vector<8x8x8xf32>
    %221 = vector.shape_cast %218 : vector<8x8xf32> to vector<1x8x8xf32>
    %222 = vector.broadcast %221 : vector<1x8x8xf32> to vector<8x8x8xf32>
    %223 = arith.mulf %220, %222 : vector<8x8x8xf32>
    %224 = arith.addf %216, %223 : vector<8x8x8xf32>
    %c0_199 = arith.constant 0 : index
    %c3_200 = arith.constant 3 : index
    %c0_201 = arith.constant 0 : index
    %c1_202 = arith.constant 1 : index
    %225 = vector.load %arg1[%c0_199, %c3_200, %c0_201, %c1_202] : memref<1x4x10x10xf32, #tpu.memory_space<vmem>>, vector<1x1x8x8xf32>
    %226 = vector.shape_cast %225 : vector<1x1x8x8xf32> to vector<8x8xf32>
    %c28 = arith.constant 28 : index
    %c0_203 = arith.constant 0 : index
    %c0_204 = arith.constant 0 : index
    %c0_205 = arith.constant 0 : index
    %227 = vector.load %arg2[%c28, %c0_203, %c0_204, %c0_205] : memref<36x8x8x8xf32, #tpu.memory_space<vmem>>, vector<1x8x8x8xf32>
    %228 = vector.shape_cast %227 : vector<1x8x8x8xf32> to vector<8x8x8xf32>
    %229 = vector.shape_cast %226 : vector<8x8xf32> to vector<1x8x8xf32>
    %230 = vector.broadcast %229 : vector<1x8x8xf32> to vector<8x8x8xf32>
    %231 = arith.mulf %228, %230 : vector<8x8x8xf32>
    %232 = arith.addf %224, %231 : vector<8x8x8xf32>
    %c0_206 = arith.constant 0 : index
    %c3_207 = arith.constant 3 : index
    %c0_208 = arith.constant 0 : index
    %c2_209 = arith.constant 2 : index
    %233 = vector.load %arg1[%c0_206, %c3_207, %c0_208, %c2_209] : memref<1x4x10x10xf32, #tpu.memory_space<vmem>>, vector<1x1x8x8xf32>
    %234 = vector.shape_cast %233 : vector<1x1x8x8xf32> to vector<8x8xf32>
    %c29 = arith.constant 29 : index
    %c0_210 = arith.constant 0 : index
    %c0_211 = arith.constant 0 : index
    %c0_212 = arith.constant 0 : index
    %235 = vector.load %arg2[%c29, %c0_210, %c0_211, %c0_212] : memref<36x8x8x8xf32, #tpu.memory_space<vmem>>, vector<1x8x8x8xf32>
    %236 = vector.shape_cast %235 : vector<1x8x8x8xf32> to vector<8x8x8xf32>
    %237 = vector.shape_cast %234 : vector<8x8xf32> to vector<1x8x8xf32>
    %238 = vector.broadcast %237 : vector<1x8x8xf32> to vector<8x8x8xf32>
    %239 = arith.mulf %236, %238 : vector<8x8x8xf32>
    %240 = arith.addf %232, %239 : vector<8x8x8xf32>
    %c0_213 = arith.constant 0 : index
    %c3_214 = arith.constant 3 : index
    %c1_215 = arith.constant 1 : index
    %c0_216 = arith.constant 0 : index
    %241 = vector.load %arg1[%c0_213, %c3_214, %c1_215, %c0_216] : memref<1x4x10x10xf32, #tpu.memory_space<vmem>>, vector<1x1x8x8xf32>
    %242 = vector.shape_cast %241 : vector<1x1x8x8xf32> to vector<8x8xf32>
    %c30 = arith.constant 30 : index
    %c0_217 = arith.constant 0 : index
    %c0_218 = arith.constant 0 : index
    %c0_219 = arith.constant 0 : index
    %243 = vector.load %arg2[%c30, %c0_217, %c0_218, %c0_219] : memref<36x8x8x8xf32, #tpu.memory_space<vmem>>, vector<1x8x8x8xf32>
    %244 = vector.shape_cast %243 : vector<1x8x8x8xf32> to vector<8x8x8xf32>
    %245 = vector.shape_cast %242 : vector<8x8xf32> to vector<1x8x8xf32>
    %246 = vector.broadcast %245 : vector<1x8x8xf32> to vector<8x8x8xf32>
    %247 = arith.mulf %244, %246 : vector<8x8x8xf32>
    %248 = arith.addf %240, %247 : vector<8x8x8xf32>
    %c0_220 = arith.constant 0 : index
    %c3_221 = arith.constant 3 : index
    %c1_222 = arith.constant 1 : index
    %c1_223 = arith.constant 1 : index
    %249 = vector.load %arg1[%c0_220, %c3_221, %c1_222, %c1_223] : memref<1x4x10x10xf32, #tpu.memory_space<vmem>>, vector<1x1x8x8xf32>
    %250 = vector.shape_cast %249 : vector<1x1x8x8xf32> to vector<8x8xf32>
    %c31 = arith.constant 31 : index
    %c0_224 = arith.constant 0 : index
    %c0_225 = arith.constant 0 : index
    %c0_226 = arith.constant 0 : index
    %251 = vector.load %arg2[%c31, %c0_224, %c0_225, %c0_226] : memref<36x8x8x8xf32, #tpu.memory_space<vmem>>, vector<1x8x8x8xf32>
    %252 = vector.shape_cast %251 : vector<1x8x8x8xf32> to vector<8x8x8xf32>
    %253 = vector.shape_cast %250 : vector<8x8xf32> to vector<1x8x8xf32>
    %254 = vector.broadcast %253 : vector<1x8x8xf32> to vector<8x8x8xf32>
    %255 = arith.mulf %252, %254 : vector<8x8x8xf32>
    %256 = arith.addf %248, %255 : vector<8x8x8xf32>
    %c0_227 = arith.constant 0 : index
    %c3_228 = arith.constant 3 : index
    %c1_229 = arith.constant 1 : index
    %c2_230 = arith.constant 2 : index
    %257 = vector.load %arg1[%c0_227, %c3_228, %c1_229, %c2_230] : memref<1x4x10x10xf32, #tpu.memory_space<vmem>>, vector<1x1x8x8xf32>
    %258 = vector.shape_cast %257 : vector<1x1x8x8xf32> to vector<8x8xf32>
    %c32 = arith.constant 32 : index
    %c0_231 = arith.constant 0 : index
    %c0_232 = arith.constant 0 : index
    %c0_233 = arith.constant 0 : index
    %259 = vector.load %arg2[%c32, %c0_231, %c0_232, %c0_233] : memref<36x8x8x8xf32, #tpu.memory_space<vmem>>, vector<1x8x8x8xf32>
    %260 = vector.shape_cast %259 : vector<1x8x8x8xf32> to vector<8x8x8xf32>
    %261 = vector.shape_cast %258 : vector<8x8xf32> to vector<1x8x8xf32>
    %262 = vector.broadcast %261 : vector<1x8x8xf32> to vector<8x8x8xf32>
    %263 = arith.mulf %260, %262 : vector<8x8x8xf32>
    %264 = arith.addf %256, %263 : vector<8x8x8xf32>
    %c0_234 = arith.constant 0 : index
    %c3_235 = arith.constant 3 : index
    %c2_236 = arith.constant 2 : index
    %c0_237 = arith.constant 0 : index
    %265 = vector.load %arg1[%c0_234, %c3_235, %c2_236, %c0_237] : memref<1x4x10x10xf32, #tpu.memory_space<vmem>>, vector<1x1x8x8xf32>
    %266 = vector.shape_cast %265 : vector<1x1x8x8xf32> to vector<8x8xf32>
    %c33 = arith.constant 33 : index
    %c0_238 = arith.constant 0 : index
    %c0_239 = arith.constant 0 : index
    %c0_240 = arith.constant 0 : index
    %267 = vector.load %arg2[%c33, %c0_238, %c0_239, %c0_240] : memref<36x8x8x8xf32, #tpu.memory_space<vmem>>, vector<1x8x8x8xf32>
    %268 = vector.shape_cast %267 : vector<1x8x8x8xf32> to vector<8x8x8xf32>
    %269 = vector.shape_cast %266 : vector<8x8xf32> to vector<1x8x8xf32>
    %270 = vector.broadcast %269 : vector<1x8x8xf32> to vector<8x8x8xf32>
    %271 = arith.mulf %268, %270 : vector<8x8x8xf32>
    %272 = arith.addf %264, %271 : vector<8x8x8xf32>
    %c0_241 = arith.constant 0 : index
    %c3_242 = arith.constant 3 : index
    %c2_243 = arith.constant 2 : index
    %c1_244 = arith.constant 1 : index
    %273 = vector.load %arg1[%c0_241, %c3_242, %c2_243, %c1_244] : memref<1x4x10x10xf32, #tpu.memory_space<vmem>>, vector<1x1x8x8xf32>
    %274 = vector.shape_cast %273 : vector<1x1x8x8xf32> to vector<8x8xf32>
    %c34 = arith.constant 34 : index
    %c0_245 = arith.constant 0 : index
    %c0_246 = arith.constant 0 : index
    %c0_247 = arith.constant 0 : index
    %275 = vector.load %arg2[%c34, %c0_245, %c0_246, %c0_247] : memref<36x8x8x8xf32, #tpu.memory_space<vmem>>, vector<1x8x8x8xf32>
    %276 = vector.shape_cast %275 : vector<1x8x8x8xf32> to vector<8x8x8xf32>
    %277 = vector.shape_cast %274 : vector<8x8xf32> to vector<1x8x8xf32>
    %278 = vector.broadcast %277 : vector<1x8x8xf32> to vector<8x8x8xf32>
    %279 = arith.mulf %276, %278 : vector<8x8x8xf32>
    %280 = arith.addf %272, %279 : vector<8x8x8xf32>
    %c0_248 = arith.constant 0 : index
    %c3_249 = arith.constant 3 : index
    %c2_250 = arith.constant 2 : index
    %c2_251 = arith.constant 2 : index
    %281 = vector.load %arg1[%c0_248, %c3_249, %c2_250, %c2_251] : memref<1x4x10x10xf32, #tpu.memory_space<vmem>>, vector<1x1x8x8xf32>
    %282 = vector.shape_cast %281 : vector<1x1x8x8xf32> to vector<8x8xf32>
    %c35 = arith.constant 35 : index
    %c0_252 = arith.constant 0 : index
    %c0_253 = arith.constant 0 : index
    %c0_254 = arith.constant 0 : index
    %283 = vector.load %arg2[%c35, %c0_252, %c0_253, %c0_254] : memref<36x8x8x8xf32, #tpu.memory_space<vmem>>, vector<1x8x8x8xf32>
    %284 = vector.shape_cast %283 : vector<1x8x8x8xf32> to vector<8x8x8xf32>
    %285 = vector.shape_cast %282 : vector<8x8xf32> to vector<1x8x8xf32>
    %286 = vector.broadcast %285 : vector<1x8x8xf32> to vector<8x8x8xf32>
    %287 = arith.mulf %284, %286 : vector<8x8x8xf32>
    %288 = arith.addf %280, %287 : vector<8x8x8xf32>
    %cst = arith.constant 0.000000e+00 : f32
    %289 = vector.broadcast %cst : f32 to vector<8x8x8xf32>
    %290 = arith.maximumf %288, %289 : vector<8x8x8xf32>
    %c0_255 = arith.constant 0 : index
    %c1_256 = arith.constant 1 : index
    %c1_257 = arith.constant 1 : index
    %291 = vector.load %arg7[%c0_255, %c1_256, %c1_257] : memref<8x10x10xf32, #tpu.memory_space<vmem>>, vector<8x8x8xf32>
    tpu.vector_store %arg7[%c0_255, %c1_256, %c1_257], %290 {strides = array<i32>} : memref<8x10x10xf32, #tpu.memory_space<vmem>>, vector<8x8x8xf32>,
    %292 = vector.extract_strided_slice %290 {offsets = [0, 0, 0], sizes = [8, 1, 8], strides = [1, 1, 1]} : vector<8x8x8xf32> to vector<8x1x8xf32>
    %c0_258 = arith.constant 0 : index
    %c0_259 = arith.constant 0 : index
    %c1_260 = arith.constant 1 : index
    %293 = vector.load %arg7[%c0_258, %c0_259, %c1_260] : memref<8x10x10xf32, #tpu.memory_space<vmem>>, vector<8x1x8xf32>
    tpu.vector_store %arg7[%c0_258, %c0_259, %c1_260], %292 {strides = array<i32>} : memref<8x10x10xf32, #tpu.memory_space<vmem>>, vector<8x1x8xf32>,
    %294 = vector.extract_strided_slice %290 {offsets = [0, 7, 0], sizes = [8, 1, 8], strides = [1, 1, 1]} : vector<8x8x8xf32> to vector<8x1x8xf32>
    %c0_261 = arith.constant 0 : index
    %c9_262 = arith.constant 9 : index
    %c1_263 = arith.constant 1 : index
    %295 = vector.load %arg7[%c0_261, %c9_262, %c1_263] : memref<8x10x10xf32, #tpu.memory_space<vmem>>, vector<8x1x8xf32>
    tpu.vector_store %arg7[%c0_261, %c9_262, %c1_263], %294 {strides = array<i32>} : memref<8x10x10xf32, #tpu.memory_space<vmem>>, vector<8x1x8xf32>,
    %c0_264 = arith.constant 0 : index
    %c0_265 = arith.constant 0 : index
    %c1_266 = arith.constant 1 : index
    %296 = vector.load %arg7[%c0_264, %c0_265, %c1_266] : memref<8x10x10xf32, #tpu.memory_space<vmem>>, vector<8x10x1xf32>
    %c0_267 = arith.constant 0 : index
    %c0_268 = arith.constant 0 : index
    %c0_269 = arith.constant 0 : index
    %297 = vector.load %arg7[%c0_267, %c0_268, %c0_269] : memref<8x10x10xf32, #tpu.memory_space<vmem>>, vector<8x10x1xf32>
    tpu.vector_store %arg7[%c0_267, %c0_268, %c0_269], %296 {strides = array<i32>} : memref<8x10x10xf32, #tpu.memory_space<vmem>>, vector<8x10x1xf32>,
    %c0_270 = arith.constant 0 : index
    %c0_271 = arith.constant 0 : index
    %c8_272 = arith.constant 8 : index
    %298 = vector.load %arg7[%c0_270, %c0_271, %c8_272] : memref<8x10x10xf32, #tpu.memory_space<vmem>>, vector<8x10x1xf32>
    %c0_273 = arith.constant 0 : index
    %c0_274 = arith.constant 0 : index
    %c9_275 = arith.constant 9 : index
    %299 = vector.load %arg7[%c0_273, %c0_274, %c9_275] : memref<8x10x10xf32, #tpu.memory_space<vmem>>, vector<8x10x1xf32>
    tpu.vector_store %arg7[%c0_273, %c0_274, %c9_275], %298 {strides = array<i32>} : memref<8x10x10xf32, #tpu.memory_space<vmem>>, vector<8x10x1xf32>,
    %c0_276 = arith.constant 0 : index
    %c0_277 = arith.constant 0 : index
    %c0_278 = arith.constant 0 : index
    %300 = vector.load %arg5[%c0_276, %c0_277, %c0_278] : memref<8x8x8xf32, #tpu.memory_space<vmem>>, vector<8x8x8xf32>
    %c0_279 = arith.constant 0 : index
    %c0_280 = arith.constant 0 : index
    %c0_281 = arith.constant 0 : index
    %301 = vector.load %arg7[%c0_279, %c0_280, %c0_281] : memref<8x10x10xf32, #tpu.memory_space<vmem>>, vector<1x8x8xf32>
    %302 = vector.shape_cast %301 : vector<1x8x8xf32> to vector<8x8xf32>
    %c0_282 = arith.constant 0 : index
    %c0_283 = arith.constant 0 : index
    %c0_284 = arith.constant 0 : index
    %c0_285 = arith.constant 0 : index
    %303 = vector.load %arg4[%c0_282, %c0_283, %c0_284, %c0_285] : memref<72x8x8x8xf32, #tpu.memory_space<vmem>>, vector<1x8x8x8xf32>
    %304 = vector.shape_cast %303 : vector<1x8x8x8xf32> to vector<8x8x8xf32>
    %305 = vector.shape_cast %302 : vector<8x8xf32> to vector<1x8x8xf32>
    %306 = vector.broadcast %305 : vector<1x8x8xf32> to vector<8x8x8xf32>
    %307 = arith.mulf %304, %306 : vector<8x8x8xf32>
    %308 = arith.addf %300, %307 : vector<8x8x8xf32>
    %c0_286 = arith.constant 0 : index
    %c0_287 = arith.constant 0 : index
    %c1_288 = arith.constant 1 : index
    %309 = vector.load %arg7[%c0_286, %c0_287, %c1_288] : memref<8x10x10xf32, #tpu.memory_space<vmem>>, vector<1x8x8xf32>
    %310 = vector.shape_cast %309 : vector<1x8x8xf32> to vector<8x8xf32>
    %c1_289 = arith.constant 1 : index
    %c0_290 = arith.constant 0 : index
    %c0_291 = arith.constant 0 : index
    %c0_292 = arith.constant 0 : index
    %311 = vector.load %arg4[%c1_289, %c0_290, %c0_291, %c0_292] : memref<72x8x8x8xf32, #tpu.memory_space<vmem>>, vector<1x8x8x8xf32>
    %312 = vector.shape_cast %311 : vector<1x8x8x8xf32> to vector<8x8x8xf32>
    %313 = vector.shape_cast %310 : vector<8x8xf32> to vector<1x8x8xf32>
    %314 = vector.broadcast %313 : vector<1x8x8xf32> to vector<8x8x8xf32>
    %315 = arith.mulf %312, %314 : vector<8x8x8xf32>
    %316 = arith.addf %308, %315 : vector<8x8x8xf32>
    %c0_293 = arith.constant 0 : index
    %c0_294 = arith.constant 0 : index
    %c2_295 = arith.constant 2 : index
    %317 = vector.load %arg7[%c0_293, %c0_294, %c2_295] : memref<8x10x10xf32, #tpu.memory_space<vmem>>, vector<1x8x8xf32>
    %318 = vector.shape_cast %317 : vector<1x8x8xf32> to vector<8x8xf32>
    %c2_296 = arith.constant 2 : index
    %c0_297 = arith.constant 0 : index
    %c0_298 = arith.constant 0 : index
    %c0_299 = arith.constant 0 : index
    %319 = vector.load %arg4[%c2_296, %c0_297, %c0_298, %c0_299] : memref<72x8x8x8xf32, #tpu.memory_space<vmem>>, vector<1x8x8x8xf32>
    %320 = vector.shape_cast %319 : vector<1x8x8x8xf32> to vector<8x8x8xf32>
    %321 = vector.shape_cast %318 : vector<8x8xf32> to vector<1x8x8xf32>
    %322 = vector.broadcast %321 : vector<1x8x8xf32> to vector<8x8x8xf32>
    %323 = arith.mulf %320, %322 : vector<8x8x8xf32>
    %324 = arith.addf %316, %323 : vector<8x8x8xf32>
    %c0_300 = arith.constant 0 : index
    %c1_301 = arith.constant 1 : index
    %c0_302 = arith.constant 0 : index
    %325 = vector.load %arg7[%c0_300, %c1_301, %c0_302] : memref<8x10x10xf32, #tpu.memory_space<vmem>>, vector<1x8x8xf32>
    %326 = vector.shape_cast %325 : vector<1x8x8xf32> to vector<8x8xf32>
    %c3_303 = arith.constant 3 : index
    %c0_304 = arith.constant 0 : index
    %c0_305 = arith.constant 0 : index
    %c0_306 = arith.constant 0 : index
    %327 = vector.load %arg4[%c3_303, %c0_304, %c0_305, %c0_306] : memref<72x8x8x8xf32, #tpu.memory_space<vmem>>, vector<1x8x8x8xf32>
    %328 = vector.shape_cast %327 : vector<1x8x8x8xf32> to vector<8x8x8xf32>
    %329 = vector.shape_cast %326 : vector<8x8xf32> to vector<1x8x8xf32>
    %330 = vector.broadcast %329 : vector<1x8x8xf32> to vector<8x8x8xf32>
    %331 = arith.mulf %328, %330 : vector<8x8x8xf32>
    %332 = arith.addf %324, %331 : vector<8x8x8xf32>
    %c0_307 = arith.constant 0 : index
    %c1_308 = arith.constant 1 : index
    %c1_309 = arith.constant 1 : index
    %333 = vector.load %arg7[%c0_307, %c1_308, %c1_309] : memref<8x10x10xf32, #tpu.memory_space<vmem>>, vector<1x8x8xf32>
    %334 = vector.shape_cast %333 : vector<1x8x8xf32> to vector<8x8xf32>
    %c4_310 = arith.constant 4 : index
    %c0_311 = arith.constant 0 : index
    %c0_312 = arith.constant 0 : index
    %c0_313 = arith.constant 0 : index
    %335 = vector.load %arg4[%c4_310, %c0_311, %c0_312, %c0_313] : memref<72x8x8x8xf32, #tpu.memory_space<vmem>>, vector<1x8x8x8xf32>
    %336 = vector.shape_cast %335 : vector<1x8x8x8xf32> to vector<8x8x8xf32>
    %337 = vector.shape_cast %334 : vector<8x8xf32> to vector<1x8x8xf32>
    %338 = vector.broadcast %337 : vector<1x8x8xf32> to vector<8x8x8xf32>
    %339 = arith.mulf %336, %338 : vector<8x8x8xf32>
    %340 = arith.addf %332, %339 : vector<8x8x8xf32>
    %c0_314 = arith.constant 0 : index
    %c1_315 = arith.constant 1 : index
    %c2_316 = arith.constant 2 : index
    %341 = vector.load %arg7[%c0_314, %c1_315, %c2_316] : memref<8x10x10xf32, #tpu.memory_space<vmem>>, vector<1x8x8xf32>
    %342 = vector.shape_cast %341 : vector<1x8x8xf32> to vector<8x8xf32>
    %c5_317 = arith.constant 5 : index
    %c0_318 = arith.constant 0 : index
    %c0_319 = arith.constant 0 : index
    %c0_320 = arith.constant 0 : index
    %343 = vector.load %arg4[%c5_317, %c0_318, %c0_319, %c0_320] : memref<72x8x8x8xf32, #tpu.memory_space<vmem>>, vector<1x8x8x8xf32>
    %344 = vector.shape_cast %343 : vector<1x8x8x8xf32> to vector<8x8x8xf32>
    %345 = vector.shape_cast %342 : vector<8x8xf32> to vector<1x8x8xf32>
    %346 = vector.broadcast %345 : vector<1x8x8xf32> to vector<8x8x8xf32>
    %347 = arith.mulf %344, %346 : vector<8x8x8xf32>
    %348 = arith.addf %340, %347 : vector<8x8x8xf32>
    %c0_321 = arith.constant 0 : index
    %c2_322 = arith.constant 2 : index
    %c0_323 = arith.constant 0 : index
    %349 = vector.load %arg7[%c0_321, %c2_322, %c0_323] : memref<8x10x10xf32, #tpu.memory_space<vmem>>, vector<1x8x8xf32>
    %350 = vector.shape_cast %349 : vector<1x8x8xf32> to vector<8x8xf32>
    %c6_324 = arith.constant 6 : index
    %c0_325 = arith.constant 0 : index
    %c0_326 = arith.constant 0 : index
    %c0_327 = arith.constant 0 : index
    %351 = vector.load %arg4[%c6_324, %c0_325, %c0_326, %c0_327] : memref<72x8x8x8xf32, #tpu.memory_space<vmem>>, vector<1x8x8x8xf32>
    %352 = vector.shape_cast %351 : vector<1x8x8x8xf32> to vector<8x8x8xf32>
    %353 = vector.shape_cast %350 : vector<8x8xf32> to vector<1x8x8xf32>
    %354 = vector.broadcast %353 : vector<1x8x8xf32> to vector<8x8x8xf32>
    %355 = arith.mulf %352, %354 : vector<8x8x8xf32>
    %356 = arith.addf %348, %355 : vector<8x8x8xf32>
    %c0_328 = arith.constant 0 : index
    %c2_329 = arith.constant 2 : index
    %c1_330 = arith.constant 1 : index
    %357 = vector.load %arg7[%c0_328, %c2_329, %c1_330] : memref<8x10x10xf32, #tpu.memory_space<vmem>>, vector<1x8x8xf32>
    %358 = vector.shape_cast %357 : vector<1x8x8xf32> to vector<8x8xf32>
    %c7_331 = arith.constant 7 : index
    %c0_332 = arith.constant 0 : index
    %c0_333 = arith.constant 0 : index
    %c0_334 = arith.constant 0 : index
    %359 = vector.load %arg4[%c7_331, %c0_332, %c0_333, %c0_334] : memref<72x8x8x8xf32, #tpu.memory_space<vmem>>, vector<1x8x8x8xf32>
    %360 = vector.shape_cast %359 : vector<1x8x8x8xf32> to vector<8x8x8xf32>
    %361 = vector.shape_cast %358 : vector<8x8xf32> to vector<1x8x8xf32>
    %362 = vector.broadcast %361 : vector<1x8x8xf32> to vector<8x8x8xf32>
    %363 = arith.mulf %360, %362 : vector<8x8x8xf32>
    %364 = arith.addf %356, %363 : vector<8x8x8xf32>
    %c0_335 = arith.constant 0 : index
    %c2_336 = arith.constant 2 : index
    %c2_337 = arith.constant 2 : index
    %365 = vector.load %arg7[%c0_335, %c2_336, %c2_337] : memref<8x10x10xf32, #tpu.memory_space<vmem>>, vector<1x8x8xf32>
    %366 = vector.shape_cast %365 : vector<1x8x8xf32> to vector<8x8xf32>
    %c8_338 = arith.constant 8 : index
    %c0_339 = arith.constant 0 : index
    %c0_340 = arith.constant 0 : index
    %c0_341 = arith.constant 0 : index
    %367 = vector.load %arg4[%c8_338, %c0_339, %c0_340, %c0_341] : memref<72x8x8x8xf32, #tpu.memory_space<vmem>>, vector<1x8x8x8xf32>
    %368 = vector.shape_cast %367 : vector<1x8x8x8xf32> to vector<8x8x8xf32>
    %369 = vector.shape_cast %366 : vector<8x8xf32> to vector<1x8x8xf32>
    %370 = vector.broadcast %369 : vector<1x8x8xf32> to vector<8x8x8xf32>
    %371 = arith.mulf %368, %370 : vector<8x8x8xf32>
    %372 = arith.addf %364, %371 : vector<8x8x8xf32>
    %c1_342 = arith.constant 1 : index
    %c0_343 = arith.constant 0 : index
    %c0_344 = arith.constant 0 : index
    %373 = vector.load %arg7[%c1_342, %c0_343, %c0_344] : memref<8x10x10xf32, #tpu.memory_space<vmem>>, vector<1x8x8xf32>
    %374 = vector.shape_cast %373 : vector<1x8x8xf32> to vector<8x8xf32>
    %c9_345 = arith.constant 9 : index
    %c0_346 = arith.constant 0 : index
    %c0_347 = arith.constant 0 : index
    %c0_348 = arith.constant 0 : index
    %375 = vector.load %arg4[%c9_345, %c0_346, %c0_347, %c0_348] : memref<72x8x8x8xf32, #tpu.memory_space<vmem>>, vector<1x8x8x8xf32>
    %376 = vector.shape_cast %375 : vector<1x8x8x8xf32> to vector<8x8x8xf32>
    %377 = vector.shape_cast %374 : vector<8x8xf32> to vector<1x8x8xf32>
    %378 = vector.broadcast %377 : vector<1x8x8xf32> to vector<8x8x8xf32>
    %379 = arith.mulf %376, %378 : vector<8x8x8xf32>
    %380 = arith.addf %372, %379 : vector<8x8x8xf32>
    %c1_349 = arith.constant 1 : index
    %c0_350 = arith.constant 0 : index
    %c1_351 = arith.constant 1 : index
    %381 = vector.load %arg7[%c1_349, %c0_350, %c1_351] : memref<8x10x10xf32, #tpu.memory_space<vmem>>, vector<1x8x8xf32>
    %382 = vector.shape_cast %381 : vector<1x8x8xf32> to vector<8x8xf32>
    %c10_352 = arith.constant 10 : index
    %c0_353 = arith.constant 0 : index
    %c0_354 = arith.constant 0 : index
    %c0_355 = arith.constant 0 : index
    %383 = vector.load %arg4[%c10_352, %c0_353, %c0_354, %c0_355] : memref<72x8x8x8xf32, #tpu.memory_space<vmem>>, vector<1x8x8x8xf32>
    %384 = vector.shape_cast %383 : vector<1x8x8x8xf32> to vector<8x8x8xf32>
    %385 = vector.shape_cast %382 : vector<8x8xf32> to vector<1x8x8xf32>
    %386 = vector.broadcast %385 : vector<1x8x8xf32> to vector<8x8x8xf32>
    %387 = arith.mulf %384, %386 : vector<8x8x8xf32>
    %388 = arith.addf %380, %387 : vector<8x8x8xf32>
    %c1_356 = arith.constant 1 : index
    %c0_357 = arith.constant 0 : index
    %c2_358 = arith.constant 2 : index
    %389 = vector.load %arg7[%c1_356, %c0_357, %c2_358] : memref<8x10x10xf32, #tpu.memory_space<vmem>>, vector<1x8x8xf32>
    %390 = vector.shape_cast %389 : vector<1x8x8xf32> to vector<8x8xf32>
    %c11_359 = arith.constant 11 : index
    %c0_360 = arith.constant 0 : index
    %c0_361 = arith.constant 0 : index
    %c0_362 = arith.constant 0 : index
    %391 = vector.load %arg4[%c11_359, %c0_360, %c0_361, %c0_362] : memref<72x8x8x8xf32, #tpu.memory_space<vmem>>, vector<1x8x8x8xf32>
    %392 = vector.shape_cast %391 : vector<1x8x8x8xf32> to vector<8x8x8xf32>
    %393 = vector.shape_cast %390 : vector<8x8xf32> to vector<1x8x8xf32>
    %394 = vector.broadcast %393 : vector<1x8x8xf32> to vector<8x8x8xf32>
    %395 = arith.mulf %392, %394 : vector<8x8x8xf32>
    %396 = arith.addf %388, %395 : vector<8x8x8xf32>
    %c1_363 = arith.constant 1 : index
    %c1_364 = arith.constant 1 : index
    %c0_365 = arith.constant 0 : index
    %397 = vector.load %arg7[%c1_363, %c1_364, %c0_365] : memref<8x10x10xf32, #tpu.memory_space<vmem>>, vector<1x8x8xf32>
    %398 = vector.shape_cast %397 : vector<1x8x8xf32> to vector<8x8xf32>
    %c12_366 = arith.constant 12 : index
    %c0_367 = arith.constant 0 : index
    %c0_368 = arith.constant 0 : index
    %c0_369 = arith.constant 0 : index
    %399 = vector.load %arg4[%c12_366, %c0_367, %c0_368, %c0_369] : memref<72x8x8x8xf32, #tpu.memory_space<vmem>>, vector<1x8x8x8xf32>
    %400 = vector.shape_cast %399 : vector<1x8x8x8xf32> to vector<8x8x8xf32>
    %401 = vector.shape_cast %398 : vector<8x8xf32> to vector<1x8x8xf32>
    %402 = vector.broadcast %401 : vector<1x8x8xf32> to vector<8x8x8xf32>
    %403 = arith.mulf %400, %402 : vector<8x8x8xf32>
    %404 = arith.addf %396, %403 : vector<8x8x8xf32>
    %c1_370 = arith.constant 1 : index
    %c1_371 = arith.constant 1 : index
    %c1_372 = arith.constant 1 : index
    %405 = vector.load %arg7[%c1_370, %c1_371, %c1_372] : memref<8x10x10xf32, #tpu.memory_space<vmem>>, vector<1x8x8xf32>
    %406 = vector.shape_cast %405 : vector<1x8x8xf32> to vector<8x8xf32>
    %c13_373 = arith.constant 13 : index
    %c0_374 = arith.constant 0 : index
    %c0_375 = arith.constant 0 : index
    %c0_376 = arith.constant 0 : index
    %407 = vector.load %arg4[%c13_373, %c0_374, %c0_375, %c0_376] : memref<72x8x8x8xf32, #tpu.memory_space<vmem>>, vector<1x8x8x8xf32>
    %408 = vector.shape_cast %407 : vector<1x8x8x8xf32> to vector<8x8x8xf32>
    %409 = vector.shape_cast %406 : vector<8x8xf32> to vector<1x8x8xf32>
    %410 = vector.broadcast %409 : vector<1x8x8xf32> to vector<8x8x8xf32>
    %411 = arith.mulf %408, %410 : vector<8x8x8xf32>
    %412 = arith.addf %404, %411 : vector<8x8x8xf32>
    %c1_377 = arith.constant 1 : index
    %c1_378 = arith.constant 1 : index
    %c2_379 = arith.constant 2 : index
    %413 = vector.load %arg7[%c1_377, %c1_378, %c2_379] : memref<8x10x10xf32, #tpu.memory_space<vmem>>, vector<1x8x8xf32>
    %414 = vector.shape_cast %413 : vector<1x8x8xf32> to vector<8x8xf32>
    %c14_380 = arith.constant 14 : index
    %c0_381 = arith.constant 0 : index
    %c0_382 = arith.constant 0 : index
    %c0_383 = arith.constant 0 : index
    %415 = vector.load %arg4[%c14_380, %c0_381, %c0_382, %c0_383] : memref<72x8x8x8xf32, #tpu.memory_space<vmem>>, vector<1x8x8x8xf32>
    %416 = vector.shape_cast %415 : vector<1x8x8x8xf32> to vector<8x8x8xf32>
    %417 = vector.shape_cast %414 : vector<8x8xf32> to vector<1x8x8xf32>
    %418 = vector.broadcast %417 : vector<1x8x8xf32> to vector<8x8x8xf32>
    %419 = arith.mulf %416, %418 : vector<8x8x8xf32>
    %420 = arith.addf %412, %419 : vector<8x8x8xf32>
    %c1_384 = arith.constant 1 : index
    %c2_385 = arith.constant 2 : index
    %c0_386 = arith.constant 0 : index
    %421 = vector.load %arg7[%c1_384, %c2_385, %c0_386] : memref<8x10x10xf32, #tpu.memory_space<vmem>>, vector<1x8x8xf32>
    %422 = vector.shape_cast %421 : vector<1x8x8xf32> to vector<8x8xf32>
    %c15_387 = arith.constant 15 : index
    %c0_388 = arith.constant 0 : index
    %c0_389 = arith.constant 0 : index
    %c0_390 = arith.constant 0 : index
    %423 = vector.load %arg4[%c15_387, %c0_388, %c0_389, %c0_390] : memref<72x8x8x8xf32, #tpu.memory_space<vmem>>, vector<1x8x8x8xf32>
    %424 = vector.shape_cast %423 : vector<1x8x8x8xf32> to vector<8x8x8xf32>
    %425 = vector.shape_cast %422 : vector<8x8xf32> to vector<1x8x8xf32>
    %426 = vector.broadcast %425 : vector<1x8x8xf32> to vector<8x8x8xf32>
    %427 = arith.mulf %424, %426 : vector<8x8x8xf32>
    %428 = arith.addf %420, %427 : vector<8x8x8xf32>
    %c1_391 = arith.constant 1 : index
    %c2_392 = arith.constant 2 : index
    %c1_393 = arith.constant 1 : index
    %429 = vector.load %arg7[%c1_391, %c2_392, %c1_393] : memref<8x10x10xf32, #tpu.memory_space<vmem>>, vector<1x8x8xf32>
    %430 = vector.shape_cast %429 : vector<1x8x8xf32> to vector<8x8xf32>
    %c16_394 = arith.constant 16 : index
    %c0_395 = arith.constant 0 : index
    %c0_396 = arith.constant 0 : index
    %c0_397 = arith.constant 0 : index
    %431 = vector.load %arg4[%c16_394, %c0_395, %c0_396, %c0_397] : memref<72x8x8x8xf32, #tpu.memory_space<vmem>>, vector<1x8x8x8xf32>
    %432 = vector.shape_cast %431 : vector<1x8x8x8xf32> to vector<8x8x8xf32>
    %433 = vector.shape_cast %430 : vector<8x8xf32> to vector<1x8x8xf32>
    %434 = vector.broadcast %433 : vector<1x8x8xf32> to vector<8x8x8xf32>
    %435 = arith.mulf %432, %434 : vector<8x8x8xf32>
    %436 = arith.addf %428, %435 : vector<8x8x8xf32>
    %c1_398 = arith.constant 1 : index
    %c2_399 = arith.constant 2 : index
    %c2_400 = arith.constant 2 : index
    %437 = vector.load %arg7[%c1_398, %c2_399, %c2_400] : memref<8x10x10xf32, #tpu.memory_space<vmem>>, vector<1x8x8xf32>
    %438 = vector.shape_cast %437 : vector<1x8x8xf32> to vector<8x8xf32>
    %c17_401 = arith.constant 17 : index
    %c0_402 = arith.constant 0 : index
    %c0_403 = arith.constant 0 : index
    %c0_404 = arith.constant 0 : index
    %439 = vector.load %arg4[%c17_401, %c0_402, %c0_403, %c0_404] : memref<72x8x8x8xf32, #tpu.memory_space<vmem>>, vector<1x8x8x8xf32>
    %440 = vector.shape_cast %439 : vector<1x8x8x8xf32> to vector<8x8x8xf32>
    %441 = vector.shape_cast %438 : vector<8x8xf32> to vector<1x8x8xf32>
    %442 = vector.broadcast %441 : vector<1x8x8xf32> to vector<8x8x8xf32>
    %443 = arith.mulf %440, %442 : vector<8x8x8xf32>
    %444 = arith.addf %436, %443 : vector<8x8x8xf32>
    %c2_405 = arith.constant 2 : index
    %c0_406 = arith.constant 0 : index
    %c0_407 = arith.constant 0 : index
    %445 = vector.load %arg7[%c2_405, %c0_406, %c0_407] : memref<8x10x10xf32, #tpu.memory_space<vmem>>, vector<1x8x8xf32>
    %446 = vector.shape_cast %445 : vector<1x8x8xf32> to vector<8x8xf32>
    %c18_408 = arith.constant 18 : index
    %c0_409 = arith.constant 0 : index
    %c0_410 = arith.constant 0 : index
    %c0_411 = arith.constant 0 : index
    %447 = vector.load %arg4[%c18_408, %c0_409, %c0_410, %c0_411] : memref<72x8x8x8xf32, #tpu.memory_space<vmem>>, vector<1x8x8x8xf32>
    %448 = vector.shape_cast %447 : vector<1x8x8x8xf32> to vector<8x8x8xf32>
    %449 = vector.shape_cast %446 : vector<8x8xf32> to vector<1x8x8xf32>
    %450 = vector.broadcast %449 : vector<1x8x8xf32> to vector<8x8x8xf32>
    %451 = arith.mulf %448, %450 : vector<8x8x8xf32>
    %452 = arith.addf %444, %451 : vector<8x8x8xf32>
    %c2_412 = arith.constant 2 : index
    %c0_413 = arith.constant 0 : index
    %c1_414 = arith.constant 1 : index
    %453 = vector.load %arg7[%c2_412, %c0_413, %c1_414] : memref<8x10x10xf32, #tpu.memory_space<vmem>>, vector<1x8x8xf32>
    %454 = vector.shape_cast %453 : vector<1x8x8xf32> to vector<8x8xf32>
    %c19_415 = arith.constant 19 : index
    %c0_416 = arith.constant 0 : index
    %c0_417 = arith.constant 0 : index
    %c0_418 = arith.constant 0 : index
    %455 = vector.load %arg4[%c19_415, %c0_416, %c0_417, %c0_418] : memref<72x8x8x8xf32, #tpu.memory_space<vmem>>, vector<1x8x8x8xf32>
    %456 = vector.shape_cast %455 : vector<1x8x8x8xf32> to vector<8x8x8xf32>
    %457 = vector.shape_cast %454 : vector<8x8xf32> to vector<1x8x8xf32>
    %458 = vector.broadcast %457 : vector<1x8x8xf32> to vector<8x8x8xf32>
    %459 = arith.mulf %456, %458 : vector<8x8x8xf32>
    %460 = arith.addf %452, %459 : vector<8x8x8xf32>
    %c2_419 = arith.constant 2 : index
    %c0_420 = arith.constant 0 : index
    %c2_421 = arith.constant 2 : index
    %461 = vector.load %arg7[%c2_419, %c0_420, %c2_421] : memref<8x10x10xf32, #tpu.memory_space<vmem>>, vector<1x8x8xf32>
    %462 = vector.shape_cast %461 : vector<1x8x8xf32> to vector<8x8xf32>
    %c20_422 = arith.constant 20 : index
    %c0_423 = arith.constant 0 : index
    %c0_424 = arith.constant 0 : index
    %c0_425 = arith.constant 0 : index
    %463 = vector.load %arg4[%c20_422, %c0_423, %c0_424, %c0_425] : memref<72x8x8x8xf32, #tpu.memory_space<vmem>>, vector<1x8x8x8xf32>
    %464 = vector.shape_cast %463 : vector<1x8x8x8xf32> to vector<8x8x8xf32>
    %465 = vector.shape_cast %462 : vector<8x8xf32> to vector<1x8x8xf32>
    %466 = vector.broadcast %465 : vector<1x8x8xf32> to vector<8x8x8xf32>
    %467 = arith.mulf %464, %466 : vector<8x8x8xf32>
    %468 = arith.addf %460, %467 : vector<8x8x8xf32>
    %c2_426 = arith.constant 2 : index
    %c1_427 = arith.constant 1 : index
    %c0_428 = arith.constant 0 : index
    %469 = vector.load %arg7[%c2_426, %c1_427, %c0_428] : memref<8x10x10xf32, #tpu.memory_space<vmem>>, vector<1x8x8xf32>
    %470 = vector.shape_cast %469 : vector<1x8x8xf32> to vector<8x8xf32>
    %c21_429 = arith.constant 21 : index
    %c0_430 = arith.constant 0 : index
    %c0_431 = arith.constant 0 : index
    %c0_432 = arith.constant 0 : index
    %471 = vector.load %arg4[%c21_429, %c0_430, %c0_431, %c0_432] : memref<72x8x8x8xf32, #tpu.memory_space<vmem>>, vector<1x8x8x8xf32>
    %472 = vector.shape_cast %471 : vector<1x8x8x8xf32> to vector<8x8x8xf32>
    %473 = vector.shape_cast %470 : vector<8x8xf32> to vector<1x8x8xf32>
    %474 = vector.broadcast %473 : vector<1x8x8xf32> to vector<8x8x8xf32>
    %475 = arith.mulf %472, %474 : vector<8x8x8xf32>
    %476 = arith.addf %468, %475 : vector<8x8x8xf32>
    %c2_433 = arith.constant 2 : index
    %c1_434 = arith.constant 1 : index
    %c1_435 = arith.constant 1 : index
    %477 = vector.load %arg7[%c2_433, %c1_434, %c1_435] : memref<8x10x10xf32, #tpu.memory_space<vmem>>, vector<1x8x8xf32>
    %478 = vector.shape_cast %477 : vector<1x8x8xf32> to vector<8x8xf32>
    %c22_436 = arith.constant 22 : index
    %c0_437 = arith.constant 0 : index
    %c0_438 = arith.constant 0 : index
    %c0_439 = arith.constant 0 : index
    %479 = vector.load %arg4[%c22_436, %c0_437, %c0_438, %c0_439] : memref<72x8x8x8xf32, #tpu.memory_space<vmem>>, vector<1x8x8x8xf32>
    %480 = vector.shape_cast %479 : vector<1x8x8x8xf32> to vector<8x8x8xf32>
    %481 = vector.shape_cast %478 : vector<8x8xf32> to vector<1x8x8xf32>
    %482 = vector.broadcast %481 : vector<1x8x8xf32> to vector<8x8x8xf32>
    %483 = arith.mulf %480, %482 : vector<8x8x8xf32>
    %484 = arith.addf %476, %483 : vector<8x8x8xf32>
    %c2_440 = arith.constant 2 : index
    %c1_441 = arith.constant 1 : index
    %c2_442 = arith.constant 2 : index
    %485 = vector.load %arg7[%c2_440, %c1_441, %c2_442] : memref<8x10x10xf32, #tpu.memory_space<vmem>>, vector<1x8x8xf32>
    %486 = vector.shape_cast %485 : vector<1x8x8xf32> to vector<8x8xf32>
    %c23_443 = arith.constant 23 : index
    %c0_444 = arith.constant 0 : index
    %c0_445 = arith.constant 0 : index
    %c0_446 = arith.constant 0 : index
    %487 = vector.load %arg4[%c23_443, %c0_444, %c0_445, %c0_446] : memref<72x8x8x8xf32, #tpu.memory_space<vmem>>, vector<1x8x8x8xf32>
    %488 = vector.shape_cast %487 : vector<1x8x8x8xf32> to vector<8x8x8xf32>
    %489 = vector.shape_cast %486 : vector<8x8xf32> to vector<1x8x8xf32>
    %490 = vector.broadcast %489 : vector<1x8x8xf32> to vector<8x8x8xf32>
    %491 = arith.mulf %488, %490 : vector<8x8x8xf32>
    %492 = arith.addf %484, %491 : vector<8x8x8xf32>
    %c2_447 = arith.constant 2 : index
    %c2_448 = arith.constant 2 : index
    %c0_449 = arith.constant 0 : index
    %493 = vector.load %arg7[%c2_447, %c2_448, %c0_449] : memref<8x10x10xf32, #tpu.memory_space<vmem>>, vector<1x8x8xf32>
    %494 = vector.shape_cast %493 : vector<1x8x8xf32> to vector<8x8xf32>
    %c24_450 = arith.constant 24 : index
    %c0_451 = arith.constant 0 : index
    %c0_452 = arith.constant 0 : index
    %c0_453 = arith.constant 0 : index
    %495 = vector.load %arg4[%c24_450, %c0_451, %c0_452, %c0_453] : memref<72x8x8x8xf32, #tpu.memory_space<vmem>>, vector<1x8x8x8xf32>
    %496 = vector.shape_cast %495 : vector<1x8x8x8xf32> to vector<8x8x8xf32>
    %497 = vector.shape_cast %494 : vector<8x8xf32> to vector<1x8x8xf32>
    %498 = vector.broadcast %497 : vector<1x8x8xf32> to vector<8x8x8xf32>
    %499 = arith.mulf %496, %498 : vector<8x8x8xf32>
    %500 = arith.addf %492, %499 : vector<8x8x8xf32>
    %c2_454 = arith.constant 2 : index
    %c2_455 = arith.constant 2 : index
    %c1_456 = arith.constant 1 : index
    %501 = vector.load %arg7[%c2_454, %c2_455, %c1_456] : memref<8x10x10xf32, #tpu.memory_space<vmem>>, vector<1x8x8xf32>
    %502 = vector.shape_cast %501 : vector<1x8x8xf32> to vector<8x8xf32>
    %c25_457 = arith.constant 25 : index
    %c0_458 = arith.constant 0 : index
    %c0_459 = arith.constant 0 : index
    %c0_460 = arith.constant 0 : index
    %503 = vector.load %arg4[%c25_457, %c0_458, %c0_459, %c0_460] : memref<72x8x8x8xf32, #tpu.memory_space<vmem>>, vector<1x8x8x8xf32>
    %504 = vector.shape_cast %503 : vector<1x8x8x8xf32> to vector<8x8x8xf32>
    %505 = vector.shape_cast %502 : vector<8x8xf32> to vector<1x8x8xf32>
    %506 = vector.broadcast %505 : vector<1x8x8xf32> to vector<8x8x8xf32>
    %507 = arith.mulf %504, %506 : vector<8x8x8xf32>
    %508 = arith.addf %500, %507 : vector<8x8x8xf32>
    %c2_461 = arith.constant 2 : index
    %c2_462 = arith.constant 2 : index
    %c2_463 = arith.constant 2 : index
    %509 = vector.load %arg7[%c2_461, %c2_462, %c2_463] : memref<8x10x10xf32, #tpu.memory_space<vmem>>, vector<1x8x8xf32>
    %510 = vector.shape_cast %509 : vector<1x8x8xf32> to vector<8x8xf32>
    %c26_464 = arith.constant 26 : index
    %c0_465 = arith.constant 0 : index
    %c0_466 = arith.constant 0 : index
    %c0_467 = arith.constant 0 : index
    %511 = vector.load %arg4[%c26_464, %c0_465, %c0_466, %c0_467] : memref<72x8x8x8xf32, #tpu.memory_space<vmem>>, vector<1x8x8x8xf32>
    %512 = vector.shape_cast %511 : vector<1x8x8x8xf32> to vector<8x8x8xf32>
    %513 = vector.shape_cast %510 : vector<8x8xf32> to vector<1x8x8xf32>
    %514 = vector.broadcast %513 : vector<1x8x8xf32> to vector<8x8x8xf32>
    %515 = arith.mulf %512, %514 : vector<8x8x8xf32>
    %516 = arith.addf %508, %515 : vector<8x8x8xf32>
    %c3_468 = arith.constant 3 : index
    %c0_469 = arith.constant 0 : index
    %c0_470 = arith.constant 0 : index
    %517 = vector.load %arg7[%c3_468, %c0_469, %c0_470] : memref<8x10x10xf32, #tpu.memory_space<vmem>>, vector<1x8x8xf32>
    %518 = vector.shape_cast %517 : vector<1x8x8xf32> to vector<8x8xf32>
    %c27_471 = arith.constant 27 : index
    %c0_472 = arith.constant 0 : index
    %c0_473 = arith.constant 0 : index
    %c0_474 = arith.constant 0 : index
    %519 = vector.load %arg4[%c27_471, %c0_472, %c0_473, %c0_474] : memref<72x8x8x8xf32, #tpu.memory_space<vmem>>, vector<1x8x8x8xf32>
    %520 = vector.shape_cast %519 : vector<1x8x8x8xf32> to vector<8x8x8xf32>
    %521 = vector.shape_cast %518 : vector<8x8xf32> to vector<1x8x8xf32>
    %522 = vector.broadcast %521 : vector<1x8x8xf32> to vector<8x8x8xf32>
    %523 = arith.mulf %520, %522 : vector<8x8x8xf32>
    %524 = arith.addf %516, %523 : vector<8x8x8xf32>
    %c3_475 = arith.constant 3 : index
    %c0_476 = arith.constant 0 : index
    %c1_477 = arith.constant 1 : index
    %525 = vector.load %arg7[%c3_475, %c0_476, %c1_477] : memref<8x10x10xf32, #tpu.memory_space<vmem>>, vector<1x8x8xf32>
    %526 = vector.shape_cast %525 : vector<1x8x8xf32> to vector<8x8xf32>
    %c28_478 = arith.constant 28 : index
    %c0_479 = arith.constant 0 : index
    %c0_480 = arith.constant 0 : index
    %c0_481 = arith.constant 0 : index
    %527 = vector.load %arg4[%c28_478, %c0_479, %c0_480, %c0_481] : memref<72x8x8x8xf32, #tpu.memory_space<vmem>>, vector<1x8x8x8xf32>
    %528 = vector.shape_cast %527 : vector<1x8x8x8xf32> to vector<8x8x8xf32>
    %529 = vector.shape_cast %526 : vector<8x8xf32> to vector<1x8x8xf32>
    %530 = vector.broadcast %529 : vector<1x8x8xf32> to vector<8x8x8xf32>
    %531 = arith.mulf %528, %530 : vector<8x8x8xf32>
    %532 = arith.addf %524, %531 : vector<8x8x8xf32>
    %c3_482 = arith.constant 3 : index
    %c0_483 = arith.constant 0 : index
    %c2_484 = arith.constant 2 : index
    %533 = vector.load %arg7[%c3_482, %c0_483, %c2_484] : memref<8x10x10xf32, #tpu.memory_space<vmem>>, vector<1x8x8xf32>
    %534 = vector.shape_cast %533 : vector<1x8x8xf32> to vector<8x8xf32>
    %c29_485 = arith.constant 29 : index
    %c0_486 = arith.constant 0 : index
    %c0_487 = arith.constant 0 : index
    %c0_488 = arith.constant 0 : index
    %535 = vector.load %arg4[%c29_485, %c0_486, %c0_487, %c0_488] : memref<72x8x8x8xf32, #tpu.memory_space<vmem>>, vector<1x8x8x8xf32>
    %536 = vector.shape_cast %535 : vector<1x8x8x8xf32> to vector<8x8x8xf32>
    %537 = vector.shape_cast %534 : vector<8x8xf32> to vector<1x8x8xf32>
    %538 = vector.broadcast %537 : vector<1x8x8xf32> to vector<8x8x8xf32>
    %539 = arith.mulf %536, %538 : vector<8x8x8xf32>
    %540 = arith.addf %532, %539 : vector<8x8x8xf32>
    %c3_489 = arith.constant 3 : index
    %c1_490 = arith.constant 1 : index
    %c0_491 = arith.constant 0 : index
    %541 = vector.load %arg7[%c3_489, %c1_490, %c0_491] : memref<8x10x10xf32, #tpu.memory_space<vmem>>, vector<1x8x8xf32>
    %542 = vector.shape_cast %541 : vector<1x8x8xf32> to vector<8x8xf32>
    %c30_492 = arith.constant 30 : index
    %c0_493 = arith.constant 0 : index
    %c0_494 = arith.constant 0 : index
    %c0_495 = arith.constant 0 : index
    %543 = vector.load %arg4[%c30_492, %c0_493, %c0_494, %c0_495] : memref<72x8x8x8xf32, #tpu.memory_space<vmem>>, vector<1x8x8x8xf32>
    %544 = vector.shape_cast %543 : vector<1x8x8x8xf32> to vector<8x8x8xf32>
    %545 = vector.shape_cast %542 : vector<8x8xf32> to vector<1x8x8xf32>
    %546 = vector.broadcast %545 : vector<1x8x8xf32> to vector<8x8x8xf32>
    %547 = arith.mulf %544, %546 : vector<8x8x8xf32>
    %548 = arith.addf %540, %547 : vector<8x8x8xf32>
    %c3_496 = arith.constant 3 : index
    %c1_497 = arith.constant 1 : index
    %c1_498 = arith.constant 1 : index
    %549 = vector.load %arg7[%c3_496, %c1_497, %c1_498] : memref<8x10x10xf32, #tpu.memory_space<vmem>>, vector<1x8x8xf32>
    %550 = vector.shape_cast %549 : vector<1x8x8xf32> to vector<8x8xf32>
    %c31_499 = arith.constant 31 : index
    %c0_500 = arith.constant 0 : index
    %c0_501 = arith.constant 0 : index
    %c0_502 = arith.constant 0 : index
    %551 = vector.load %arg4[%c31_499, %c0_500, %c0_501, %c0_502] : memref<72x8x8x8xf32, #tpu.memory_space<vmem>>, vector<1x8x8x8xf32>
    %552 = vector.shape_cast %551 : vector<1x8x8x8xf32> to vector<8x8x8xf32>
    %553 = vector.shape_cast %550 : vector<8x8xf32> to vector<1x8x8xf32>
    %554 = vector.broadcast %553 : vector<1x8x8xf32> to vector<8x8x8xf32>
    %555 = arith.mulf %552, %554 : vector<8x8x8xf32>
    %556 = arith.addf %548, %555 : vector<8x8x8xf32>
    %c3_503 = arith.constant 3 : index
    %c1_504 = arith.constant 1 : index
    %c2_505 = arith.constant 2 : index
    %557 = vector.load %arg7[%c3_503, %c1_504, %c2_505] : memref<8x10x10xf32, #tpu.memory_space<vmem>>, vector<1x8x8xf32>
    %558 = vector.shape_cast %557 : vector<1x8x8xf32> to vector<8x8xf32>
    %c32_506 = arith.constant 32 : index
    %c0_507 = arith.constant 0 : index
    %c0_508 = arith.constant 0 : index
    %c0_509 = arith.constant 0 : index
    %559 = vector.load %arg4[%c32_506, %c0_507, %c0_508, %c0_509] : memref<72x8x8x8xf32, #tpu.memory_space<vmem>>, vector<1x8x8x8xf32>
    %560 = vector.shape_cast %559 : vector<1x8x8x8xf32> to vector<8x8x8xf32>
    %561 = vector.shape_cast %558 : vector<8x8xf32> to vector<1x8x8xf32>
    %562 = vector.broadcast %561 : vector<1x8x8xf32> to vector<8x8x8xf32>
    %563 = arith.mulf %560, %562 : vector<8x8x8xf32>
    %564 = arith.addf %556, %563 : vector<8x8x8xf32>
    %c3_510 = arith.constant 3 : index
    %c2_511 = arith.constant 2 : index
    %c0_512 = arith.constant 0 : index
    %565 = vector.load %arg7[%c3_510, %c2_511, %c0_512] : memref<8x10x10xf32, #tpu.memory_space<vmem>>, vector<1x8x8xf32>
    %566 = vector.shape_cast %565 : vector<1x8x8xf32> to vector<8x8xf32>
    %c33_513 = arith.constant 33 : index
    %c0_514 = arith.constant 0 : index
    %c0_515 = arith.constant 0 : index
    %c0_516 = arith.constant 0 : index
    %567 = vector.load %arg4[%c33_513, %c0_514, %c0_515, %c0_516] : memref<72x8x8x8xf32, #tpu.memory_space<vmem>>, vector<1x8x8x8xf32>
    %568 = vector.shape_cast %567 : vector<1x8x8x8xf32> to vector<8x8x8xf32>
    %569 = vector.shape_cast %566 : vector<8x8xf32> to vector<1x8x8xf32>
    %570 = vector.broadcast %569 : vector<1x8x8xf32> to vector<8x8x8xf32>
    %571 = arith.mulf %568, %570 : vector<8x8x8xf32>
    %572 = arith.addf %564, %571 : vector<8x8x8xf32>
    %c3_517 = arith.constant 3 : index
    %c2_518 = arith.constant 2 : index
    %c1_519 = arith.constant 1 : index
    %573 = vector.load %arg7[%c3_517, %c2_518, %c1_519] : memref<8x10x10xf32, #tpu.memory_space<vmem>>, vector<1x8x8xf32>
    %574 = vector.shape_cast %573 : vector<1x8x8xf32> to vector<8x8xf32>
    %c34_520 = arith.constant 34 : index
    %c0_521 = arith.constant 0 : index
    %c0_522 = arith.constant 0 : index
    %c0_523 = arith.constant 0 : index
    %575 = vector.load %arg4[%c34_520, %c0_521, %c0_522, %c0_523] : memref<72x8x8x8xf32, #tpu.memory_space<vmem>>, vector<1x8x8x8xf32>
    %576 = vector.shape_cast %575 : vector<1x8x8x8xf32> to vector<8x8x8xf32>
    %577 = vector.shape_cast %574 : vector<8x8xf32> to vector<1x8x8xf32>
    %578 = vector.broadcast %577 : vector<1x8x8xf32> to vector<8x8x8xf32>
    %579 = arith.mulf %576, %578 : vector<8x8x8xf32>
    %580 = arith.addf %572, %579 : vector<8x8x8xf32>
    %c3_524 = arith.constant 3 : index
    %c2_525 = arith.constant 2 : index
    %c2_526 = arith.constant 2 : index
    %581 = vector.load %arg7[%c3_524, %c2_525, %c2_526] : memref<8x10x10xf32, #tpu.memory_space<vmem>>, vector<1x8x8xf32>
    %582 = vector.shape_cast %581 : vector<1x8x8xf32> to vector<8x8xf32>
    %c35_527 = arith.constant 35 : index
    %c0_528 = arith.constant 0 : index
    %c0_529 = arith.constant 0 : index
    %c0_530 = arith.constant 0 : index
    %583 = vector.load %arg4[%c35_527, %c0_528, %c0_529, %c0_530] : memref<72x8x8x8xf32, #tpu.memory_space<vmem>>, vector<1x8x8x8xf32>
    %584 = vector.shape_cast %583 : vector<1x8x8x8xf32> to vector<8x8x8xf32>
    %585 = vector.shape_cast %582 : vector<8x8xf32> to vector<1x8x8xf32>
    %586 = vector.broadcast %585 : vector<1x8x8xf32> to vector<8x8x8xf32>
    %587 = arith.mulf %584, %586 : vector<8x8x8xf32>
    %588 = arith.addf %580, %587 : vector<8x8x8xf32>
    %c4_531 = arith.constant 4 : index
    %c0_532 = arith.constant 0 : index
    %c0_533 = arith.constant 0 : index
    %589 = vector.load %arg7[%c4_531, %c0_532, %c0_533] : memref<8x10x10xf32, #tpu.memory_space<vmem>>, vector<1x8x8xf32>
    %590 = vector.shape_cast %589 : vector<1x8x8xf32> to vector<8x8xf32>
    %c36 = arith.constant 36 : index
    %c0_534 = arith.constant 0 : index
    %c0_535 = arith.constant 0 : index
    %c0_536 = arith.constant 0 : index
    %591 = vector.load %arg4[%c36, %c0_534, %c0_535, %c0_536] : memref<72x8x8x8xf32, #tpu.memory_space<vmem>>, vector<1x8x8x8xf32>
    %592 = vector.shape_cast %591 : vector<1x8x8x8xf32> to vector<8x8x8xf32>
    %593 = vector.shape_cast %590 : vector<8x8xf32> to vector<1x8x8xf32>
    %594 = vector.broadcast %593 : vector<1x8x8xf32> to vector<8x8x8xf32>
    %595 = arith.mulf %592, %594 : vector<8x8x8xf32>
    %596 = arith.addf %588, %595 : vector<8x8x8xf32>
    %c4_537 = arith.constant 4 : index
    %c0_538 = arith.constant 0 : index
    %c1_539 = arith.constant 1 : index
    %597 = vector.load %arg7[%c4_537, %c0_538, %c1_539] : memref<8x10x10xf32, #tpu.memory_space<vmem>>, vector<1x8x8xf32>
    %598 = vector.shape_cast %597 : vector<1x8x8xf32> to vector<8x8xf32>
    %c37 = arith.constant 37 : index
    %c0_540 = arith.constant 0 : index
    %c0_541 = arith.constant 0 : index
    %c0_542 = arith.constant 0 : index
    %599 = vector.load %arg4[%c37, %c0_540, %c0_541, %c0_542] : memref<72x8x8x8xf32, #tpu.memory_space<vmem>>, vector<1x8x8x8xf32>
    %600 = vector.shape_cast %599 : vector<1x8x8x8xf32> to vector<8x8x8xf32>
    %601 = vector.shape_cast %598 : vector<8x8xf32> to vector<1x8x8xf32>
    %602 = vector.broadcast %601 : vector<1x8x8xf32> to vector<8x8x8xf32>
    %603 = arith.mulf %600, %602 : vector<8x8x8xf32>
    %604 = arith.addf %596, %603 : vector<8x8x8xf32>
    %c4_543 = arith.constant 4 : index
    %c0_544 = arith.constant 0 : index
    %c2_545 = arith.constant 2 : index
    %605 = vector.load %arg7[%c4_543, %c0_544, %c2_545] : memref<8x10x10xf32, #tpu.memory_space<vmem>>, vector<1x8x8xf32>
    %606 = vector.shape_cast %605 : vector<1x8x8xf32> to vector<8x8xf32>
    %c38 = arith.constant 38 : index
    %c0_546 = arith.constant 0 : index
    %c0_547 = arith.constant 0 : index
    %c0_548 = arith.constant 0 : index
    %607 = vector.load %arg4[%c38, %c0_546, %c0_547, %c0_548] : memref<72x8x8x8xf32, #tpu.memory_space<vmem>>, vector<1x8x8x8xf32>
    %608 = vector.shape_cast %607 : vector<1x8x8x8xf32> to vector<8x8x8xf32>
    %609 = vector.shape_cast %606 : vector<8x8xf32> to vector<1x8x8xf32>
    %610 = vector.broadcast %609 : vector<1x8x8xf32> to vector<8x8x8xf32>
    %611 = arith.mulf %608, %610 : vector<8x8x8xf32>
    %612 = arith.addf %604, %611 : vector<8x8x8xf32>
    %c4_549 = arith.constant 4 : index
    %c1_550 = arith.constant 1 : index
    %c0_551 = arith.constant 0 : index
    %613 = vector.load %arg7[%c4_549, %c1_550, %c0_551] : memref<8x10x10xf32, #tpu.memory_space<vmem>>, vector<1x8x8xf32>
    %614 = vector.shape_cast %613 : vector<1x8x8xf32> to vector<8x8xf32>
    %c39 = arith.constant 39 : index
    %c0_552 = arith.constant 0 : index
    %c0_553 = arith.constant 0 : index
    %c0_554 = arith.constant 0 : index
    %615 = vector.load %arg4[%c39, %c0_552, %c0_553, %c0_554] : memref<72x8x8x8xf32, #tpu.memory_space<vmem>>, vector<1x8x8x8xf32>
    %616 = vector.shape_cast %615 : vector<1x8x8x8xf32> to vector<8x8x8xf32>
    %617 = vector.shape_cast %614 : vector<8x8xf32> to vector<1x8x8xf32>
    %618 = vector.broadcast %617 : vector<1x8x8xf32> to vector<8x8x8xf32>
    %619 = arith.mulf %616, %618 : vector<8x8x8xf32>
    %620 = arith.addf %612, %619 : vector<8x8x8xf32>
    %c4_555 = arith.constant 4 : index
    %c1_556 = arith.constant 1 : index
    %c1_557 = arith.constant 1 : index
    %621 = vector.load %arg7[%c4_555, %c1_556, %c1_557] : memref<8x10x10xf32, #tpu.memory_space<vmem>>, vector<1x8x8xf32>
    %622 = vector.shape_cast %621 : vector<1x8x8xf32> to vector<8x8xf32>
    %c40 = arith.constant 40 : index
    %c0_558 = arith.constant 0 : index
    %c0_559 = arith.constant 0 : index
    %c0_560 = arith.constant 0 : index
    %623 = vector.load %arg4[%c40, %c0_558, %c0_559, %c0_560] : memref<72x8x8x8xf32, #tpu.memory_space<vmem>>, vector<1x8x8x8xf32>
    %624 = vector.shape_cast %623 : vector<1x8x8x8xf32> to vector<8x8x8xf32>
    %625 = vector.shape_cast %622 : vector<8x8xf32> to vector<1x8x8xf32>
    %626 = vector.broadcast %625 : vector<1x8x8xf32> to vector<8x8x8xf32>
    %627 = arith.mulf %624, %626 : vector<8x8x8xf32>
    %628 = arith.addf %620, %627 : vector<8x8x8xf32>
    %c4_561 = arith.constant 4 : index
    %c1_562 = arith.constant 1 : index
    %c2_563 = arith.constant 2 : index
    %629 = vector.load %arg7[%c4_561, %c1_562, %c2_563] : memref<8x10x10xf32, #tpu.memory_space<vmem>>, vector<1x8x8xf32>
    %630 = vector.shape_cast %629 : vector<1x8x8xf32> to vector<8x8xf32>
    %c41 = arith.constant 41 : index
    %c0_564 = arith.constant 0 : index
    %c0_565 = arith.constant 0 : index
    %c0_566 = arith.constant 0 : index
    %631 = vector.load %arg4[%c41, %c0_564, %c0_565, %c0_566] : memref<72x8x8x8xf32, #tpu.memory_space<vmem>>, vector<1x8x8x8xf32>
    %632 = vector.shape_cast %631 : vector<1x8x8x8xf32> to vector<8x8x8xf32>
    %633 = vector.shape_cast %630 : vector<8x8xf32> to vector<1x8x8xf32>
    %634 = vector.broadcast %633 : vector<1x8x8xf32> to vector<8x8x8xf32>
    %635 = arith.mulf %632, %634 : vector<8x8x8xf32>
    %636 = arith.addf %628, %635 : vector<8x8x8xf32>
    %c4_567 = arith.constant 4 : index
    %c2_568 = arith.constant 2 : index
    %c0_569 = arith.constant 0 : index
    %637 = vector.load %arg7[%c4_567, %c2_568, %c0_569] : memref<8x10x10xf32, #tpu.memory_space<vmem>>, vector<1x8x8xf32>
    %638 = vector.shape_cast %637 : vector<1x8x8xf32> to vector<8x8xf32>
    %c42 = arith.constant 42 : index
    %c0_570 = arith.constant 0 : index
    %c0_571 = arith.constant 0 : index
    %c0_572 = arith.constant 0 : index
    %639 = vector.load %arg4[%c42, %c0_570, %c0_571, %c0_572] : memref<72x8x8x8xf32, #tpu.memory_space<vmem>>, vector<1x8x8x8xf32>
    %640 = vector.shape_cast %639 : vector<1x8x8x8xf32> to vector<8x8x8xf32>
    %641 = vector.shape_cast %638 : vector<8x8xf32> to vector<1x8x8xf32>
    %642 = vector.broadcast %641 : vector<1x8x8xf32> to vector<8x8x8xf32>
    %643 = arith.mulf %640, %642 : vector<8x8x8xf32>
    %644 = arith.addf %636, %643 : vector<8x8x8xf32>
    %c4_573 = arith.constant 4 : index
    %c2_574 = arith.constant 2 : index
    %c1_575 = arith.constant 1 : index
    %645 = vector.load %arg7[%c4_573, %c2_574, %c1_575] : memref<8x10x10xf32, #tpu.memory_space<vmem>>, vector<1x8x8xf32>
    %646 = vector.shape_cast %645 : vector<1x8x8xf32> to vector<8x8xf32>
    %c43 = arith.constant 43 : index
    %c0_576 = arith.constant 0 : index
    %c0_577 = arith.constant 0 : index
    %c0_578 = arith.constant 0 : index
    %647 = vector.load %arg4[%c43, %c0_576, %c0_577, %c0_578] : memref<72x8x8x8xf32, #tpu.memory_space<vmem>>, vector<1x8x8x8xf32>
    %648 = vector.shape_cast %647 : vector<1x8x8x8xf32> to vector<8x8x8xf32>
    %649 = vector.shape_cast %646 : vector<8x8xf32> to vector<1x8x8xf32>
    %650 = vector.broadcast %649 : vector<1x8x8xf32> to vector<8x8x8xf32>
    %651 = arith.mulf %648, %650 : vector<8x8x8xf32>
    %652 = arith.addf %644, %651 : vector<8x8x8xf32>
    %c4_579 = arith.constant 4 : index
    %c2_580 = arith.constant 2 : index
    %c2_581 = arith.constant 2 : index
    %653 = vector.load %arg7[%c4_579, %c2_580, %c2_581] : memref<8x10x10xf32, #tpu.memory_space<vmem>>, vector<1x8x8xf32>
    %654 = vector.shape_cast %653 : vector<1x8x8xf32> to vector<8x8xf32>
    %c44 = arith.constant 44 : index
    %c0_582 = arith.constant 0 : index
    %c0_583 = arith.constant 0 : index
    %c0_584 = arith.constant 0 : index
    %655 = vector.load %arg4[%c44, %c0_582, %c0_583, %c0_584] : memref<72x8x8x8xf32, #tpu.memory_space<vmem>>, vector<1x8x8x8xf32>
    %656 = vector.shape_cast %655 : vector<1x8x8x8xf32> to vector<8x8x8xf32>
    %657 = vector.shape_cast %654 : vector<8x8xf32> to vector<1x8x8xf32>
    %658 = vector.broadcast %657 : vector<1x8x8xf32> to vector<8x8x8xf32>
    %659 = arith.mulf %656, %658 : vector<8x8x8xf32>
    %660 = arith.addf %652, %659 : vector<8x8x8xf32>
    %c5_585 = arith.constant 5 : index
    %c0_586 = arith.constant 0 : index
    %c0_587 = arith.constant 0 : index
    %661 = vector.load %arg7[%c5_585, %c0_586, %c0_587] : memref<8x10x10xf32, #tpu.memory_space<vmem>>, vector<1x8x8xf32>
    %662 = vector.shape_cast %661 : vector<1x8x8xf32> to vector<8x8xf32>
    %c45 = arith.constant 45 : index
    %c0_588 = arith.constant 0 : index
    %c0_589 = arith.constant 0 : index
    %c0_590 = arith.constant 0 : index
    %663 = vector.load %arg4[%c45, %c0_588, %c0_589, %c0_590] : memref<72x8x8x8xf32, #tpu.memory_space<vmem>>, vector<1x8x8x8xf32>
    %664 = vector.shape_cast %663 : vector<1x8x8x8xf32> to vector<8x8x8xf32>
    %665 = vector.shape_cast %662 : vector<8x8xf32> to vector<1x8x8xf32>
    %666 = vector.broadcast %665 : vector<1x8x8xf32> to vector<8x8x8xf32>
    %667 = arith.mulf %664, %666 : vector<8x8x8xf32>
    %668 = arith.addf %660, %667 : vector<8x8x8xf32>
    %c5_591 = arith.constant 5 : index
    %c0_592 = arith.constant 0 : index
    %c1_593 = arith.constant 1 : index
    %669 = vector.load %arg7[%c5_591, %c0_592, %c1_593] : memref<8x10x10xf32, #tpu.memory_space<vmem>>, vector<1x8x8xf32>
    %670 = vector.shape_cast %669 : vector<1x8x8xf32> to vector<8x8xf32>
    %c46 = arith.constant 46 : index
    %c0_594 = arith.constant 0 : index
    %c0_595 = arith.constant 0 : index
    %c0_596 = arith.constant 0 : index
    %671 = vector.load %arg4[%c46, %c0_594, %c0_595, %c0_596] : memref<72x8x8x8xf32, #tpu.memory_space<vmem>>, vector<1x8x8x8xf32>
    %672 = vector.shape_cast %671 : vector<1x8x8x8xf32> to vector<8x8x8xf32>
    %673 = vector.shape_cast %670 : vector<8x8xf32> to vector<1x8x8xf32>
    %674 = vector.broadcast %673 : vector<1x8x8xf32> to vector<8x8x8xf32>
    %675 = arith.mulf %672, %674 : vector<8x8x8xf32>
    %676 = arith.addf %668, %675 : vector<8x8x8xf32>
    %c5_597 = arith.constant 5 : index
    %c0_598 = arith.constant 0 : index
    %c2_599 = arith.constant 2 : index
    %677 = vector.load %arg7[%c5_597, %c0_598, %c2_599] : memref<8x10x10xf32, #tpu.memory_space<vmem>>, vector<1x8x8xf32>
    %678 = vector.shape_cast %677 : vector<1x8x8xf32> to vector<8x8xf32>
    %c47 = arith.constant 47 : index
    %c0_600 = arith.constant 0 : index
    %c0_601 = arith.constant 0 : index
    %c0_602 = arith.constant 0 : index
    %679 = vector.load %arg4[%c47, %c0_600, %c0_601, %c0_602] : memref<72x8x8x8xf32, #tpu.memory_space<vmem>>, vector<1x8x8x8xf32>
    %680 = vector.shape_cast %679 : vector<1x8x8x8xf32> to vector<8x8x8xf32>
    %681 = vector.shape_cast %678 : vector<8x8xf32> to vector<1x8x8xf32>
    %682 = vector.broadcast %681 : vector<1x8x8xf32> to vector<8x8x8xf32>
    %683 = arith.mulf %680, %682 : vector<8x8x8xf32>
    %684 = arith.addf %676, %683 : vector<8x8x8xf32>
    %c5_603 = arith.constant 5 : index
    %c1_604 = arith.constant 1 : index
    %c0_605 = arith.constant 0 : index
    %685 = vector.load %arg7[%c5_603, %c1_604, %c0_605] : memref<8x10x10xf32, #tpu.memory_space<vmem>>, vector<1x8x8xf32>
    %686 = vector.shape_cast %685 : vector<1x8x8xf32> to vector<8x8xf32>
    %c48 = arith.constant 48 : index
    %c0_606 = arith.constant 0 : index
    %c0_607 = arith.constant 0 : index
    %c0_608 = arith.constant 0 : index
    %687 = vector.load %arg4[%c48, %c0_606, %c0_607, %c0_608] : memref<72x8x8x8xf32, #tpu.memory_space<vmem>>, vector<1x8x8x8xf32>
    %688 = vector.shape_cast %687 : vector<1x8x8x8xf32> to vector<8x8x8xf32>
    %689 = vector.shape_cast %686 : vector<8x8xf32> to vector<1x8x8xf32>
    %690 = vector.broadcast %689 : vector<1x8x8xf32> to vector<8x8x8xf32>
    %691 = arith.mulf %688, %690 : vector<8x8x8xf32>
    %692 = arith.addf %684, %691 : vector<8x8x8xf32>
    %c5_609 = arith.constant 5 : index
    %c1_610 = arith.constant 1 : index
    %c1_611 = arith.constant 1 : index
    %693 = vector.load %arg7[%c5_609, %c1_610, %c1_611] : memref<8x10x10xf32, #tpu.memory_space<vmem>>, vector<1x8x8xf32>
    %694 = vector.shape_cast %693 : vector<1x8x8xf32> to vector<8x8xf32>
    %c49 = arith.constant 49 : index
    %c0_612 = arith.constant 0 : index
    %c0_613 = arith.constant 0 : index
    %c0_614 = arith.constant 0 : index
    %695 = vector.load %arg4[%c49, %c0_612, %c0_613, %c0_614] : memref<72x8x8x8xf32, #tpu.memory_space<vmem>>, vector<1x8x8x8xf32>
    %696 = vector.shape_cast %695 : vector<1x8x8x8xf32> to vector<8x8x8xf32>
    %697 = vector.shape_cast %694 : vector<8x8xf32> to vector<1x8x8xf32>
    %698 = vector.broadcast %697 : vector<1x8x8xf32> to vector<8x8x8xf32>
    %699 = arith.mulf %696, %698 : vector<8x8x8xf32>
    %700 = arith.addf %692, %699 : vector<8x8x8xf32>
    %c5_615 = arith.constant 5 : index
    %c1_616 = arith.constant 1 : index
    %c2_617 = arith.constant 2 : index
    %701 = vector.load %arg7[%c5_615, %c1_616, %c2_617] : memref<8x10x10xf32, #tpu.memory_space<vmem>>, vector<1x8x8xf32>
    %702 = vector.shape_cast %701 : vector<1x8x8xf32> to vector<8x8xf32>
    %c50 = arith.constant 50 : index
    %c0_618 = arith.constant 0 : index
    %c0_619 = arith.constant 0 : index
    %c0_620 = arith.constant 0 : index
    %703 = vector.load %arg4[%c50, %c0_618, %c0_619, %c0_620] : memref<72x8x8x8xf32, #tpu.memory_space<vmem>>, vector<1x8x8x8xf32>
    %704 = vector.shape_cast %703 : vector<1x8x8x8xf32> to vector<8x8x8xf32>
    %705 = vector.shape_cast %702 : vector<8x8xf32> to vector<1x8x8xf32>
    %706 = vector.broadcast %705 : vector<1x8x8xf32> to vector<8x8x8xf32>
    %707 = arith.mulf %704, %706 : vector<8x8x8xf32>
    %708 = arith.addf %700, %707 : vector<8x8x8xf32>
    %c5_621 = arith.constant 5 : index
    %c2_622 = arith.constant 2 : index
    %c0_623 = arith.constant 0 : index
    %709 = vector.load %arg7[%c5_621, %c2_622, %c0_623] : memref<8x10x10xf32, #tpu.memory_space<vmem>>, vector<1x8x8xf32>
    %710 = vector.shape_cast %709 : vector<1x8x8xf32> to vector<8x8xf32>
    %c51 = arith.constant 51 : index
    %c0_624 = arith.constant 0 : index
    %c0_625 = arith.constant 0 : index
    %c0_626 = arith.constant 0 : index
    %711 = vector.load %arg4[%c51, %c0_624, %c0_625, %c0_626] : memref<72x8x8x8xf32, #tpu.memory_space<vmem>>, vector<1x8x8x8xf32>
    %712 = vector.shape_cast %711 : vector<1x8x8x8xf32> to vector<8x8x8xf32>
    %713 = vector.shape_cast %710 : vector<8x8xf32> to vector<1x8x8xf32>
    %714 = vector.broadcast %713 : vector<1x8x8xf32> to vector<8x8x8xf32>
    %715 = arith.mulf %712, %714 : vector<8x8x8xf32>
    %716 = arith.addf %708, %715 : vector<8x8x8xf32>
    %c5_627 = arith.constant 5 : index
    %c2_628 = arith.constant 2 : index
    %c1_629 = arith.constant 1 : index
    %717 = vector.load %arg7[%c5_627, %c2_628, %c1_629] : memref<8x10x10xf32, #tpu.memory_space<vmem>>, vector<1x8x8xf32>
    %718 = vector.shape_cast %717 : vector<1x8x8xf32> to vector<8x8xf32>
    %c52 = arith.constant 52 : index
    %c0_630 = arith.constant 0 : index
    %c0_631 = arith.constant 0 : index
    %c0_632 = arith.constant 0 : index
    %719 = vector.load %arg4[%c52, %c0_630, %c0_631, %c0_632] : memref<72x8x8x8xf32, #tpu.memory_space<vmem>>, vector<1x8x8x8xf32>
    %720 = vector.shape_cast %719 : vector<1x8x8x8xf32> to vector<8x8x8xf32>
    %721 = vector.shape_cast %718 : vector<8x8xf32> to vector<1x8x8xf32>
    %722 = vector.broadcast %721 : vector<1x8x8xf32> to vector<8x8x8xf32>
    %723 = arith.mulf %720, %722 : vector<8x8x8xf32>
    %724 = arith.addf %716, %723 : vector<8x8x8xf32>
    %c5_633 = arith.constant 5 : index
    %c2_634 = arith.constant 2 : index
    %c2_635 = arith.constant 2 : index
    %725 = vector.load %arg7[%c5_633, %c2_634, %c2_635] : memref<8x10x10xf32, #tpu.memory_space<vmem>>, vector<1x8x8xf32>
    %726 = vector.shape_cast %725 : vector<1x8x8xf32> to vector<8x8xf32>
    %c53 = arith.constant 53 : index
    %c0_636 = arith.constant 0 : index
    %c0_637 = arith.constant 0 : index
    %c0_638 = arith.constant 0 : index
    %727 = vector.load %arg4[%c53, %c0_636, %c0_637, %c0_638] : memref<72x8x8x8xf32, #tpu.memory_space<vmem>>, vector<1x8x8x8xf32>
    %728 = vector.shape_cast %727 : vector<1x8x8x8xf32> to vector<8x8x8xf32>
    %729 = vector.shape_cast %726 : vector<8x8xf32> to vector<1x8x8xf32>
    %730 = vector.broadcast %729 : vector<1x8x8xf32> to vector<8x8x8xf32>
    %731 = arith.mulf %728, %730 : vector<8x8x8xf32>
    %732 = arith.addf %724, %731 : vector<8x8x8xf32>
    %c6_639 = arith.constant 6 : index
    %c0_640 = arith.constant 0 : index
    %c0_641 = arith.constant 0 : index
    %733 = vector.load %arg7[%c6_639, %c0_640, %c0_641] : memref<8x10x10xf32, #tpu.memory_space<vmem>>, vector<1x8x8xf32>
    %734 = vector.shape_cast %733 : vector<1x8x8xf32> to vector<8x8xf32>
    %c54 = arith.constant 54 : index
    %c0_642 = arith.constant 0 : index
    %c0_643 = arith.constant 0 : index
    %c0_644 = arith.constant 0 : index
    %735 = vector.load %arg4[%c54, %c0_642, %c0_643, %c0_644] : memref<72x8x8x8xf32, #tpu.memory_space<vmem>>, vector<1x8x8x8xf32>
    %736 = vector.shape_cast %735 : vector<1x8x8x8xf32> to vector<8x8x8xf32>
    %737 = vector.shape_cast %734 : vector<8x8xf32> to vector<1x8x8xf32>
    %738 = vector.broadcast %737 : vector<1x8x8xf32> to vector<8x8x8xf32>
    %739 = arith.mulf %736, %738 : vector<8x8x8xf32>
    %740 = arith.addf %732, %739 : vector<8x8x8xf32>
    %c6_645 = arith.constant 6 : index
    %c0_646 = arith.constant 0 : index
    %c1_647 = arith.constant 1 : index
    %741 = vector.load %arg7[%c6_645, %c0_646, %c1_647] : memref<8x10x10xf32, #tpu.memory_space<vmem>>, vector<1x8x8xf32>
    %742 = vector.shape_cast %741 : vector<1x8x8xf32> to vector<8x8xf32>
    %c55 = arith.constant 55 : index
    %c0_648 = arith.constant 0 : index
    %c0_649 = arith.constant 0 : index
    %c0_650 = arith.constant 0 : index
    %743 = vector.load %arg4[%c55, %c0_648, %c0_649, %c0_650] : memref<72x8x8x8xf32, #tpu.memory_space<vmem>>, vector<1x8x8x8xf32>
    %744 = vector.shape_cast %743 : vector<1x8x8x8xf32> to vector<8x8x8xf32>
    %745 = vector.shape_cast %742 : vector<8x8xf32> to vector<1x8x8xf32>
    %746 = vector.broadcast %745 : vector<1x8x8xf32> to vector<8x8x8xf32>
    %747 = arith.mulf %744, %746 : vector<8x8x8xf32>
    %748 = arith.addf %740, %747 : vector<8x8x8xf32>
    %c6_651 = arith.constant 6 : index
    %c0_652 = arith.constant 0 : index
    %c2_653 = arith.constant 2 : index
    %749 = vector.load %arg7[%c6_651, %c0_652, %c2_653] : memref<8x10x10xf32, #tpu.memory_space<vmem>>, vector<1x8x8xf32>
    %750 = vector.shape_cast %749 : vector<1x8x8xf32> to vector<8x8xf32>
    %c56 = arith.constant 56 : index
    %c0_654 = arith.constant 0 : index
    %c0_655 = arith.constant 0 : index
    %c0_656 = arith.constant 0 : index
    %751 = vector.load %arg4[%c56, %c0_654, %c0_655, %c0_656] : memref<72x8x8x8xf32, #tpu.memory_space<vmem>>, vector<1x8x8x8xf32>
    %752 = vector.shape_cast %751 : vector<1x8x8x8xf32> to vector<8x8x8xf32>
    %753 = vector.shape_cast %750 : vector<8x8xf32> to vector<1x8x8xf32>
    %754 = vector.broadcast %753 : vector<1x8x8xf32> to vector<8x8x8xf32>
    %755 = arith.mulf %752, %754 : vector<8x8x8xf32>
    %756 = arith.addf %748, %755 : vector<8x8x8xf32>
    %c6_657 = arith.constant 6 : index
    %c1_658 = arith.constant 1 : index
    %c0_659 = arith.constant 0 : index
    %757 = vector.load %arg7[%c6_657, %c1_658, %c0_659] : memref<8x10x10xf32, #tpu.memory_space<vmem>>, vector<1x8x8xf32>
    %758 = vector.shape_cast %757 : vector<1x8x8xf32> to vector<8x8xf32>
    %c57 = arith.constant 57 : index
    %c0_660 = arith.constant 0 : index
    %c0_661 = arith.constant 0 : index
    %c0_662 = arith.constant 0 : index
    %759 = vector.load %arg4[%c57, %c0_660, %c0_661, %c0_662] : memref<72x8x8x8xf32, #tpu.memory_space<vmem>>, vector<1x8x8x8xf32>
    %760 = vector.shape_cast %759 : vector<1x8x8x8xf32> to vector<8x8x8xf32>
    %761 = vector.shape_cast %758 : vector<8x8xf32> to vector<1x8x8xf32>
    %762 = vector.broadcast %761 : vector<1x8x8xf32> to vector<8x8x8xf32>
    %763 = arith.mulf %760, %762 : vector<8x8x8xf32>
    %764 = arith.addf %756, %763 : vector<8x8x8xf32>
    %c6_663 = arith.constant 6 : index
    %c1_664 = arith.constant 1 : index
    %c1_665 = arith.constant 1 : index
    %765 = vector.load %arg7[%c6_663, %c1_664, %c1_665] : memref<8x10x10xf32, #tpu.memory_space<vmem>>, vector<1x8x8xf32>
    %766 = vector.shape_cast %765 : vector<1x8x8xf32> to vector<8x8xf32>
    %c58 = arith.constant 58 : index
    %c0_666 = arith.constant 0 : index
    %c0_667 = arith.constant 0 : index
    %c0_668 = arith.constant 0 : index
    %767 = vector.load %arg4[%c58, %c0_666, %c0_667, %c0_668] : memref<72x8x8x8xf32, #tpu.memory_space<vmem>>, vector<1x8x8x8xf32>
    %768 = vector.shape_cast %767 : vector<1x8x8x8xf32> to vector<8x8x8xf32>
    %769 = vector.shape_cast %766 : vector<8x8xf32> to vector<1x8x8xf32>
    %770 = vector.broadcast %769 : vector<1x8x8xf32> to vector<8x8x8xf32>
    %771 = arith.mulf %768, %770 : vector<8x8x8xf32>
    %772 = arith.addf %764, %771 : vector<8x8x8xf32>
    %c6_669 = arith.constant 6 : index
    %c1_670 = arith.constant 1 : index
    %c2_671 = arith.constant 2 : index
    %773 = vector.load %arg7[%c6_669, %c1_670, %c2_671] : memref<8x10x10xf32, #tpu.memory_space<vmem>>, vector<1x8x8xf32>
    %774 = vector.shape_cast %773 : vector<1x8x8xf32> to vector<8x8xf32>
    %c59 = arith.constant 59 : index
    %c0_672 = arith.constant 0 : index
    %c0_673 = arith.constant 0 : index
    %c0_674 = arith.constant 0 : index
    %775 = vector.load %arg4[%c59, %c0_672, %c0_673, %c0_674] : memref<72x8x8x8xf32, #tpu.memory_space<vmem>>, vector<1x8x8x8xf32>
    %776 = vector.shape_cast %775 : vector<1x8x8x8xf32> to vector<8x8x8xf32>
    %777 = vector.shape_cast %774 : vector<8x8xf32> to vector<1x8x8xf32>
    %778 = vector.broadcast %777 : vector<1x8x8xf32> to vector<8x8x8xf32>
    %779 = arith.mulf %776, %778 : vector<8x8x8xf32>
    %780 = arith.addf %772, %779 : vector<8x8x8xf32>
    %c6_675 = arith.constant 6 : index
    %c2_676 = arith.constant 2 : index
    %c0_677 = arith.constant 0 : index
    %781 = vector.load %arg7[%c6_675, %c2_676, %c0_677] : memref<8x10x10xf32, #tpu.memory_space<vmem>>, vector<1x8x8xf32>
    %782 = vector.shape_cast %781 : vector<1x8x8xf32> to vector<8x8xf32>
    %c60 = arith.constant 60 : index
    %c0_678 = arith.constant 0 : index
    %c0_679 = arith.constant 0 : index
    %c0_680 = arith.constant 0 : index
    %783 = vector.load %arg4[%c60, %c0_678, %c0_679, %c0_680] : memref<72x8x8x8xf32, #tpu.memory_space<vmem>>, vector<1x8x8x8xf32>
    %784 = vector.shape_cast %783 : vector<1x8x8x8xf32> to vector<8x8x8xf32>
    %785 = vector.shape_cast %782 : vector<8x8xf32> to vector<1x8x8xf32>
    %786 = vector.broadcast %785 : vector<1x8x8xf32> to vector<8x8x8xf32>
    %787 = arith.mulf %784, %786 : vector<8x8x8xf32>
    %788 = arith.addf %780, %787 : vector<8x8x8xf32>
    %c6_681 = arith.constant 6 : index
    %c2_682 = arith.constant 2 : index
    %c1_683 = arith.constant 1 : index
    %789 = vector.load %arg7[%c6_681, %c2_682, %c1_683] : memref<8x10x10xf32, #tpu.memory_space<vmem>>, vector<1x8x8xf32>
    %790 = vector.shape_cast %789 : vector<1x8x8xf32> to vector<8x8xf32>
    %c61 = arith.constant 61 : index
    %c0_684 = arith.constant 0 : index
    %c0_685 = arith.constant 0 : index
    %c0_686 = arith.constant 0 : index
    %791 = vector.load %arg4[%c61, %c0_684, %c0_685, %c0_686] : memref<72x8x8x8xf32, #tpu.memory_space<vmem>>, vector<1x8x8x8xf32>
    %792 = vector.shape_cast %791 : vector<1x8x8x8xf32> to vector<8x8x8xf32>
    %793 = vector.shape_cast %790 : vector<8x8xf32> to vector<1x8x8xf32>
    %794 = vector.broadcast %793 : vector<1x8x8xf32> to vector<8x8x8xf32>
    %795 = arith.mulf %792, %794 : vector<8x8x8xf32>
    %796 = arith.addf %788, %795 : vector<8x8x8xf32>
    %c6_687 = arith.constant 6 : index
    %c2_688 = arith.constant 2 : index
    %c2_689 = arith.constant 2 : index
    %797 = vector.load %arg7[%c6_687, %c2_688, %c2_689] : memref<8x10x10xf32, #tpu.memory_space<vmem>>, vector<1x8x8xf32>
    %798 = vector.shape_cast %797 : vector<1x8x8xf32> to vector<8x8xf32>
    %c62 = arith.constant 62 : index
    %c0_690 = arith.constant 0 : index
    %c0_691 = arith.constant 0 : index
    %c0_692 = arith.constant 0 : index
    %799 = vector.load %arg4[%c62, %c0_690, %c0_691, %c0_692] : memref<72x8x8x8xf32, #tpu.memory_space<vmem>>, vector<1x8x8x8xf32>
    %800 = vector.shape_cast %799 : vector<1x8x8x8xf32> to vector<8x8x8xf32>
    %801 = vector.shape_cast %798 : vector<8x8xf32> to vector<1x8x8xf32>
    %802 = vector.broadcast %801 : vector<1x8x8xf32> to vector<8x8x8xf32>
    %803 = arith.mulf %800, %802 : vector<8x8x8xf32>
    %804 = arith.addf %796, %803 : vector<8x8x8xf32>
    %c7_693 = arith.constant 7 : index
    %c0_694 = arith.constant 0 : index
    %c0_695 = arith.constant 0 : index
    %805 = vector.load %arg7[%c7_693, %c0_694, %c0_695] : memref<8x10x10xf32, #tpu.memory_space<vmem>>, vector<1x8x8xf32>
    %806 = vector.shape_cast %805 : vector<1x8x8xf32> to vector<8x8xf32>
    %c63 = arith.constant 63 : index
    %c0_696 = arith.constant 0 : index
    %c0_697 = arith.constant 0 : index
    %c0_698 = arith.constant 0 : index
    %807 = vector.load %arg4[%c63, %c0_696, %c0_697, %c0_698] : memref<72x8x8x8xf32, #tpu.memory_space<vmem>>, vector<1x8x8x8xf32>
    %808 = vector.shape_cast %807 : vector<1x8x8x8xf32> to vector<8x8x8xf32>
    %809 = vector.shape_cast %806 : vector<8x8xf32> to vector<1x8x8xf32>
    %810 = vector.broadcast %809 : vector<1x8x8xf32> to vector<8x8x8xf32>
    %811 = arith.mulf %808, %810 : vector<8x8x8xf32>
    %812 = arith.addf %804, %811 : vector<8x8x8xf32>
    %c7_699 = arith.constant 7 : index
    %c0_700 = arith.constant 0 : index
    %c1_701 = arith.constant 1 : index
    %813 = vector.load %arg7[%c7_699, %c0_700, %c1_701] : memref<8x10x10xf32, #tpu.memory_space<vmem>>, vector<1x8x8xf32>
    %814 = vector.shape_cast %813 : vector<1x8x8xf32> to vector<8x8xf32>
    %c64 = arith.constant 64 : index
    %c0_702 = arith.constant 0 : index
    %c0_703 = arith.constant 0 : index
    %c0_704 = arith.constant 0 : index
    %815 = vector.load %arg4[%c64, %c0_702, %c0_703, %c0_704] : memref<72x8x8x8xf32, #tpu.memory_space<vmem>>, vector<1x8x8x8xf32>
    %816 = vector.shape_cast %815 : vector<1x8x8x8xf32> to vector<8x8x8xf32>
    %817 = vector.shape_cast %814 : vector<8x8xf32> to vector<1x8x8xf32>
    %818 = vector.broadcast %817 : vector<1x8x8xf32> to vector<8x8x8xf32>
    %819 = arith.mulf %816, %818 : vector<8x8x8xf32>
    %820 = arith.addf %812, %819 : vector<8x8x8xf32>
    %c7_705 = arith.constant 7 : index
    %c0_706 = arith.constant 0 : index
    %c2_707 = arith.constant 2 : index
    %821 = vector.load %arg7[%c7_705, %c0_706, %c2_707] : memref<8x10x10xf32, #tpu.memory_space<vmem>>, vector<1x8x8xf32>
    %822 = vector.shape_cast %821 : vector<1x8x8xf32> to vector<8x8xf32>
    %c65 = arith.constant 65 : index
    %c0_708 = arith.constant 0 : index
    %c0_709 = arith.constant 0 : index
    %c0_710 = arith.constant 0 : index
    %823 = vector.load %arg4[%c65, %c0_708, %c0_709, %c0_710] : memref<72x8x8x8xf32, #tpu.memory_space<vmem>>, vector<1x8x8x8xf32>
    %824 = vector.shape_cast %823 : vector<1x8x8x8xf32> to vector<8x8x8xf32>
    %825 = vector.shape_cast %822 : vector<8x8xf32> to vector<1x8x8xf32>
    %826 = vector.broadcast %825 : vector<1x8x8xf32> to vector<8x8x8xf32>
    %827 = arith.mulf %824, %826 : vector<8x8x8xf32>
    %828 = arith.addf %820, %827 : vector<8x8x8xf32>
    %c7_711 = arith.constant 7 : index
    %c1_712 = arith.constant 1 : index
    %c0_713 = arith.constant 0 : index
    %829 = vector.load %arg7[%c7_711, %c1_712, %c0_713] : memref<8x10x10xf32, #tpu.memory_space<vmem>>, vector<1x8x8xf32>
    %830 = vector.shape_cast %829 : vector<1x8x8xf32> to vector<8x8xf32>
    %c66 = arith.constant 66 : index
    %c0_714 = arith.constant 0 : index
    %c0_715 = arith.constant 0 : index
    %c0_716 = arith.constant 0 : index
    %831 = vector.load %arg4[%c66, %c0_714, %c0_715, %c0_716] : memref<72x8x8x8xf32, #tpu.memory_space<vmem>>, vector<1x8x8x8xf32>
    %832 = vector.shape_cast %831 : vector<1x8x8x8xf32> to vector<8x8x8xf32>
    %833 = vector.shape_cast %830 : vector<8x8xf32> to vector<1x8x8xf32>
    %834 = vector.broadcast %833 : vector<1x8x8xf32> to vector<8x8x8xf32>
    %835 = arith.mulf %832, %834 : vector<8x8x8xf32>
    %836 = arith.addf %828, %835 : vector<8x8x8xf32>
    %c7_717 = arith.constant 7 : index
    %c1_718 = arith.constant 1 : index
    %c1_719 = arith.constant 1 : index
    %837 = vector.load %arg7[%c7_717, %c1_718, %c1_719] : memref<8x10x10xf32, #tpu.memory_space<vmem>>, vector<1x8x8xf32>
    %838 = vector.shape_cast %837 : vector<1x8x8xf32> to vector<8x8xf32>
    %c67 = arith.constant 67 : index
    %c0_720 = arith.constant 0 : index
    %c0_721 = arith.constant 0 : index
    %c0_722 = arith.constant 0 : index
    %839 = vector.load %arg4[%c67, %c0_720, %c0_721, %c0_722] : memref<72x8x8x8xf32, #tpu.memory_space<vmem>>, vector<1x8x8x8xf32>
    %840 = vector.shape_cast %839 : vector<1x8x8x8xf32> to vector<8x8x8xf32>
    %841 = vector.shape_cast %838 : vector<8x8xf32> to vector<1x8x8xf32>
    %842 = vector.broadcast %841 : vector<1x8x8xf32> to vector<8x8x8xf32>
    %843 = arith.mulf %840, %842 : vector<8x8x8xf32>
    %844 = arith.addf %836, %843 : vector<8x8x8xf32>
    %c7_723 = arith.constant 7 : index
    %c1_724 = arith.constant 1 : index
    %c2_725 = arith.constant 2 : index
    %845 = vector.load %arg7[%c7_723, %c1_724, %c2_725] : memref<8x10x10xf32, #tpu.memory_space<vmem>>, vector<1x8x8xf32>
    %846 = vector.shape_cast %845 : vector<1x8x8xf32> to vector<8x8xf32>
    %c68 = arith.constant 68 : index
    %c0_726 = arith.constant 0 : index
    %c0_727 = arith.constant 0 : index
    %c0_728 = arith.constant 0 : index
    %847 = vector.load %arg4[%c68, %c0_726, %c0_727, %c0_728] : memref<72x8x8x8xf32, #tpu.memory_space<vmem>>, vector<1x8x8x8xf32>
    %848 = vector.shape_cast %847 : vector<1x8x8x8xf32> to vector<8x8x8xf32>
    %849 = vector.shape_cast %846 : vector<8x8xf32> to vector<1x8x8xf32>
    %850 = vector.broadcast %849 : vector<1x8x8xf32> to vector<8x8x8xf32>
    %851 = arith.mulf %848, %850 : vector<8x8x8xf32>
    %852 = arith.addf %844, %851 : vector<8x8x8xf32>
    %c7_729 = arith.constant 7 : index
    %c2_730 = arith.constant 2 : index
    %c0_731 = arith.constant 0 : index
    %853 = vector.load %arg7[%c7_729, %c2_730, %c0_731] : memref<8x10x10xf32, #tpu.memory_space<vmem>>, vector<1x8x8xf32>
    %854 = vector.shape_cast %853 : vector<1x8x8xf32> to vector<8x8xf32>
    %c69 = arith.constant 69 : index
    %c0_732 = arith.constant 0 : index
    %c0_733 = arith.constant 0 : index
    %c0_734 = arith.constant 0 : index
    %855 = vector.load %arg4[%c69, %c0_732, %c0_733, %c0_734] : memref<72x8x8x8xf32, #tpu.memory_space<vmem>>, vector<1x8x8x8xf32>
    %856 = vector.shape_cast %855 : vector<1x8x8x8xf32> to vector<8x8x8xf32>
    %857 = vector.shape_cast %854 : vector<8x8xf32> to vector<1x8x8xf32>
    %858 = vector.broadcast %857 : vector<1x8x8xf32> to vector<8x8x8xf32>
    %859 = arith.mulf %856, %858 : vector<8x8x8xf32>
    %860 = arith.addf %852, %859 : vector<8x8x8xf32>
    %c7_735 = arith.constant 7 : index
    %c2_736 = arith.constant 2 : index
    %c1_737 = arith.constant 1 : index
    %861 = vector.load %arg7[%c7_735, %c2_736, %c1_737] : memref<8x10x10xf32, #tpu.memory_space<vmem>>, vector<1x8x8xf32>
    %862 = vector.shape_cast %861 : vector<1x8x8xf32> to vector<8x8xf32>
    %c70 = arith.constant 70 : index
    %c0_738 = arith.constant 0 : index
    %c0_739 = arith.constant 0 : index
    %c0_740 = arith.constant 0 : index
    %863 = vector.load %arg4[%c70, %c0_738, %c0_739, %c0_740] : memref<72x8x8x8xf32, #tpu.memory_space<vmem>>, vector<1x8x8x8xf32>
    %864 = vector.shape_cast %863 : vector<1x8x8x8xf32> to vector<8x8x8xf32>
    %865 = vector.shape_cast %862 : vector<8x8xf32> to vector<1x8x8xf32>
    %866 = vector.broadcast %865 : vector<1x8x8xf32> to vector<8x8x8xf32>
    %867 = arith.mulf %864, %866 : vector<8x8x8xf32>
    %868 = arith.addf %860, %867 : vector<8x8x8xf32>
    %c7_741 = arith.constant 7 : index
    %c2_742 = arith.constant 2 : index
    %c2_743 = arith.constant 2 : index
    %869 = vector.load %arg7[%c7_741, %c2_742, %c2_743] : memref<8x10x10xf32, #tpu.memory_space<vmem>>, vector<1x8x8xf32>
    %870 = vector.shape_cast %869 : vector<1x8x8xf32> to vector<8x8xf32>
    %c71 = arith.constant 71 : index
    %c0_744 = arith.constant 0 : index
    %c0_745 = arith.constant 0 : index
    %c0_746 = arith.constant 0 : index
    %871 = vector.load %arg4[%c71, %c0_744, %c0_745, %c0_746] : memref<72x8x8x8xf32, #tpu.memory_space<vmem>>, vector<1x8x8x8xf32>
    %872 = vector.shape_cast %871 : vector<1x8x8x8xf32> to vector<8x8x8xf32>
    %873 = vector.shape_cast %870 : vector<8x8xf32> to vector<1x8x8xf32>
    %874 = vector.broadcast %873 : vector<1x8x8xf32> to vector<8x8x8xf32>
    %875 = arith.mulf %872, %874 : vector<8x8x8xf32>
    %876 = arith.addf %868, %875 : vector<8x8x8xf32>
    %cst_747 = arith.constant 0.000000e+00 : f32
    %877 = vector.broadcast %cst_747 : f32 to vector<8x8x8xf32>
    %878 = arith.maximumf %876, %877 : vector<8x8x8xf32>
    %c0_748 = arith.constant 0 : index
    %c0_749 = arith.constant 0 : index
    %c0_750 = arith.constant 0 : index
    %c0_751 = arith.constant 0 : index
    %879 = vector.load %arg6[%c0_748, %c0_749, %c0_750, %c0_751] : memref<1x8x8x8xf32, #tpu.memory_space<vmem>>, vector<1x8x8x8xf32>
    %880 = vector.shape_cast %879 : vector<1x8x8x8xf32> to vector<8x8x8xf32>
    %881 = vector.shape_cast %878 : vector<8x8x8xf32> to vector<1x8x8x8xf32>
    tpu.vector_store %arg6[%c0_748, %c0_749, %c0_750, %c0_751], %881 {strides = array<i32>} : memref<1x8x8x8xf32, #tpu.memory_space<vmem>>, vector<1x8x8x8xf32>,
    return
  }
  func.func @transform_0(%arg0: i32) -> (i32, i32, i32, i32) {
    %c0_i32 = arith.constant 0 : i32
    %c0_i32_0 = arith.constant 0 : i32
    %c0_i32_1 = arith.constant 0 : i32
    %c0_i32_2 = arith.constant 0 : i32
    return %arg0, %c0_i32, %c0_i32_0, %c0_i32_1 : i32, i32, i32, i32
  }
  func.func @transform_1(%arg0: i32) -> (i32, i32, i32, i32) {
    %c0_i32 = arith.constant 0 : i32
    %c0_i32_0 = arith.constant 0 : i32
    %c0_i32_1 = arith.constant 0 : i32
    %c0_i32_2 = arith.constant 0 : i32
    %c0_i32_3 = arith.constant 0 : i32
    return %c0_i32, %c0_i32_0, %c0_i32_1, %c0_i32_2 : i32, i32, i32, i32
  }
  func.func @transform_2(%arg0: i32) -> (i32, i32, i32) {
    %c0_i32 = arith.constant 0 : i32
    %c0_i32_0 = arith.constant 0 : i32
    %c0_i32_1 = arith.constant 0 : i32
    %c0_i32_2 = arith.constant 0 : i32
    return %c0_i32, %c0_i32_0, %c0_i32_1 : i32, i32, i32
  }
  func.func @transform_3(%arg0: i32) -> (i32, i32, i32, i32) {
    %c0_i32 = arith.constant 0 : i32
    %c0_i32_0 = arith.constant 0 : i32
    %c0_i32_1 = arith.constant 0 : i32
    %c0_i32_2 = arith.constant 0 : i32
    %c0_i32_3 = arith.constant 0 : i32
    return %c0_i32, %c0_i32_0, %c0_i32_1, %c0_i32_2 : i32, i32, i32, i32
  }
  func.func @transform_4(%arg0: i32) -> (i32, i32, i32) {
    %c0_i32 = arith.constant 0 : i32
    %c0_i32_0 = arith.constant 0 : i32
    %c0_i32_1 = arith.constant 0 : i32
    %c0_i32_2 = arith.constant 0 : i32
    return %c0_i32, %c0_i32_0, %c0_i32_1 : i32, i32, i32
  }
  func.func @transform_5(%arg0: i32) -> (i32, i32, i32, i32) {
    %c0_i32 = arith.constant 0 : i32
    %c0_i32_0 = arith.constant 0 : i32
    %c0_i32_1 = arith.constant 0 : i32
    %c0_i32_2 = arith.constant 0 : i32
    return %arg0, %c0_i32, %c0_i32_0, %c0_i32_1 : i32, i32, i32, i32
  }
}

</mosaic_0001>

<llo_original>
// kernel: down_forward.1
$region0: #{down_forward.1}
  #allocation0 [shape = 'u32[]', space=smem, size = 0x4, offset = 0x4, fixed_abs, tag = 'smem constant byte address 0x4 - core index']
  #allocation1 [shape = 'u32[144,128]{1,0:T(1,128)}', space=vmem, size = 0x12000, scoped, tag = 'internal scratch']
  #allocation2 [shape = 'f32[8,10,10]{2,1,0:T(8,128)}', space=vmem, size = 0x10000, scoped, tag = 'scratch operand']
  %s0 = inlined_call_operand.vmem [shape: f32[2,4,10,10], index: 0, kind: input, shape index: {}]
  %s1 = inlined_call_operand.vmem [shape: f32[36,8,8,8], index: 1, kind: input, shape index: {}]
  %s2 = inlined_call_operand.vmem [shape: f32[8,8,8], index: 2, kind: input, shape index: {}]
  %s3 = inlined_call_operand.vmem [shape: f32[72,8,8,8], index: 3, kind: input, shape index: {}]
  %s4 = inlined_call_operand.vmem [shape: f32[8,8,8], index: 4, kind: input, shape index: {}]
  %s5 = inlined_call_operand.hbm [shape: f32[2,8,8,8], index: 5, kind: output, shape index: {}]
  %s6 = sld [smem:[#allocation0]]
  $region53: #{down_forward.1} parent=0
    _
  %s8 = ssub.s32 1, %s6
  %s9 = scalar_select 0, %s8, %s6
  $region1: #{down_forward.1} parent=0
    #allocation3 [shape = 'u8[65536]{0}', space=vmem, size = 0x10000, scoped, tag = 'output window, operand 0']
    #allocation4 [shape = 's32[2]{0}', space=sflag, size = 0x8, scoped, tag = 'scoped memory for down_forward.1']
    %10 = vsyncpa [#allocation4], 0
    %s11 = scalar_lea.sflag [#allocation4], 1
    %12 = vsyncpa %s11, 0
    loop: start=0, step=1, limit=4
    $region2: #{down_forward.1} parent=1 // loop_pre_header
      _
    $region3: #{down_forward.1} parent=1 // loop_header
      %s14 = sphi 0, %s18
      %p15 = scmp.ge.s32.totalorder %s14, 4
      %s24 = sphi 0, %s26
      %s27 = sphi 0, %s24
      %s28 = sphi 0, %s27
      %s44 = sphi 0, %s28
      %s48 = sphi 0, %s48
      %s50 = sphi 0, %s48
      %s51 = sphi 0, %s50
      %s65 = sphi 0, %s51
      %s69 = sphi 0, %s69
      %s71 = sphi 0, %s69
      %s72 = sphi 0, %s71
      %s86 = sphi 0, %s72
      %s90 = sphi 0, %s90
      %s92 = sphi 0, %s90
      %s93 = sphi 0, %s92
      %s107 = sphi 0, %s93
      %s111 = sphi 0, %s111
      %s113 = sphi 0, %s111
      %s114 = sphi 0, %s113
      %s128 = sphi 0, %s114
      %s134 = sphi 0, %s136
      %s137 = sphi 0, %s134
      %s138 = sphi 0, %s137
      %s154 = sphi 0, %s138
    $region4: #{down_forward.1} parent=1 // loop_header_branch
      %17 = sbr.rel (%p15) target = $region8
    $region5: #{down_forward.1} parent=1 // loop_body
      %s19 = ssub.s32 %s14, 1
      %s20 = ssub.s32 %s14, 2
      %s21 = sadd.s32 %s14, 1
      %s22 = ssub.s32 %s14, %s21
      %p23 = scmp.eq.s32.totalorder %s22, 0
      %s25 = sadd.s32 %s24, 1
      %s26 = scalar_select %p23, %s24, %s25
      %p29 = pneg %p23
      %p30 = scmp.eq.s32.totalorder %s14, 1
      %p31 = por %p29, %p30
      %p32 = scmp.ne.s32.totalorder %s24, %s27
      %p33 = scmp.eq.s32.totalorder %s14, 0
      %p34 = por %p32, %p33
      %p35 = scmp.ne.s32.totalorder %s24, %s27
      %p36 = scmp.eq.s32.totalorder %s19, 1
      %p37 = por %p35, %p36
      %p38 = scmp.ne.s32.totalorder %s27, %s28
      %p39 = scmp.eq.s32.totalorder %s19, 0
      %p40 = por %p38, %p39
      %p41 = scmp.ne.s32.totalorder %s27, %s28
      %p42 = scmp.eq.s32.totalorder %s20, 1
      %p43 = por %p41, %p42
      %p45 = scmp.ne.s32.totalorder %s28, %s44
      %p46 = scmp.eq.s32.totalorder %s20, 0
      %p47 = por %p45, %p46
      %s49 = sadd.s32 %s48, 1
      %p52 = scmp.eq.s32.totalorder %s14, 1
      %p53 = scmp.ne.s32.totalorder %s48, %s50
      %p54 = scmp.eq.s32.totalorder %s14, 0
      %p55 = por %p53, %p54
      %p56 = scmp.ne.s32.totalorder %s48, %s50
      %p57 = scmp.eq.s32.totalorder %s19, 1
      %p58 = por %p56, %p57
      %p59 = scmp.ne.s32.totalorder %s50, %s51
      %p60 = scmp.eq.s32.totalorder %s19, 0
      %p61 = por %p59, %p60
      %p62 = scmp.ne.s32.totalorder %s50, %s51
      %p63 = scmp.eq.s32.totalorder %s20, 1
      %p64 = por %p62, %p63
      %p66 = scmp.ne.s32.totalorder %s51, %s65
      %p67 = scmp.eq.s32.totalorder %s20, 0
      %p68 = por %p66, %p67
      %s70 = sadd.s32 %s69, 1
      %p73 = scmp.eq.s32.totalorder %s14, 1
      %p74 = scmp.ne.s32.totalorder %s69, %s71
      %p75 = scmp.eq.s32.totalorder %s14, 0
      %p76 = por %p74, %p75
      %p77 = scmp.ne.s32.totalorder %s69, %s71
      %p78 = scmp.eq.s32.totalorder %s19, 1
      %p79 = por %p77, %p78
      %p80 = scmp.ne.s32.totalorder %s71, %s72
      %p81 = scmp.eq.s32.totalorder %s19, 0
      %p82 = por %p80, %p81
      %p83 = scmp.ne.s32.totalorder %s71, %s72
      %p84 = scmp.eq.s32.totalorder %s20, 1
      %p85 = por %p83, %p84
      %p87 = scmp.ne.s32.totalorder %s72, %s86
      %p88 = scmp.eq.s32.totalorder %s20, 0
      %p89 = por %p87, %p88
      %s91 = sadd.s32 %s90, 1
      %p94 = scmp.eq.s32.totalorder %s14, 1
      %p95 = scmp.ne.s32.totalorder %s90, %s92
      %p96 = scmp.eq.s32.totalorder %s14, 0
      %p97 = por %p95, %p96
      %p98 = scmp.ne.s32.totalorder %s90, %s92
      %p99 = scmp.eq.s32.totalorder %s19, 1
      %p100 = por %p98, %p99
      %p101 = scmp.ne.s32.totalorder %s92, %s93
      %p102 = scmp.eq.s32.totalorder %s19, 0
      %p103 = por %p101, %p102
      %p104 = scmp.ne.s32.totalorder %s92, %s93
      %p105 = scmp.eq.s32.totalorder %s20, 1
      %p106 = por %p104, %p105
      %p108 = scmp.ne.s32.totalorder %s93, %s107
      %p109 = scmp.eq.s32.totalorder %s20, 0
      %p110 = por %p108, %p109
      %s112 = sadd.s32 %s111, 1
      %p115 = scmp.eq.s32.totalorder %s14, 1
      %p116 = scmp.ne.s32.totalorder %s111, %s113
      %p117 = scmp.eq.s32.totalorder %s14, 0
      %p118 = por %p116, %p117
      %p119 = scmp.ne.s32.totalorder %s111, %s113
      %p120 = scmp.eq.s32.totalorder %s19, 1
      %p121 = por %p119, %p120
      %p122 = scmp.ne.s32.totalorder %s113, %s114
      %p123 = scmp.eq.s32.totalorder %s19, 0
      %p124 = por %p122, %p123
      %p125 = scmp.ne.s32.totalorder %s113, %s114
      %p126 = scmp.eq.s32.totalorder %s20, 1
      %p127 = por %p125, %p126
      %p129 = scmp.ne.s32.totalorder %s114, %s128
      %p130 = scmp.eq.s32.totalorder %s20, 0
      %p131 = por %p129, %p130
      %s132 = ssub.s32 %s14, %s21
      %p133 = scmp.eq.s32.totalorder %s132, 0
      %s135 = sadd.s32 %s134, 1
      %s136 = scalar_select %p133, %s134, %s135
      %p139 = pneg %p133
      %p140 = scmp.eq.s32.totalorder %s14, 1
      %p141 = por %p139, %p140
      %p142 = scmp.ne.s32.totalorder %s134, %s137
      %p143 = scmp.eq.s32.totalorder %s14, 0
      %p144 = por %p142, %p143
      %p145 = scmp.ne.s32.totalorder %s134, %s137
      %p146 = scmp.eq.s32.totalorder %s19, 1
      %p147 = por %p145, %p146
      %p148 = scmp.ne.s32.totalorder %s137, %s138
      %p149 = scmp.eq.s32.totalorder %s19, 0
      %p150 = por %p148, %p149
      %p151 = scmp.ne.s32.totalorder %s137, %s138
      %p152 = scmp.eq.s32.totalorder %s20, 1
      %p153 = por %p151, %p152
      %p155 = scmp.ne.s32.totalorder %s138, %s154
      %p156 = scmp.eq.s32.totalorder %s20, 0
      %p157 = por %p155, %p156
      %p158 = scmp.le.s32.totalorder 1, %s14
      %p159 = scmp.lt.s32.totalorder %s14, 3
      %p160 = pnand %p158, %p159
      %p161 = pneg %p160
      // Predicated region
      $region9: #{down_forward.1} parent=5 // pred_check
        _
      $region10: #{down_forward.1} parent=5 // pred_check_branch
        %163 = sbr.rel (%p160) target = $region12
      $region11: #{down_forward.1} parent=5 // pred_region
        %s164 = ssub.s32 %s14, 1
        // Predicated region
        $region13: #{down_forward.1} parent=11 // pred_check
          %p165 = pneg %p61
        $region14: #{down_forward.1} parent=11 // pred_check_branch
          %167 = sbr.rel (%p165) target = $region16
        $region15: #{down_forward.1} parent=11 // pred_region
          _
        $region16: #{down_forward.1} parent=11 // pred_fallthru
          _
        // Predicated region
        $region17: #{down_forward.1} parent=11 // pred_check
          %p168 = pneg %p82
        $region18: #{down_forward.1} parent=11 // pred_check_branch
          %170 = sbr.rel (%p168) target = $region20
        $region19: #{down_forward.1} parent=11 // pred_region
          _
        $region20: #{down_forward.1} parent=11 // pred_fallthru
          _
        // Predicated region
        $region21: #{down_forward.1} parent=11 // pred_check
          %p171 = pneg %p103
        $region22: #{down_forward.1} parent=11 // pred_check_branch
          %173 = sbr.rel (%p171) target = $region24
        $region23: #{down_forward.1} parent=11 // pred_region
          _
        $region24: #{down_forward.1} parent=11 // pred_fallthru
          _
        // Predicated region
        $region25: #{down_forward.1} parent=11 // pred_check
          %p174 = pneg %p124
        $region26: #{down_forward.1} parent=11 // pred_check_branch
          %176 = sbr.rel (%p174) target = $region28
        $region27: #{down_forward.1} parent=11 // pred_region
          _
        $region28: #{down_forward.1} parent=11 // pred_fallthru
          _
      $region12: #{down_forward.1} parent=5 // pred_fallthru
        _
      %p177 = scmp.lt.s32.totalorder %s14, 2
      // Predicated region
      $region29: #{down_forward.1} parent=5 // pred_check
        %p178 = pneg %p177
      $region30: #{down_forward.1} parent=5 // pred_check_branch
        %180 = sbr.rel (%p178) target = $region32
      $region31: #{down_forward.1} parent=5 // pred_region
        // Predicated region
        $region33: #{down_forward.1} parent=31 // pred_check
          %p181 = pneg %p34
        $region34: #{down_forward.1} parent=31 // pred_check_branch
          %183 = sbr.rel (%p181) target = $region36
        $region35: #{down_forward.1} parent=31 // pred_region
          %p184 = scmp.lt.s32.totalorder %s14, 1
          %s185 = scalar_select %p184, %s14, 1
          %s186 = smul.addr %s185, 8
          %s187 = smul.addr %s186, 8
          %s188 = scalar_lea.vmem %s0, %s187
        $region36: #{down_forward.1} parent=31 // pred_fallthru
          _
      $region32: #{down_forward.1} parent=5 // pred_fallthru
        _
      %p189 = scmp.le.s32.totalorder 1, %s14
      %p190 = scmp.lt.s32.totalorder %s14, 3
      %p191 = pnand %p189, %p190
      %p192 = pneg %p191
      // Predicated region
      $region37: #{down_forward.1} parent=5 // pred_check
        _
      $region38: #{down_forward.1} parent=5 // pred_check_branch
        %194 = sbr.rel (%p191) target = $region40
      $region39: #{down_forward.1} parent=5 // pred_region
        %s195 = ssub.s32 %s14, 1
        %p196 = scmp.lt.s32.totalorder %s19, 1
        %s197 = scalar_select %p196, %s19, 1
        %s198 = smul.addr %s197, 8
        %s199 = smul.addr %s198, 8
        %s200 = scalar_lea.vmem %s0, %s199
        %p201 = pneg %p40
        %p202 = pneg %p37
        %p203 = pneg %p61
        %p204 = pneg %p58
        %p205 = pneg %p82
        %p206 = pneg %p79
        %p207 = pneg %p103
        %p208 = pneg %p100
        %p209 = pneg %p124
        %p210 = pneg %p121
        %p211 = pneg %p150
        %p212 = pneg %p147
        %s213 = sand.u32 %s137, 1
        %s214 = scalar_lea.sflag [#allocation4], %s213
        %s215 = sand.u32 %s137, 1
        %s216 = smul.addr %s215, 64
        %s217 = scalar_lea.vmem [#allocation3], %s216
        %p218 = scmp.lt.s32.totalorder %s19, 1
        %s219 = scalar_select %p218, %s19, 1
        %s220 = smul.addr %s219, 8
        %s221 = smul.addr %s220, 8
        %s222 = scalar_lea.vmem %s0, %s221
        %v223 = vld [vmem:[%s2] sm:$0xff]
        %v224 = vld [vmem:[%s2 + $0x8] sm:$0xff]
        %v225 = vld [vmem:[%s2 + $0x10] sm:$0xff]
        %v226 = vld [vmem:[%s2 + $0x18] sm:$0xff]
        %v227 = vld [vmem:[%s2 + $0x20] sm:$0xff]
        %v228 = vld [vmem:[%s2 + $0x28] sm:$0xff]
        %v229 = vld [vmem:[%s2 + $0x30] sm:$0xff]
        %v230 = vld [vmem:[%s2 + $0x38] sm:$0xff]
        %v231 = vld [vmem:[%s222] sm:$0xff]
        %v232 = vld [vmem:[%s1] sm:$0xff]
        %v233 = vld [vmem:[%s1 + $0x8] sm:$0xff]
        %v234 = vld [vmem:[%s1 + $0x10] sm:$0xff]
        %v235 = vld [vmem:[%s1 + $0x18] sm:$0xff]
        %v236 = vld [vmem:[%s1 + $0x20] sm:$0xff]
        %v237 = vld [vmem:[%s1 + $0x28] sm:$0xff]
        %v238 = vld [vmem:[%s1 + $0x30] sm:$0xff]
        %v239 = vld [vmem:[%s1 + $0x38] sm:$0xff]
        %v240 = vmul.f32 %v232, %v231
        %v241 = vmul.f32 %v233, %v231
        %v242 = vmul.f32 %v234, %v231
        %v243 = vmul.f32 %v235, %v231
        %v244 = vmul.f32 %v236, %v231
        %v245 = vmul.f32 %v237, %v231
        %v246 = vmul.f32 %v238, %v231
        %v247 = vmul.f32 %v239, %v231
        %v248 = vadd.f32 %v223, %v240
        %v249 = vadd.f32 %v224, %v241
        %v250 = vadd.f32 %v225, %v242
        %v251 = vadd.f32 %v226, %v243
        %v252 = vadd.f32 %v227, %v244
        %v253 = vadd.f32 %v228, %v245
        %v254 = vadd.f32 %v229, %v246
        %v255 = vadd.f32 %v230, %v247
        %s256 = scalar_lea.vmem %s1, 64
        %v257 = vld [vmem:[%s256] sm:$0xff]
        %v258 = vld [vmem:[%s256 + $0x8] sm:$0xff]
        %v259 = vld [vmem:[%s256 + $0x10] sm:$0xff]
        %v260 = vld [vmem:[%s256 + $0x18] sm:$0xff]
        %v261 = vld [vmem:[%s256 + $0x20] sm:$0xff]
        %v262 = vld [vmem:[%s256 + $0x28] sm:$0xff]
        %v263 = vld [vmem:[%s256 + $0x30] sm:$0xff]
        %v264 = vld [vmem:[%s256 + $0x38] sm:$0xff]
        %266 = vrot.lane.b32.xlu0 %v231, 127
        %v267 = vpop.permute.xlu0 %266
        %v269 = vmul.f32 %v257, %v267
        %v270 = vmul.f32 %v258, %v267
        %v271 = vmul.f32 %v259, %v267
        %v272 = vmul.f32 %v260, %v267
        %v273 = vmul.f32 %v261, %v267
        %v274 = vmul.f32 %v262, %v267
        %v275 = vmul.f32 %v263, %v267
        %v276 = vmul.f32 %v264, %v267
        %v277 = vadd.f32 %v248, %v269
        %v278 = vadd.f32 %v249, %v270
        %v279 = vadd.f32 %v250, %v271
        %v280 = vadd.f32 %v251, %v272
        %v281 = vadd.f32 %v252, %v273
        %v282 = vadd.f32 %v253, %v274
        %v283 = vadd.f32 %v254, %v275
        %v284 = vadd.f32 %v255, %v276
        %s285 = scalar_lea.vmem %s1, 128
        %v286 = vld [vmem:[%s285] sm:$0xff]
        %v287 = vld [vmem:[%s285 + $0x8] sm:$0xff]
        %v288 = vld [vmem:[%s285 + $0x10] sm:$0xff]
        %v289 = vld [vmem:[%s285 + $0x18] sm:$0xff]
        %v290 = vld [vmem:[%s285 + $0x20] sm:$0xff]
        %v291 = vld [vmem:[%s285 + $0x28] sm:$0xff]
        %v292 = vld [vmem:[%s285 + $0x30] sm:$0xff]
        %v293 = vld [vmem:[%s285 + $0x38] sm:$0xff]
        %294 = vrot.lane.b32.xlu0 %v231, 126
        %v295 = vpop.permute.xlu0 %294
        %v297 = vmul.f32 %v286, %v295
        %v298 = vmul.f32 %v287, %v295
        %v299 = vmul.f32 %v288, %v295
        %v300 = vmul.f32 %v289, %v295
        %v301 = vmul.f32 %v290, %v295
        %v302 = vmul.f32 %v291, %v295
        %v303 = vmul.f32 %v292, %v295
        %v304 = vmul.f32 %v293, %v295
        %v305 = vadd.f32 %v277, %v297
        %v306 = vadd.f32 %v278, %v298
        %v307 = vadd.f32 %v279, %v299
        %v308 = vadd.f32 %v280, %v300
        %v309 = vadd.f32 %v281, %v301
        %v310 = vadd.f32 %v282, %v302
        %v311 = vadd.f32 %v283, %v303
        %v312 = vadd.f32 %v284, %v304
        %v313 = vld [vmem:[%s222 + $0x1] sm:$0xff]
        %s314 = scalar_lea.vmem %s1, 192
        %v315 = vld [vmem:[%s314] sm:$0xff]
        %v316 = vld [vmem:[%s314 + $0x8] sm:$0xff]
        %v317 = vld [vmem:[%s314 + $0x10] sm:$0xff]
        %v318 = vld [vmem:[%s314 + $0x18] sm:$0xff]
        %v319 = vld [vmem:[%s314 + $0x20] sm:$0xff]
        %v320 = vld [vmem:[%s314 + $0x28] sm:$0xff]
        %v321 = vld [vmem:[%s314 + $0x30] sm:$0xff]
        %v322 = vld [vmem:[%s314 + $0x38] sm:$0xff]
        %v323 = vmul.f32 %v315, %v313
        %v324 = vmul.f32 %v316, %v313
        %v325 = vmul.f32 %v317, %v313
        %v326 = vmul.f32 %v318, %v313
        %v327 = vmul.f32 %v319, %v313
        %v328 = vmul.f32 %v320, %v313
        %v329 = vmul.f32 %v321, %v313
        %v330 = vmul.f32 %v322, %v313
        %v331 = vadd.f32 %v305, %v323
        %v332 = vadd.f32 %v306, %v324
        %v333 = vadd.f32 %v307, %v325
        %v334 = vadd.f32 %v308, %v326
        %v335 = vadd.f32 %v309, %v327
        %v336 = vadd.f32 %v310, %v328
        %v337 = vadd.f32 %v311, %v329
        %v338 = vadd.f32 %v312, %v330
        %s339 = scalar_lea.vmem %s1, 256
        %v340 = vld [vmem:[%s339] sm:$0xff]
        %v341 = vld [vmem:[%s339 + $0x8] sm:$0xff]
        %v342 = vld [vmem:[%s339 + $0x10] sm:$0xff]
        %v343 = vld [vmem:[%s339 + $0x18] sm:$0xff]
        %v344 = vld [vmem:[%s339 + $0x20] sm:$0xff]
        %v345 = vld [vmem:[%s339 + $0x28] sm:$0xff]
        %v346 = vld [vmem:[%s339 + $0x30] sm:$0xff]
        %v347 = vld [vmem:[%s339 + $0x38] sm:$0xff]
        %349 = vrot.lane.b32.xlu0 %v313, 127
        %v350 = vpop.permute.xlu0 %349
        %v352 = vmul.f32 %v340, %v350
        %v353 = vmul.f32 %v341, %v350
        %v354 = vmul.f32 %v342, %v350
        %v355 = vmul.f32 %v343, %v350
        %v356 = vmul.f32 %v344, %v350
        %v357 = vmul.f32 %v345, %v350
        %v358 = vmul.f32 %v346, %v350
        %v359 = vmul.f32 %v347, %v350
        %v360 = vadd.f32 %v331, %v352
        %v361 = vadd.f32 %v332, %v353
        %v362 = vadd.f32 %v333, %v354
        %v363 = vadd.f32 %v334, %v355
        %v364 = vadd.f32 %v335, %v356
        %v365 = vadd.f32 %v336, %v357
        %v366 = vadd.f32 %v337, %v358
        %v367 = vadd.f32 %v338, %v359
        %s368 = scalar_lea.vmem %s1, 320
        %v369 = vld [vmem:[%s368] sm:$0xff]
        %v370 = vld [vmem:[%s368 + $0x8] sm:$0xff]
        %v371 = vld [vmem:[%s368 + $0x10] sm:$0xff]
        %v372 = vld [vmem:[%s368 + $0x18] sm:$0xff]
        %v373 = vld [vmem:[%s368 + $0x20] sm:$0xff]
        %v374 = vld [vmem:[%s368 + $0x28] sm:$0xff]
        %v375 = vld [vmem:[%s368 + $0x30] sm:$0xff]
        %v376 = vld [vmem:[%s368 + $0x38] sm:$0xff]
        %377 = vrot.lane.b32.xlu0 %v313, 126
        %v378 = vpop.permute.xlu0 %377
        %v380 = vmul.f32 %v369, %v378
        %v381 = vmul.f32 %v370, %v378
        %v382 = vmul.f32 %v371, %v378
        %v383 = vmul.f32 %v372, %v378
        %v384 = vmul.f32 %v373, %v378
        %v385 = vmul.f32 %v374, %v378
        %v386 = vmul.f32 %v375, %v378
        %v387 = vmul.f32 %v376, %v378
        %v388 = vadd.f32 %v360, %v380
        %v389 = vadd.f32 %v361, %v381
        %v390 = vadd.f32 %v362, %v382
        %v391 = vadd.f32 %v363, %v383
        %v392 = vadd.f32 %v364, %v384
        %v393 = vadd.f32 %v365, %v385
        %v394 = vadd.f32 %v366, %v386
        %v395 = vadd.f32 %v367, %v387
        %v396 = vld [vmem:[%s222 + $0x2] sm:$0xff]
        %s397 = scalar_lea.vmem %s1, 384
        %v398 = vld [vmem:[%s397] sm:$0xff]
        %v399 = vld [vmem:[%s397 + $0x8] sm:$0xff]
        %v400 = vld [vmem:[%s397 + $0x10] sm:$0xff]
        %v401 = vld [vmem:[%s397 + $0x18] sm:$0xff]
        %v402 = vld [vmem:[%s397 + $0x20] sm:$0xff]
        %v403 = vld [vmem:[%s397 + $0x28] sm:$0xff]
        %v404 = vld [vmem:[%s397 + $0x30] sm:$0xff]
        %v405 = vld [vmem:[%s397 + $0x38] sm:$0xff]
        %v406 = vmul.f32 %v398, %v396
        %v407 = vmul.f32 %v399, %v396
        %v408 = vmul.f32 %v400, %v396
        %v409 = vmul.f32 %v401, %v396
        %v410 = vmul.f32 %v402, %v396
        %v411 = vmul.f32 %v403, %v396
        %v412 = vmul.f32 %v404, %v396
        %v413 = vmul.f32 %v405, %v396
        %v414 = vadd.f32 %v388, %v406
        %v415 = vadd.f32 %v389, %v407
        %v416 = vadd.f32 %v390, %v408
        %v417 = vadd.f32 %v391, %v409
        %v418 = vadd.f32 %v392, %v410
        %v419 = vadd.f32 %v393, %v411
        %v420 = vadd.f32 %v394, %v412
        %v421 = vadd.f32 %v395, %v413
        %s422 = scalar_lea.vmem %s1, 448
        %v423 = vld [vmem:[%s422] sm:$0xff]
        %v424 = vld [vmem:[%s422 + $0x8] sm:$0xff]
        %v425 = vld [vmem:[%s422 + $0x10] sm:$0xff]
        %v426 = vld [vmem:[%s422 + $0x18] sm:$0xff]
        %v427 = vld [vmem:[%s422 + $0x20] sm:$0xff]
        %v428 = vld [vmem:[%s422 + $0x28] sm:$0xff]
        %v429 = vld [vmem:[%s422 + $0x30] sm:$0xff]
        %v430 = vld [vmem:[%s422 + $0x38] sm:$0xff]
        %432 = vrot.lane.b32.xlu0 %v396, 127
        %v433 = vpop.permute.xlu0 %432
        %v435 = vmul.f32 %v423, %v433
        %v436 = vmul.f32 %v424, %v433
        %v437 = vmul.f32 %v425, %v433
        %v438 = vmul.f32 %v426, %v433
        %v439 = vmul.f32 %v427, %v433
        %v440 = vmul.f32 %v428, %v433
        %v441 = vmul.f32 %v429, %v433
        %v442 = vmul.f32 %v430, %v433
        %v443 = vadd.f32 %v414, %v435
        %v444 = vadd.f32 %v415, %v436
        %v445 = vadd.f32 %v416, %v437
        %v446 = vadd.f32 %v417, %v438
        %v447 = vadd.f32 %v418, %v439
        %v448 = vadd.f32 %v419, %v440
        %v449 = vadd.f32 %v420, %v441
        %v450 = vadd.f32 %v421, %v442
        %s451 = scalar_lea.vmem %s1, 512
        %v452 = vld [vmem:[%s451] sm:$0xff]
        %v453 = vld [vmem:[%s451 + $0x8] sm:$0xff]
        %v454 = vld [vmem:[%s451 + $0x10] sm:$0xff]
        %v455 = vld [vmem:[%s451 + $0x18] sm:$0xff]
        %v456 = vld [vmem:[%s451 + $0x20] sm:$0xff]
        %v457 = vld [vmem:[%s451 + $0x28] sm:$0xff]
        %v458 = vld [vmem:[%s451 + $0x30] sm:$0xff]
        %v459 = vld [vmem:[%s451 + $0x38] sm:$0xff]
        %460 = vrot.lane.b32.xlu0 %v396, 126
        %v461 = vpop.permute.xlu0 %460
        %v463 = vmul.f32 %v452, %v461
        %v464 = vmul.f32 %v453, %v461
        %v465 = vmul.f32 %v454, %v461
        %v466 = vmul.f32 %v455, %v461
        %v467 = vmul.f32 %v456, %v461
        %v468 = vmul.f32 %v457, %v461
        %v469 = vmul.f32 %v458, %v461
        %v470 = vmul.f32 %v459, %v461
        %v471 = vadd.f32 %v443, %v463
        %v472 = vadd.f32 %v444, %v464
        %v473 = vadd.f32 %v445, %v465
        %v474 = vadd.f32 %v446, %v466
        %v475 = vadd.f32 %v447, %v467
        %v476 = vadd.f32 %v448, %v468
        %v477 = vadd.f32 %v449, %v469
        %v478 = vadd.f32 %v450, %v470
        %s479 = scalar_lea.vmem %s222, 16
        %v480 = vld [vmem:[%s479] sm:$0xff]
        %s481 = scalar_lea.vmem %s1, 576
        %v482 = vld [vmem:[%s481] sm:$0xff]
        %v483 = vld [vmem:[%s481 + $0x8] sm:$0xff]
        %v484 = vld [vmem:[%s481 + $0x10] sm:$0xff]
        %v485 = vld [vmem:[%s481 + $0x18] sm:$0xff]
        %v486 = vld [vmem:[%s481 + $0x20] sm:$0xff]
        %v487 = vld [vmem:[%s481 + $0x28] sm:$0xff]
        %v488 = vld [vmem:[%s481 + $0x30] sm:$0xff]
        %v489 = vld [vmem:[%s481 + $0x38] sm:$0xff]
        %v490 = vmul.f32 %v482, %v480
        %v491 = vmul.f32 %v483, %v480
        %v492 = vmul.f32 %v484, %v480
        %v493 = vmul.f32 %v485, %v480
        %v494 = vmul.f32 %v486, %v480
        %v495 = vmul.f32 %v487, %v480
        %v496 = vmul.f32 %v488, %v480
        %v497 = vmul.f32 %v489, %v480
        %v498 = vadd.f32 %v471, %v490
        %v499 = vadd.f32 %v472, %v491
        %v500 = vadd.f32 %v473, %v492
        %v501 = vadd.f32 %v474, %v493
        %v502 = vadd.f32 %v475, %v494
        %v503 = vadd.f32 %v476, %v495
        %v504 = vadd.f32 %v477, %v496
        %v505 = vadd.f32 %v478, %v497
        %s506 = scalar_lea.vmem %s1, 640
        %v507 = vld [vmem:[%s506] sm:$0xff]
        %v508 = vld [vmem:[%s506 + $0x8] sm:$0xff]
        %v509 = vld [vmem:[%s506 + $0x10] sm:$0xff]
        %v510 = vld [vmem:[%s506 + $0x18] sm:$0xff]
        %v511 = vld [vmem:[%s506 + $0x20] sm:$0xff]
        %v512 = vld [vmem:[%s506 + $0x28] sm:$0xff]
        %v513 = vld [vmem:[%s506 + $0x30] sm:$0xff]
        %v514 = vld [vmem:[%s506 + $0x38] sm:$0xff]
        %516 = vrot.lane.b32.xlu0 %v480, 127
        %v517 = vpop.permute.xlu0 %516
        %v519 = vmul.f32 %v507, %v517
        %v520 = vmul.f32 %v508, %v517
        %v521 = vmul.f32 %v509, %v517
        %v522 = vmul.f32 %v510, %v517
        %v523 = vmul.f32 %v511, %v517
        %v524 = vmul.f32 %v512, %v517
        %v525 = vmul.f32 %v513, %v517
        %v526 = vmul.f32 %v514, %v517
        %v527 = vadd.f32 %v498, %v519
        %v528 = vadd.f32 %v499, %v520
        %v529 = vadd.f32 %v500, %v521
        %v530 = vadd.f32 %v501, %v522
        %v531 = vadd.f32 %v502, %v523
        %v532 = vadd.f32 %v503, %v524
        %v533 = vadd.f32 %v504, %v525
        %v534 = vadd.f32 %v505, %v526
        %s535 = scalar_lea.vmem %s1, 704
        %v536 = vld [vmem:[%s535] sm:$0xff]
        %v537 = vld [vmem:[%s535 + $0x8] sm:$0xff]
        %v538 = vld [vmem:[%s535 + $0x10] sm:$0xff]
        %v539 = vld [vmem:[%s535 + $0x18] sm:$0xff]
        %v540 = vld [vmem:[%s535 + $0x20] sm:$0xff]
        %v541 = vld [vmem:[%s535 + $0x28] sm:$0xff]
        %v542 = vld [vmem:[%s535 + $0x30] sm:$0xff]
        %v543 = vld [vmem:[%s535 + $0x38] sm:$0xff]
        %544 = vrot.lane.b32.xlu0 %v480, 126
        %v545 = vpop.permute.xlu0 %544
        %v547 = vmul.f32 %v536, %v545
        %v548 = vmul.f32 %v537, %v545
        %v549 = vmul.f32 %v538, %v545
        %v550 = vmul.f32 %v539, %v545
        %v551 = vmul.f32 %v540, %v545
        %v552 = vmul.f32 %v541, %v545
        %v553 = vmul.f32 %v542, %v545
        %v554 = vmul.f32 %v543, %v545
        %v555 = vadd.f32 %v527, %v547
        %v556 = vadd.f32 %v528, %v548
        %v557 = vadd.f32 %v529, %v549
        %v558 = vadd.f32 %v530, %v550
        %v559 = vadd.f32 %v531, %v551
        %v560 = vadd.f32 %v532, %v552
        %v561 = vadd.f32 %v533, %v553
        %v562 = vadd.f32 %v534, %v554
        %v563 = vld [vmem:[%s479 + $0x1] sm:$0xff]
        %s564 = scalar_lea.vmem %s1, 768
        %v565 = vld [vmem:[%s564] sm:$0xff]
        %v566 = vld [vmem:[%s564 + $0x8] sm:$0xff]
        %v567 = vld [vmem:[%s564 + $0x10] sm:$0xff]
        %v568 = vld [vmem:[%s564 + $0x18] sm:$0xff]
        %v569 = vld [vmem:[%s564 + $0x20] sm:$0xff]
        %v570 = vld [vmem:[%s564 + $0x28] sm:$0xff]
        %v571 = vld [vmem:[%s564 + $0x30] sm:$0xff]
        %v572 = vld [vmem:[%s564 + $0x38] sm:$0xff]
        %v573 = vmul.f32 %v565, %v563
        %v574 = vmul.f32 %v566, %v563
        %v575 = vmul.f32 %v567, %v563
        %v576 = vmul.f32 %v568, %v563
        %v577 = vmul.f32 %v569, %v563
        %v578 = vmul.f32 %v570, %v563
        %v579 = vmul.f32 %v571, %v563
        %v580 = vmul.f32 %v572, %v563
        %v581 = vadd.f32 %v555, %v573
        %v582 = vadd.f32 %v556, %v574
        %v583 = vadd.f32 %v557, %v575
        %v584 = vadd.f32 %v558, %v576
        %v585 = vadd.f32 %v559, %v577
        %v586 = vadd.f32 %v560, %v578
        %v587 = vadd.f32 %v561, %v579
        %v588 = vadd.f32 %v562, %v580
        %s589 = scalar_lea.vmem %s1, 832
        %v590 = vld [vmem:[%s589] sm:$0xff]
        %v591 = vld [vmem:[%s589 + $0x8] sm:$0xff]
        %v592 = vld [vmem:[%s589 + $0x10] sm:$0xff]
        %v593 = vld [vmem:[%s589 + $0x18] sm:$0xff]
        %v594 = vld [vmem:[%s589 + $0x20] sm:$0xff]
        %v595 = vld [vmem:[%s589 + $0x28] sm:$0xff]
        %v596 = vld [vmem:[%s589 + $0x30] sm:$0xff]
        %v597 = vld [vmem:[%s589 + $0x38] sm:$0xff]
        %599 = vrot.lane.b32.xlu0 %v563, 127
        %v600 = vpop.permute.xlu0 %599
        %v602 = vmul.f32 %v590, %v600
        %v603 = vmul.f32 %v591, %v600
        %v604 = vmul.f32 %v592, %v600
        %v605 = vmul.f32 %v593, %v600
        %v606 = vmul.f32 %v594, %v600
        %v607 = vmul.f32 %v595, %v600
        %v608 = vmul.f32 %v596, %v600
        %v609 = vmul.f32 %v597, %v600
        %v610 = vadd.f32 %v581, %v602
        %v611 = vadd.f32 %v582, %v603
        %v612 = vadd.f32 %v583, %v604
        %v613 = vadd.f32 %v584, %v605
        %v614 = vadd.f32 %v585, %v606
        %v615 = vadd.f32 %v586, %v607
        %v616 = vadd.f32 %v587, %v608
        %v617 = vadd.f32 %v588, %v609
        %s618 = scalar_lea.vmem %s1, 896
        %v619 = vld [vmem:[%s618] sm:$0xff]
        %v620 = vld [vmem:[%s618 + $0x8] sm:$0xff]
        %v621 = vld [vmem:[%s618 + $0x10] sm:$0xff]
        %v622 = vld [vmem:[%s618 + $0x18] sm:$0xff]
        %v623 = vld [vmem:[%s618 + $0x20] sm:$0xff]
        %v624 = vld [vmem:[%s618 + $0x28] sm:$0xff]
        %v625 = vld [vmem:[%s618 + $0x30] sm:$0xff]
        %v626 = vld [vmem:[%s618 + $0x38] sm:$0xff]
        %627 = vrot.lane.b32.xlu0 %v563, 126
        %v628 = vpop.permute.xlu0 %627
        %v630 = vmul.f32 %v619, %v628
        %v631 = vmul.f32 %v620, %v628
        %v632 = vmul.f32 %v621, %v628
        %v633 = vmul.f32 %v622, %v628
        %v634 = vmul.f32 %v623, %v628
        %v635 = vmul.f32 %v624, %v628
        %v636 = vmul.f32 %v625, %v628
        %v637 = vmul.f32 %v626, %v628
        %v638 = vadd.f32 %v610, %v630
        %v639 = vadd.f32 %v611, %v631
        %v640 = vadd.f32 %v612, %v632
        %v641 = vadd.f32 %v613, %v633
        %v642 = vadd.f32 %v614, %v634
        %v643 = vadd.f32 %v615, %v635
        %v644 = vadd.f32 %v616, %v636
        %v645 = vadd.f32 %v617, %v637
        %v646 = vld [vmem:[%s479 + $0x2] sm:$0xff]
        %s647 = scalar_lea.vmem %s1, 960
        %v648 = vld [vmem:[%s647] sm:$0xff]
        %v649 = vld [vmem:[%s647 + $0x8] sm:$0xff]
        %v650 = vld [vmem:[%s647 + $0x10] sm:$0xff]
        %v651 = vld [vmem:[%s647 + $0x18] sm:$0xff]
        %v652 = vld [vmem:[%s647 + $0x20] sm:$0xff]
        %v653 = vld [vmem:[%s647 + $0x28] sm:$0xff]
        %v654 = vld [vmem:[%s647 + $0x30] sm:$0xff]
        %v655 = vld [vmem:[%s647 + $0x38] sm:$0xff]
        %v656 = vmul.f32 %v648, %v646
        %v657 = vmul.f32 %v649, %v646
        %v658 = vmul.f32 %v650, %v646
        %v659 = vmul.f32 %v651, %v646
        %v660 = vmul.f32 %v652, %v646
        %v661 = vmul.f32 %v653, %v646
        %v662 = vmul.f32 %v654, %v646
        %v663 = vmul.f32 %v655, %v646
        %v664 = vadd.f32 %v638, %v656
        %v665 = vadd.f32 %v639, %v657
        %v666 = vadd.f32 %v640, %v658
        %v667 = vadd.f32 %v641, %v659
        %v668 = vadd.f32 %v642, %v660
        %v669 = vadd.f32 %v643, %v661
        %v670 = vadd.f32 %v644, %v662
        %v671 = vadd.f32 %v645, %v663
        %s672 = scalar_lea.vmem %s1, 1024
        %v673 = vld [vmem:[%s672] sm:$0xff]
        %v674 = vld [vmem:[%s672 + $0x8] sm:$0xff]
        %v675 = vld [vmem:[%s672 + $0x10] sm:$0xff]
        %v676 = vld [vmem:[%s672 + $0x18] sm:$0xff]
        %v677 = vld [vmem:[%s672 + $0x20] sm:$0xff]
        %v678 = vld [vmem:[%s672 + $0x28] sm:$0xff]
        %v679 = vld [vmem:[%s672 + $0x30] sm:$0xff]
        %v680 = vld [vmem:[%s672 + $0x38] sm:$0xff]
        %682 = vrot.lane.b32.xlu0 %v646, 127
        %v683 = vpop.permute.xlu0 %682
        %v685 = vmul.f32 %v673, %v683
        %v686 = vmul.f32 %v674, %v683
        %v687 = vmul.f32 %v675, %v683
        %v688 = vmul.f32 %v676, %v683
        %v689 = vmul.f32 %v677, %v683
        %v690 = vmul.f32 %v678, %v683
        %v691 = vmul.f32 %v679, %v683
        %v692 = vmul.f32 %v680, %v683
        %v693 = vadd.f32 %v664, %v685
        %v694 = vadd.f32 %v665, %v686
        %v695 = vadd.f32 %v666, %v687
        %v696 = vadd.f32 %v667, %v688
        %v697 = vadd.f32 %v668, %v689
        %v698 = vadd.f32 %v669, %v690
        %v699 = vadd.f32 %v670, %v691
        %v700 = vadd.f32 %v671, %v692
        %s701 = scalar_lea.vmem %s1, 1088
        %v702 = vld [vmem:[%s701] sm:$0xff]
        %v703 = vld [vmem:[%s701 + $0x8] sm:$0xff]
        %v704 = vld [vmem:[%s701 + $0x10] sm:$0xff]
        %v705 = vld [vmem:[%s701 + $0x18] sm:$0xff]
        %v706 = vld [vmem:[%s701 + $0x20] sm:$0xff]
        %v707 = vld [vmem:[%s701 + $0x28] sm:$0xff]
        %v708 = vld [vmem:[%s701 + $0x30] sm:$0xff]
        %v709 = vld [vmem:[%s701 + $0x38] sm:$0xff]
        %710 = vrot.lane.b32.xlu0 %v646, 126
        %v711 = vpop.permute.xlu0 %710
        %v713 = vmul.f32 %v702, %v711
        %v714 = vmul.f32 %v703, %v711
        %v715 = vmul.f32 %v704, %v711
        %v716 = vmul.f32 %v705, %v711
        %v717 = vmul.f32 %v706, %v711
        %v718 = vmul.f32 %v707, %v711
        %v719 = vmul.f32 %v708, %v711
        %v720 = vmul.f32 %v709, %v711
        %v721 = vadd.f32 %v693, %v713
        %v722 = vadd.f32 %v694, %v714
        %v723 = vadd.f32 %v695, %v715
        %v724 = vadd.f32 %v696, %v716
        %v725 = vadd.f32 %v697, %v717
        %v726 = vadd.f32 %v698, %v718
        %v727 = vadd.f32 %v699, %v719
        %v728 = vadd.f32 %v700, %v720
        %s729 = scalar_lea.vmem %s222, 32
        %v730 = vld [vmem:[%s729] sm:$0xff]
        %s731 = scalar_lea.vmem %s1, 1152
        %v732 = vld [vmem:[%s731] sm:$0xff]
        %v733 = vld [vmem:[%s731 + $0x8] sm:$0xff]
        %v734 = vld [vmem:[%s731 + $0x10] sm:$0xff]
        %v735 = vld [vmem:[%s731 + $0x18] sm:$0xff]
        %v736 = vld [vmem:[%s731 + $0x20] sm:$0xff]
        %v737 = vld [vmem:[%s731 + $0x28] sm:$0xff]
        %v738 = vld [vmem:[%s731 + $0x30] sm:$0xff]
        %v739 = vld [vmem:[%s731 + $0x38] sm:$0xff]
        %v740 = vmul.f32 %v732, %v730
        %v741 = vmul.f32 %v733, %v730
        %v742 = vmul.f32 %v734, %v730
        %v743 = vmul.f32 %v735, %v730
        %v744 = vmul.f32 %v736, %v730
        %v745 = vmul.f32 %v737, %v730
        %v746 = vmul.f32 %v738, %v730
        %v747 = vmul.f32 %v739, %v730
        %v748 = vadd.f32 %v721, %v740
        %v749 = vadd.f32 %v722, %v741
        %v750 = vadd.f32 %v723, %v742
        %v751 = vadd.f32 %v724, %v743
        %v752 = vadd.f32 %v725, %v744
        %v753 = vadd.f32 %v726, %v745
        %v754 = vadd.f32 %v727, %v746
        %v755 = vadd.f32 %v728, %v747
        %s756 = scalar_lea.vmem %s1, 1216
        %v757 = vld [vmem:[%s756] sm:$0xff]
        %v758 = vld [vmem:[%s756 + $0x8] sm:$0xff]
        %v759 = vld [vmem:[%s756 + $0x10] sm:$0xff]
        %v760 = vld [vmem:[%s756 + $0x18] sm:$0xff]
        %v761 = vld [vmem:[%s756 + $0x20] sm:$0xff]
        %v762 = vld [vmem:[%s756 + $0x28] sm:$0xff]
        %v763 = vld [vmem:[%s756 + $0x30] sm:$0xff]
        %v764 = vld [vmem:[%s756 + $0x38] sm:$0xff]
        %766 = vrot.lane.b32.xlu0 %v730, 127
        %v767 = vpop.permute.xlu0 %766
        %v769 = vmul.f32 %v757, %v767
        %v770 = vmul.f32 %v758, %v767
        %v771 = vmul.f32 %v759, %v767
        %v772 = vmul.f32 %v760, %v767
        %v773 = vmul.f32 %v761, %v767
        %v774 = vmul.f32 %v762, %v767
        %v775 = vmul.f32 %v763, %v767
        %v776 = vmul.f32 %v764, %v767
        %v777 = vadd.f32 %v748, %v769
        %v778 = vadd.f32 %v749, %v770
        %v779 = vadd.f32 %v750, %v771
        %v780 = vadd.f32 %v751, %v772
        %v781 = vadd.f32 %v752, %v773
        %v782 = vadd.f32 %v753, %v774
        %v783 = vadd.f32 %v754, %v775
        %v784 = vadd.f32 %v755, %v776
        %s785 = scalar_lea.vmem %s1, 1280
        %v786 = vld [vmem:[%s785] sm:$0xff]
        %v787 = vld [vmem:[%s785 + $0x8] sm:$0xff]
        %v788 = vld [vmem:[%s785 + $0x10] sm:$0xff]
        %v789 = vld [vmem:[%s785 + $0x18] sm:$0xff]
        %v790 = vld [vmem:[%s785 + $0x20] sm:$0xff]
        %v791 = vld [vmem:[%s785 + $0x28] sm:$0xff]
        %v792 = vld [vmem:[%s785 + $0x30] sm:$0xff]
        %v793 = vld [vmem:[%s785 + $0x38] sm:$0xff]
        %794 = vrot.lane.b32.xlu0 %v730, 126
        %v795 = vpop.permute.xlu0 %794
        %v797 = vmul.f32 %v786, %v795
        %v798 = vmul.f32 %v787, %v795
        %v799 = vmul.f32 %v788, %v795
        %v800 = vmul.f32 %v789, %v795
        %v801 = vmul.f32 %v790, %v795
        %v802 = vmul.f32 %v791, %v795
        %v803 = vmul.f32 %v792, %v795
        %v804 = vmul.f32 %v793, %v795
        %v805 = vadd.f32 %v777, %v797
        %v806 = vadd.f32 %v778, %v798
        %v807 = vadd.f32 %v779, %v799
        %v808 = vadd.f32 %v780, %v800
        %v809 = vadd.f32 %v781, %v801
        %v810 = vadd.f32 %v782, %v802
        %v811 = vadd.f32 %v783, %v803
        %v812 = vadd.f32 %v784, %v804
        %v813 = vld [vmem:[%s729 + $0x1] sm:$0xff]
        %s814 = scalar_lea.vmem %s1, 1344
        %v815 = vld [vmem:[%s814] sm:$0xff]
        %v816 = vld [vmem:[%s814 + $0x8] sm:$0xff]
        %v817 = vld [vmem:[%s814 + $0x10] sm:$0xff]
        %v818 = vld [vmem:[%s814 + $0x18] sm:$0xff]
        %v819 = vld [vmem:[%s814 + $0x20] sm:$0xff]
        %v820 = vld [vmem:[%s814 + $0x28] sm:$0xff]
        %v821 = vld [vmem:[%s814 + $0x30] sm:$0xff]
        %v822 = vld [vmem:[%s814 + $0x38] sm:$0xff]
        %v823 = vmul.f32 %v815, %v813
        %v824 = vmul.f32 %v816, %v813
        %v825 = vmul.f32 %v817, %v813
        %v826 = vmul.f32 %v818, %v813
        %v827 = vmul.f32 %v819, %v813
        %v828 = vmul.f32 %v820, %v813
        %v829 = vmul.f32 %v821, %v813
        %v830 = vmul.f32 %v822, %v813
        %v831 = vadd.f32 %v805, %v823
        %v832 = vadd.f32 %v806, %v824
        %v833 = vadd.f32 %v807, %v825
        %v834 = vadd.f32 %v808, %v826
        %v835 = vadd.f32 %v809, %v827
        %v836 = vadd.f32 %v810, %v828
        %v837 = vadd.f32 %v811, %v829
        %v838 = vadd.f32 %v812, %v830
        %s839 = scalar_lea.vmem %s1, 1408
        %v840 = vld [vmem:[%s839] sm:$0xff]
        %v841 = vld [vmem:[%s839 + $0x8] sm:$0xff]
        %v842 = vld [vmem:[%s839 + $0x10] sm:$0xff]
        %v843 = vld [vmem:[%s839 + $0x18] sm:$0xff]
        %v844 = vld [vmem:[%s839 + $0x20] sm:$0xff]
        %v845 = vld [vmem:[%s839 + $0x28] sm:$0xff]
        %v846 = vld [vmem:[%s839 + $0x30] sm:$0xff]
        %v847 = vld [vmem:[%s839 + $0x38] sm:$0xff]
        %849 = vrot.lane.b32.xlu0 %v813, 127
        %v850 = vpop.permute.xlu0 %849
        %v852 = vmul.f32 %v840, %v850
        %v853 = vmul.f32 %v841, %v850
        %v854 = vmul.f32 %v842, %v850
        %v855 = vmul.f32 %v843, %v850
        %v856 = vmul.f32 %v844, %v850
        %v857 = vmul.f32 %v845, %v850
        %v858 = vmul.f32 %v846, %v850
        %v859 = vmul.f32 %v847, %v850
        %v860 = vadd.f32 %v831, %v852
        %v861 = vadd.f32 %v832, %v853
        %v862 = vadd.f32 %v833, %v854
        %v863 = vadd.f32 %v834, %v855
        %v864 = vadd.f32 %v835, %v856
        %v865 = vadd.f32 %v836, %v857
        %v866 = vadd.f32 %v837, %v858
        %v867 = vadd.f32 %v838, %v859
        %s868 = scalar_lea.vmem %s1, 1472
        %v869 = vld [vmem:[%s868] sm:$0xff]
        %v870 = vld [vmem:[%s868 + $0x8] sm:$0xff]
        %v871 = vld [vmem:[%s868 + $0x10] sm:$0xff]
        %v872 = vld [vmem:[%s868 + $0x18] sm:$0xff]
        %v873 = vld [vmem:[%s868 + $0x20] sm:$0xff]
        %v874 = vld [vmem:[%s868 + $0x28] sm:$0xff]
        %v875 = vld [vmem:[%s868 + $0x30] sm:$0xff]
        %v876 = vld [vmem:[%s868 + $0x38] sm:$0xff]
        %877 = vrot.lane.b32.xlu0 %v813, 126
        %v878 = vpop.permute.xlu0 %877
        %v880 = vmul.f32 %v869, %v878
        %v881 = vmul.f32 %v870, %v878
        %v882 = vmul.f32 %v871, %v878
        %v883 = vmul.f32 %v872, %v878
        %v884 = vmul.f32 %v873, %v878
        %v885 = vmul.f32 %v874, %v878
        %v886 = vmul.f32 %v875, %v878
        %v887 = vmul.f32 %v876, %v878
        %v888 = vadd.f32 %v860, %v880
        %v889 = vadd.f32 %v861, %v881
        %v890 = vadd.f32 %v862, %v882
        %v891 = vadd.f32 %v863, %v883
        %v892 = vadd.f32 %v864, %v884
        %v893 = vadd.f32 %v865, %v885
        %v894 = vadd.f32 %v866, %v886
        %v895 = vadd.f32 %v867, %v887
        %v896 = vld [vmem:[%s729 + $0x2] sm:$0xff]
        %s897 = scalar_lea.vmem %s1, 1536
        %v898 = vld [vmem:[%s897] sm:$0xff]
        %v899 = vld [vmem:[%s897 + $0x8] sm:$0xff]
        %v900 = vld [vmem:[%s897 + $0x10] sm:$0xff]
        %v901 = vld [vmem:[%s897 + $0x18] sm:$0xff]
        %v902 = vld [vmem:[%s897 + $0x20] sm:$0xff]
        %v903 = vld [vmem:[%s897 + $0x28] sm:$0xff]
        %v904 = vld [vmem:[%s897 + $0x30] sm:$0xff]
        %v905 = vld [vmem:[%s897 + $0x38] sm:$0xff]
        %v906 = vmul.f32 %v898, %v896
        %v907 = vmul.f32 %v899, %v896
        %v908 = vmul.f32 %v900, %v896
        %v909 = vmul.f32 %v901, %v896
        %v910 = vmul.f32 %v902, %v896
        %v911 = vmul.f32 %v903, %v896
        %v912 = vmul.f32 %v904, %v896
        %v913 = vmul.f32 %v905, %v896
        %v914 = vadd.f32 %v888, %v906
        %v915 = vadd.f32 %v889, %v907
        %v916 = vadd.f32 %v890, %v908
        %v917 = vadd.f32 %v891, %v909
        %v918 = vadd.f32 %v892, %v910
        %v919 = vadd.f32 %v893, %v911
        %v920 = vadd.f32 %v894, %v912
        %v921 = vadd.f32 %v895, %v913
        %s922 = scalar_lea.vmem %s1, 1600
        %v923 = vld [vmem:[%s922] sm:$0xff]
        %v924 = vld [vmem:[%s922 + $0x8] sm:$0xff]
        %v925 = vld [vmem:[%s922 + $0x10] sm:$0xff]
        %v926 = vld [vmem:[%s922 + $0x18] sm:$0xff]
        %v927 = vld [vmem:[%s922 + $0x20] sm:$0xff]
        %v928 = vld [vmem:[%s922 + $0x28] sm:$0xff]
        %v929 = vld [vmem:[%s922 + $0x30] sm:$0xff]
        %v930 = vld [vmem:[%s922 + $0x38] sm:$0xff]
        %932 = vrot.lane.b32.xlu0 %v896, 127
        %v933 = vpop.permute.xlu0 %932
        %v935 = vmul.f32 %v923, %v933
        %v936 = vmul.f32 %v924, %v933
        %v937 = vmul.f32 %v925, %v933
        %v938 = vmul.f32 %v926, %v933
        %v939 = vmul.f32 %v927, %v933
        %v940 = vmul.f32 %v928, %v933
        %v941 = vmul.f32 %v929, %v933
        %v942 = vmul.f32 %v930, %v933
        %v943 = vadd.f32 %v914, %v935
        %v944 = vadd.f32 %v915, %v936
        %v945 = vadd.f32 %v916, %v937
        %v946 = vadd.f32 %v917, %v938
        %v947 = vadd.f32 %v918, %v939
        %v948 = vadd.f32 %v919, %v940
        %v949 = vadd.f32 %v920, %v941
        %v950 = vadd.f32 %v921, %v942
        %s951 = scalar_lea.vmem %s1, 1664
        %v952 = vld [vmem:[%s951] sm:$0xff]
        %v953 = vld [vmem:[%s951 + $0x8] sm:$0xff]
        %v954 = vld [vmem:[%s951 + $0x10] sm:$0xff]
        %v955 = vld [vmem:[%s951 + $0x18] sm:$0xff]
        %v956 = vld [vmem:[%s951 + $0x20] sm:$0xff]
        %v957 = vld [vmem:[%s951 + $0x28] sm:$0xff]
        %v958 = vld [vmem:[%s951 + $0x30] sm:$0xff]
        %v959 = vld [vmem:[%s951 + $0x38] sm:$0xff]
        %960 = vrot.lane.b32.xlu0 %v896, 126
        %v961 = vpop.permute.xlu0 %960
        %v963 = vmul.f32 %v952, %v961
        %v964 = vmul.f32 %v953, %v961
        %v965 = vmul.f32 %v954, %v961
        %v966 = vmul.f32 %v955, %v961
        %v967 = vmul.f32 %v956, %v961
        %v968 = vmul.f32 %v957, %v961
        %v969 = vmul.f32 %v958, %v961
        %v970 = vmul.f32 %v959, %v961
        %v971 = vadd.f32 %v943, %v963
        %v972 = vadd.f32 %v944, %v964
        %v973 = vadd.f32 %v945, %v965
        %v974 = vadd.f32 %v946, %v966
        %v975 = vadd.f32 %v947, %v967
        %v976 = vadd.f32 %v948, %v968
        %v977 = vadd.f32 %v949, %v969
        %v978 = vadd.f32 %v950, %v970
        %s979 = scalar_lea.vmem %s222, 48
        %v980 = vld [vmem:[%s979] sm:$0xff]
        %s981 = scalar_lea.vmem %s1, 1728
        %v982 = vld [vmem:[%s981] sm:$0xff]
        %v983 = vld [vmem:[%s981 + $0x8] sm:$0xff]
        %v984 = vld [vmem:[%s981 + $0x10] sm:$0xff]
        %v985 = vld [vmem:[%s981 + $0x18] sm:$0xff]
        %v986 = vld [vmem:[%s981 + $0x20] sm:$0xff]
        %v987 = vld [vmem:[%s981 + $0x28] sm:$0xff]
        %v988 = vld [vmem:[%s981 + $0x30] sm:$0xff]
        %v989 = vld [vmem:[%s981 + $0x38] sm:$0xff]
        %v990 = vmul.f32 %v982, %v980
        %v991 = vmul.f32 %v983, %v980
        %v992 = vmul.f32 %v984, %v980
        %v993 = vmul.f32 %v985, %v980
        %v994 = vmul.f32 %v986, %v980
        %v995 = vmul.f32 %v987, %v980
        %v996 = vmul.f32 %v988, %v980
        %v997 = vmul.f32 %v989, %v980
        %v998 = vadd.f32 %v971, %v990
        %v999 = vadd.f32 %v972, %v991
        %v1000 = vadd.f32 %v973, %v992
        %v1001 = vadd.f32 %v974, %v993
        %v1002 = vadd.f32 %v975, %v994
        %v1003 = vadd.f32 %v976, %v995
        %v1004 = vadd.f32 %v977, %v996
        %v1005 = vadd.f32 %v978, %v997
        %s1006 = scalar_lea.vmem %s1, 1792
        %v1007 = vld [vmem:[%s1006] sm:$0xff]
        %v1008 = vld [vmem:[%s1006 + $0x8] sm:$0xff]
        %v1009 = vld [vmem:[%s1006 + $0x10] sm:$0xff]
        %v1010 = vld [vmem:[%s1006 + $0x18] sm:$0xff]
        %v1011 = vld [vmem:[%s1006 + $0x20] sm:$0xff]
        %v1012 = vld [vmem:[%s1006 + $0x28] sm:$0xff]
        %v1013 = vld [vmem:[%s1006 + $0x30] sm:$0xff]
        %v1014 = vld [vmem:[%s1006 + $0x38] sm:$0xff]
        %1016 = vrot.lane.b32.xlu0 %v980, 127
        %v1017 = vpop.permute.xlu0 %1016
        %v1019 = vmul.f32 %v1007, %v1017
        %v1020 = vmul.f32 %v1008, %v1017
        %v1021 = vmul.f32 %v1009, %v1017
        %v1022 = vmul.f32 %v1010, %v1017
        %v1023 = vmul.f32 %v1011, %v1017
        %v1024 = vmul.f32 %v1012, %v1017
        %v1025 = vmul.f32 %v1013, %v1017
        %v1026 = vmul.f32 %v1014, %v1017
        %v1027 = vadd.f32 %v998, %v1019
        %v1028 = vadd.f32 %v999, %v1020
        %v1029 = vadd.f32 %v1000, %v1021
        %v1030 = vadd.f32 %v1001, %v1022
        %v1031 = vadd.f32 %v1002, %v1023
        %v1032 = vadd.f32 %v1003, %v1024
        %v1033 = vadd.f32 %v1004, %v1025
        %v1034 = vadd.f32 %v1005, %v1026
        %s1035 = scalar_lea.vmem %s1, 1856
        %v1036 = vld [vmem:[%s1035] sm:$0xff]
        %v1037 = vld [vmem:[%s1035 + $0x8] sm:$0xff]
        %v1038 = vld [vmem:[%s1035 + $0x10] sm:$0xff]
        %v1039 = vld [vmem:[%s1035 + $0x18] sm:$0xff]
        %v1040 = vld [vmem:[%s1035 + $0x20] sm:$0xff]
        %v1041 = vld [vmem:[%s1035 + $0x28] sm:$0xff]
        %v1042 = vld [vmem:[%s1035 + $0x30] sm:$0xff]
        %v1043 = vld [vmem:[%s1035 + $0x38] sm:$0xff]
        %1044 = vrot.lane.b32.xlu0 %v980, 126
        %v1045 = vpop.permute.xlu0 %1044
        %v1047 = vmul.f32 %v1036, %v1045
        %v1048 = vmul.f32 %v1037, %v1045
        %v1049 = vmul.f32 %v1038, %v1045
        %v1050 = vmul.f32 %v1039, %v1045
        %v1051 = vmul.f32 %v1040, %v1045
        %v1052 = vmul.f32 %v1041, %v1045
        %v1053 = vmul.f32 %v1042, %v1045
        %v1054 = vmul.f32 %v1043, %v1045
        %v1055 = vadd.f32 %v1027, %v1047
        %v1056 = vadd.f32 %v1028, %v1048
        %v1057 = vadd.f32 %v1029, %v1049
        %v1058 = vadd.f32 %v1030, %v1050
        %v1059 = vadd.f32 %v1031, %v1051
        %v1060 = vadd.f32 %v1032, %v1052
        %v1061 = vadd.f32 %v1033, %v1053
        %v1062 = vadd.f32 %v1034, %v1054
        %v1063 = vld [vmem:[%s979 + $0x1] sm:$0xff]
        %s1064 = scalar_lea.vmem %s1, 1920
        %v1065 = vld [vmem:[%s1064] sm:$0xff]
        %v1066 = vld [vmem:[%s1064 + $0x8] sm:$0xff]
        %v1067 = vld [vmem:[%s1064 + $0x10] sm:$0xff]
        %v1068 = vld [vmem:[%s1064 + $0x18] sm:$0xff]
        %v1069 = vld [vmem:[%s1064 + $0x20] sm:$0xff]
        %v1070 = vld [vmem:[%s1064 + $0x28] sm:$0xff]
        %v1071 = vld [vmem:[%s1064 + $0x30] sm:$0xff]
        %v1072 = vld [vmem:[%s1064 + $0x38] sm:$0xff]
        %v1073 = vmul.f32 %v1065, %v1063
        %v1074 = vmul.f32 %v1066, %v1063
        %v1075 = vmul.f32 %v1067, %v1063
        %v1076 = vmul.f32 %v1068, %v1063
        %v1077 = vmul.f32 %v1069, %v1063
        %v1078 = vmul.f32 %v1070, %v1063
        %v1079 = vmul.f32 %v1071, %v1063
        %v1080 = vmul.f32 %v1072, %v1063
        %v1081 = vadd.f32 %v1055, %v1073
        %v1082 = vadd.f32 %v1056, %v1074
        %v1083 = vadd.f32 %v1057, %v1075
        %v1084 = vadd.f32 %v1058, %v1076
        %v1085 = vadd.f32 %v1059, %v1077
        %v1086 = vadd.f32 %v1060, %v1078
        %v1087 = vadd.f32 %v1061, %v1079
        %v1088 = vadd.f32 %v1062, %v1080
        %s1089 = scalar_lea.vmem %s1, 1984
        %v1090 = vld [vmem:[%s1089] sm:$0xff]
        %v1091 = vld [vmem:[%s1089 + $0x8] sm:$0xff]
        %v1092 = vld [vmem:[%s1089 + $0x10] sm:$0xff]
        %v1093 = vld [vmem:[%s1089 + $0x18] sm:$0xff]
        %v1094 = vld [vmem:[%s1089 + $0x20] sm:$0xff]
        %v1095 = vld [vmem:[%s1089 + $0x28] sm:$0xff]
        %v1096 = vld [vmem:[%s1089 + $0x30] sm:$0xff]
        %v1097 = vld [vmem:[%s1089 + $0x38] sm:$0xff]
        %1099 = vrot.lane.b32.xlu0 %v1063, 127
        %v1100 = vpop.permute.xlu0 %1099
        %v1102 = vmul.f32 %v1090, %v1100
        %v1103 = vmul.f32 %v1091, %v1100
        %v1104 = vmul.f32 %v1092, %v1100
        %v1105 = vmul.f32 %v1093, %v1100
        %v1106 = vmul.f32 %v1094, %v1100
        %v1107 = vmul.f32 %v1095, %v1100
        %v1108 = vmul.f32 %v1096, %v1100
        %v1109 = vmul.f32 %v1097, %v1100
        %v1110 = vadd.f32 %v1081, %v1102
        %v1111 = vadd.f32 %v1082, %v1103
        %v1112 = vadd.f32 %v1083, %v1104
        %v1113 = vadd.f32 %v1084, %v1105
        %v1114 = vadd.f32 %v1085, %v1106
        %v1115 = vadd.f32 %v1086, %v1107
        %v1116 = vadd.f32 %v1087, %v1108
        %v1117 = vadd.f32 %v1088, %v1109
        %s1118 = scalar_lea.vmem %s1, 2048
        %v1119 = vld [vmem:[%s1118] sm:$0xff]
        %v1120 = vld [vmem:[%s1118 + $0x8] sm:$0xff]
        %v1121 = vld [vmem:[%s1118 + $0x10] sm:$0xff]
        %v1122 = vld [vmem:[%s1118 + $0x18] sm:$0xff]
        %v1123 = vld [vmem:[%s1118 + $0x20] sm:$0xff]
        %v1124 = vld [vmem:[%s1118 + $0x28] sm:$0xff]
        %v1125 = vld [vmem:[%s1118 + $0x30] sm:$0xff]
        %v1126 = vld [vmem:[%s1118 + $0x38] sm:$0xff]
        %1127 = vrot.lane.b32.xlu0 %v1063, 126
        %v1128 = vpop.permute.xlu0 %1127
        %v1130 = vmul.f32 %v1119, %v1128
        %v1131 = vmul.f32 %v1120, %v1128
        %v1132 = vmul.f32 %v1121, %v1128
        %v1133 = vmul.f32 %v1122, %v1128
        %v1134 = vmul.f32 %v1123, %v1128
        %v1135 = vmul.f32 %v1124, %v1128
        %v1136 = vmul.f32 %v1125, %v1128
        %v1137 = vmul.f32 %v1126, %v1128
        %v1138 = vadd.f32 %v1110, %v1130
        %v1139 = vadd.f32 %v1111, %v1131
        %v1140 = vadd.f32 %v1112, %v1132
        %v1141 = vadd.f32 %v1113, %v1133
        %v1142 = vadd.f32 %v1114, %v1134
        %v1143 = vadd.f32 %v1115, %v1135
        %v1144 = vadd.f32 %v1116, %v1136
        %v1145 = vadd.f32 %v1117, %v1137
        %v1146 = vld [vmem:[%s979 + $0x2] sm:$0xff]
        %s1147 = scalar_lea.vmem %s1, 2112
        %v1148 = vld [vmem:[%s1147] sm:$0xff]
        %v1149 = vld [vmem:[%s1147 + $0x8] sm:$0xff]
        %v1150 = vld [vmem:[%s1147 + $0x10] sm:$0xff]
        %v1151 = vld [vmem:[%s1147 + $0x18] sm:$0xff]
        %v1152 = vld [vmem:[%s1147 + $0x20] sm:$0xff]
        %v1153 = vld [vmem:[%s1147 + $0x28] sm:$0xff]
        %v1154 = vld [vmem:[%s1147 + $0x30] sm:$0xff]
        %v1155 = vld [vmem:[%s1147 + $0x38] sm:$0xff]
        %v1156 = vmul.f32 %v1148, %v1146
        %v1157 = vmul.f32 %v1149, %v1146
        %v1158 = vmul.f32 %v1150, %v1146
        %v1159 = vmul.f32 %v1151, %v1146
        %v1160 = vmul.f32 %v1152, %v1146
        %v1161 = vmul.f32 %v1153, %v1146
        %v1162 = vmul.f32 %v1154, %v1146
        %v1163 = vmul.f32 %v1155, %v1146
        %v1164 = vadd.f32 %v1138, %v1156
        %v1165 = vadd.f32 %v1139, %v1157
        %v1166 = vadd.f32 %v1140, %v1158
        %v1167 = vadd.f32 %v1141, %v1159
        %v1168 = vadd.f32 %v1142, %v1160
        %v1169 = vadd.f32 %v1143, %v1161
        %v1170 = vadd.f32 %v1144, %v1162
        %v1171 = vadd.f32 %v1145, %v1163
        %s1172 = scalar_lea.vmem %s1, 2176
        %v1173 = vld [vmem:[%s1172] sm:$0xff]
        %v1174 = vld [vmem:[%s1172 + $0x8] sm:$0xff]
        %v1175 = vld [vmem:[%s1172 + $0x10] sm:$0xff]
        %v1176 = vld [vmem:[%s1172 + $0x18] sm:$0xff]
        %v1177 = vld [vmem:[%s1172 + $0x20] sm:$0xff]
        %v1178 = vld [vmem:[%s1172 + $0x28] sm:$0xff]
        %v1179 = vld [vmem:[%s1172 + $0x30] sm:$0xff]
        %v1180 = vld [vmem:[%s1172 + $0x38] sm:$0xff]
        %1182 = vrot.lane.b32.xlu0 %v1146, 127
        %v1183 = vpop.permute.xlu0 %1182
        %v1185 = vmul.f32 %v1173, %v1183
        %v1186 = vmul.f32 %v1174, %v1183
        %v1187 = vmul.f32 %v1175, %v1183
        %v1188 = vmul.f32 %v1176, %v1183
        %v1189 = vmul.f32 %v1177, %v1183
        %v1190 = vmul.f32 %v1178, %v1183
        %v1191 = vmul.f32 %v1179, %v1183
        %v1192 = vmul.f32 %v1180, %v1183
        %v1193 = vadd.f32 %v1164, %v1185
        %v1194 = vadd.f32 %v1165, %v1186
        %v1195 = vadd.f32 %v1166, %v1187
        %v1196 = vadd.f32 %v1167, %v1188
        %v1197 = vadd.f32 %v1168, %v1189
        %v1198 = vadd.f32 %v1169, %v1190
        %v1199 = vadd.f32 %v1170, %v1191
        %v1200 = vadd.f32 %v1171, %v1192
        %s1201 = scalar_lea.vmem %s1, 2240
        %v1202 = vld [vmem:[%s1201] sm:$0xff]
        %v1203 = vld [vmem:[%s1201 + $0x8] sm:$0xff]
        %v1204 = vld [vmem:[%s1201 + $0x10] sm:$0xff]
        %v1205 = vld [vmem:[%s1201 + $0x18] sm:$0xff]
        %v1206 = vld [vmem:[%s1201 + $0x20] sm:$0xff]
        %v1207 = vld [vmem:[%s1201 + $0x28] sm:$0xff]
        %v1208 = vld [vmem:[%s1201 + $0x30] sm:$0xff]
        %v1209 = vld [vmem:[%s1201 + $0x38] sm:$0xff]
        %1210 = vrot.lane.b32.xlu0 %v1146, 126
        %v1211 = vpop.permute.xlu0 %1210
        %v1213 = vmul.f32 %v1202, %v1211
        %v1214 = vmul.f32 %v1203, %v1211
        %v1215 = vmul.f32 %v1204, %v1211
        %v1216 = vmul.f32 %v1205, %v1211
        %v1217 = vmul.f32 %v1206, %v1211
        %v1218 = vmul.f32 %v1207, %v1211
        %v1219 = vmul.f32 %v1208, %v1211
        %v1220 = vmul.f32 %v1209, %v1211
        %v1221 = vadd.f32 %v1193, %v1213
        %v1222 = vadd.f32 %v1194, %v1214
        %v1223 = vadd.f32 %v1195, %v1215
        %v1224 = vadd.f32 %v1196, %v1216
        %v1225 = vadd.f32 %v1197, %v1217
        %v1226 = vadd.f32 %v1198, %v1218
        %v1227 = vadd.f32 %v1199, %v1219
        %v1228 = vadd.f32 %v1200, %v1220
        %v1229 = vmax.f32 %v1221, 0.0
        %v1230 = vmax.f32 %v1222, 0.0
        %v1231 = vmax.f32 %v1223, 0.0
        %v1232 = vmax.f32 %v1224, 0.0
        %v1233 = vmax.f32 %v1225, 0.0
        %v1234 = vmax.f32 %v1226, 0.0
        %v1235 = vmax.f32 %v1227, 0.0
        %v1236 = vmax.f32 %v1228, 0.0
        %1245 = vrot.lane.b32.xlu0 %v1229, 1
        %v1246 = vpop.permute.xlu0 %1245
        %1247 = vrot.lane.b32.xlu0 %v1230, 1
        %v1248 = vpop.permute.xlu0 %1247
        %1249 = vrot.lane.b32.xlu0 %v1231, 1
        %v1250 = vpop.permute.xlu0 %1249
        %1251 = vrot.lane.b32.xlu0 %v1232, 1
        %v1252 = vpop.permute.xlu0 %1251
        %1253 = vrot.lane.b32.xlu0 %v1233, 1
        %v1254 = vpop.permute.xlu0 %1253
        %1255 = vrot.lane.b32.xlu0 %v1234, 1
        %v1256 = vpop.permute.xlu0 %1255
        %1257 = vrot.lane.b32.xlu0 %v1235, 1
        %v1258 = vpop.permute.xlu0 %1257
        %1259 = vrot.lane.b32.xlu0 %v1236, 1
        %v1260 = vpop.permute.xlu0 %1259
        %vm1269 = vcmask 72712
        %1270 = vst.msk [vmem:[#allocation2 + $0x1] sm:$0xff] %vm1269, %v1246
        %1271 = vst.msk [vmem:[#allocation2 + $0x11] sm:$0xff] %vm1269, %v1248
        %1272 = vst.msk [vmem:[#allocation2 + $0x21] sm:$0xff] %vm1269, %v1250
        %1273 = vst.msk [vmem:[#allocation2 + $0x31] sm:$0xff] %vm1269, %v1252
        %1274 = vst.msk [vmem:[#allocation2 + $0x41] sm:$0xff] %vm1269, %v1254
        %1275 = vst.msk [vmem:[#allocation2 + $0x51] sm:$0xff] %vm1269, %v1256
        %1276 = vst.msk [vmem:[#allocation2 + $0x61] sm:$0xff] %vm1269, %v1258
        %1277 = vst.msk [vmem:[#allocation2 + $0x71] sm:$0xff] %vm1269, %v1260
        %vm1278 = vcmask 65544
        %1279 = vst.msk [vmem:[#allocation2] sm:$0x1] %vm1278, %v1246
        %1280 = vst.msk [vmem:[#allocation2 + $0x10] sm:$0x1] %vm1278, %v1248
        %1281 = vst.msk [vmem:[#allocation2 + $0x20] sm:$0x1] %vm1278, %v1250
        %1282 = vst.msk [vmem:[#allocation2 + $0x30] sm:$0x1] %vm1278, %v1252
        %1283 = vst.msk [vmem:[#allocation2 + $0x40] sm:$0x1] %vm1278, %v1254
        %1284 = vst.msk [vmem:[#allocation2 + $0x50] sm:$0x1] %vm1278, %v1256
        %1285 = vst.msk [vmem:[#allocation2 + $0x60] sm:$0x1] %vm1278, %v1258
        %1286 = vst.msk [vmem:[#allocation2 + $0x70] sm:$0x1] %vm1278, %v1260
        %vm1287 = vcmask 72719
        %1288 = vst.msk [vmem:[#allocation2 + $0x2] sm:$0x80] %vm1287, %v1246
        %1289 = vst.msk [vmem:[#allocation2 + $0x12] sm:$0x80] %vm1287, %v1248
        %1290 = vst.msk [vmem:[#allocation2 + $0x22] sm:$0x80] %vm1287, %v1250
        %1291 = vst.msk [vmem:[#allocation2 + $0x32] sm:$0x80] %vm1287, %v1252
        %1292 = vst.msk [vmem:[#allocation2 + $0x42] sm:$0x80] %vm1287, %v1254
        %1293 = vst.msk [vmem:[#allocation2 + $0x52] sm:$0x80] %vm1287, %v1256
        %1294 = vst.msk [vmem:[#allocation2 + $0x62] sm:$0x80] %vm1287, %v1258
        %1295 = vst.msk [vmem:[#allocation2 + $0x72] sm:$0x80] %vm1287, %v1260
        %v1296 = vld [vmem:[#allocation2] sm:$0xff]
        %v1297 = vld [vmem:[#allocation2 + $0x8] sm:$0x3]
        %v1298 = vld [vmem:[#allocation2 + $0x10] sm:$0xff]
        %v1299 = vld [vmem:[#allocation2 + $0x18] sm:$0x3]
        %v1300 = vld [vmem:[#allocation2 + $0x20] sm:$0xff]
        %v1301 = vld [vmem:[#allocation2 + $0x28] sm:$0x3]
        %v1302 = vld [vmem:[#allocation2 + $0x30] sm:$0xff]
        %v1303 = vld [vmem:[#allocation2 + $0x38] sm:$0x3]
        %v1304 = vld [vmem:[#allocation2 + $0x40] sm:$0xff]
        %v1305 = vld [vmem:[#allocation2 + $0x48] sm:$0x3]
        %v1306 = vld [vmem:[#allocation2 + $0x50] sm:$0xff]
        %v1307 = vld [vmem:[#allocation2 + $0x58] sm:$0x3]
        %v1308 = vld [vmem:[#allocation2 + $0x60] sm:$0xff]
        %v1309 = vld [vmem:[#allocation2 + $0x68] sm:$0x3]
        %v1310 = vld [vmem:[#allocation2 + $0x70] sm:$0xff]
        %v1311 = vld [vmem:[#allocation2 + $0x78] sm:$0x3]
        %1328 = vrot.lane.b32.xlu0 %v1296, 127
        %v1329 = vpop.permute.xlu0 %1328
        %1330 = vrot.lane.b32.xlu0 %v1297, 127
        %v1331 = vpop.permute.xlu0 %1330
        %1332 = vrot.lane.b32.xlu0 %v1298, 127
        %v1333 = vpop.permute.xlu0 %1332
        %1334 = vrot.lane.b32.xlu0 %v1299, 127
        %v1335 = vpop.permute.xlu0 %1334
        %1336 = vrot.lane.b32.xlu0 %v1300, 127
        %v1337 = vpop.permute.xlu0 %1336
        %1338 = vrot.lane.b32.xlu0 %v1301, 127
        %v1339 = vpop.permute.xlu0 %1338
        %1340 = vrot.lane.b32.xlu0 %v1302, 127
        %v1341 = vpop.permute.xlu0 %1340
        %1342 = vrot.lane.b32.xlu0 %v1303, 127
        %v1343 = vpop.permute.xlu0 %1342
        %1344 = vrot.lane.b32.xlu0 %v1304, 127
        %v1345 = vpop.permute.xlu0 %1344
        %1346 = vrot.lane.b32.xlu0 %v1305, 127
        %v1347 = vpop.permute.xlu0 %1346
        %1348 = vrot.lane.b32.xlu0 %v1306, 127
        %v1349 = vpop.permute.xlu0 %1348
        %1350 = vrot.lane.b32.xlu0 %v1307, 127
        %v1351 = vpop.permute.xlu0 %1350
        %1352 = vrot.lane.b32.xlu0 %v1308, 127
        %v1353 = vpop.permute.xlu0 %1352
        %1354 = vrot.lane.b32.xlu0 %v1309, 127
        %v1355 = vpop.permute.xlu0 %1354
        %1356 = vrot.lane.b32.xlu0 %v1310, 127
        %v1357 = vpop.permute.xlu0 %1356
        %1358 = vrot.lane.b32.xlu0 %v1311, 127
        %v1359 = vpop.permute.xlu0 %1358
        %vm1376 = vcmask 7168
        %1377 = vst.msk [vmem:[#allocation2] sm:$0xff] %vm1376, %v1329
        %vm1378 = vcmask 1024
        %1379 = vst.msk [vmem:[#allocation2 + $0x8] sm:$0x3] %vm1378, %v1331
        %1380 = vst.msk [vmem:[#allocation2 + $0x10] sm:$0xff] %vm1376, %v1333
        %1381 = vst.msk [vmem:[#allocation2 + $0x18] sm:$0x3] %vm1378, %v1335
        %1382 = vst.msk [vmem:[#allocation2 + $0x20] sm:$0xff] %vm1376, %v1337
        %1383 = vst.msk [vmem:[#allocation2 + $0x28] sm:$0x3] %vm1378, %v1339
        %1384 = vst.msk [vmem:[#allocation2 + $0x30] sm:$0xff] %vm1376, %v1341
        %1385 = vst.msk [vmem:[#allocation2 + $0x38] sm:$0x3] %vm1378, %v1343
        %1386 = vst.msk [vmem:[#allocation2 + $0x40] sm:$0xff] %vm1376, %v1345
        %1387 = vst.msk [vmem:[#allocation2 + $0x48] sm:$0x3] %vm1378, %v1347
        %1388 = vst.msk [vmem:[#allocation2 + $0x50] sm:$0xff] %vm1376, %v1349
        %1389 = vst.msk [vmem:[#allocation2 + $0x58] sm:$0x3] %vm1378, %v1351
        %1390 = vst.msk [vmem:[#allocation2 + $0x60] sm:$0xff] %vm1376, %v1353
        %1391 = vst.msk [vmem:[#allocation2 + $0x68] sm:$0x3] %vm1378, %v1355
        %1392 = vst.msk [vmem:[#allocation2 + $0x70] sm:$0xff] %vm1376, %v1357
        %1393 = vst.msk [vmem:[#allocation2 + $0x78] sm:$0x3] %vm1378, %v1359
        %v1394 = vld [vmem:[#allocation2] sm:$0xff]
        %v1395 = vld [vmem:[#allocation2 + $0x8] sm:$0x3]
        %v1396 = vld [vmem:[#allocation2 + $0x10] sm:$0xff]
        %v1397 = vld [vmem:[#allocation2 + $0x18] sm:$0x3]
        %v1398 = vld [vmem:[#allocation2 + $0x20] sm:$0xff]
        %v1399 = vld [vmem:[#allocation2 + $0x28] sm:$0x3]
        %v1400 = vld [vmem:[#allocation2 + $0x30] sm:$0xff]
        %v1401 = vld [vmem:[#allocation2 + $0x38] sm:$0x3]
        %v1402 = vld [vmem:[#allocation2 + $0x40] sm:$0xff]
        %v1403 = vld [vmem:[#allocation2 + $0x48] sm:$0x3]
        %v1404 = vld [vmem:[#allocation2 + $0x50] sm:$0xff]
        %v1405 = vld [vmem:[#allocation2 + $0x58] sm:$0x3]
        %v1406 = vld [vmem:[#allocation2 + $0x60] sm:$0xff]
        %v1407 = vld [vmem:[#allocation2 + $0x68] sm:$0x3]
        %v1408 = vld [vmem:[#allocation2 + $0x70] sm:$0xff]
        %v1409 = vld [vmem:[#allocation2 + $0x78] sm:$0x3]
        %1426 = vrot.lane.b32.xlu0 %v1394, 1
        %v1427 = vpop.permute.xlu0 %1426
        %1428 = vrot.lane.b32.xlu0 %v1395, 1
        %v1429 = vpop.permute.xlu0 %1428
        %1430 = vrot.lane.b32.xlu0 %v1396, 1
        %v1431 = vpop.permute.xlu0 %1430
        %1432 = vrot.lane.b32.xlu0 %v1397, 1
        %v1433 = vpop.permute.xlu0 %1432
        %1434 = vrot.lane.b32.xlu0 %v1398, 1
        %v1435 = vpop.permute.xlu0 %1434
        %1436 = vrot.lane.b32.xlu0 %v1399, 1
        %v1437 = vpop.permute.xlu0 %1436
        %1438 = vrot.lane.b32.xlu0 %v1400, 1
        %v1439 = vpop.permute.xlu0 %1438
        %1440 = vrot.lane.b32.xlu0 %v1401, 1
        %v1441 = vpop.permute.xlu0 %1440
        %1442 = vrot.lane.b32.xlu0 %v1402, 1
        %v1443 = vpop.permute.xlu0 %1442
        %1444 = vrot.lane.b32.xlu0 %v1403, 1
        %v1445 = vpop.permute.xlu0 %1444
        %1446 = vrot.lane.b32.xlu0 %v1404, 1
        %v1447 = vpop.permute.xlu0 %1446
        %1448 = vrot.lane.b32.xlu0 %v1405, 1
        %v1449 = vpop.permute.xlu0 %1448
        %1450 = vrot.lane.b32.xlu0 %v1406, 1
        %v1451 = vpop.permute.xlu0 %1450
        %1452 = vrot.lane.b32.xlu0 %v1407, 1
        %v1453 = vpop.permute.xlu0 %1452
        %1454 = vrot.lane.b32.xlu0 %v1408, 1
        %v1455 = vpop.permute.xlu0 %1454
        %1456 = vrot.lane.b32.xlu0 %v1409, 1
        %v1457 = vpop.permute.xlu0 %1456
        %vm1474 = vcmask 80968
        %1475 = vst.msk [vmem:[#allocation2] sm:$0xff] %vm1474, %v1427
        %vm1476 = vcmask 74824
        %1477 = vst.msk [vmem:[#allocation2 + $0x8] sm:$0x3] %vm1476, %v1429
        %1478 = vst.msk [vmem:[#allocation2 + $0x10] sm:$0xff] %vm1474, %v1431
        %1479 = vst.msk [vmem:[#allocation2 + $0x18] sm:$0x3] %vm1476, %v1433
        %1480 = vst.msk [vmem:[#allocation2 + $0x20] sm:$0xff] %vm1474, %v1435
        %1481 = vst.msk [vmem:[#allocation2 + $0x28] sm:$0x3] %vm1476, %v1437
        %1482 = vst.msk [vmem:[#allocation2 + $0x30] sm:$0xff] %vm1474, %v1439
        %1483 = vst.msk [vmem:[#allocation2 + $0x38] sm:$0x3] %vm1476, %v1441
        %1484 = vst.msk [vmem:[#allocation2 + $0x40] sm:$0xff] %vm1474, %v1443
        %1485 = vst.msk [vmem:[#allocation2 + $0x48] sm:$0x3] %vm1476, %v1445
        %1486 = vst.msk [vmem:[#allocation2 + $0x50] sm:$0xff] %vm1474, %v1447
        %1487 = vst.msk [vmem:[#allocation2 + $0x58] sm:$0x3] %vm1476, %v1449
        %1488 = vst.msk [vmem:[#allocation2 + $0x60] sm:$0xff] %vm1474, %v1451
        %1489 = vst.msk [vmem:[#allocation2 + $0x68] sm:$0x3] %vm1476, %v1453
        %1490 = vst.msk [vmem:[#allocation2 + $0x70] sm:$0xff] %vm1474, %v1455
        %1491 = vst.msk [vmem:[#allocation2 + $0x78] sm:$0x3] %vm1476, %v1457
        %v1492 = vld [vmem:[%s4] sm:$0xff]
        %v1493 = vld [vmem:[%s4 + $0x8] sm:$0xff]
        %v1494 = vld [vmem:[%s4 + $0x10] sm:$0xff]
        %v1495 = vld [vmem:[%s4 + $0x18] sm:$0xff]
        %v1496 = vld [vmem:[%s4 + $0x20] sm:$0xff]
        %v1497 = vld [vmem:[%s4 + $0x28] sm:$0xff]
        %v1498 = vld [vmem:[%s4 + $0x30] sm:$0xff]
        %v1499 = vld [vmem:[%s4 + $0x38] sm:$0xff]
        %v1500 = vld [vmem:[#allocation2] sm:$0xff]
        %v1501 = vld [vmem:[%s3] sm:$0xff]
        %v1502 = vld [vmem:[%s3 + $0x8] sm:$0xff]
        %v1503 = vld [vmem:[%s3 + $0x10] sm:$0xff]
        %v1504 = vld [vmem:[%s3 + $0x18] sm:$0xff]
        %v1505 = vld [vmem:[%s3 + $0x20] sm:$0xff]
        %v1506 = vld [vmem:[%s3 + $0x28] sm:$0xff]
        %v1507 = vld [vmem:[%s3 + $0x30] sm:$0xff]
        %v1508 = vld [vmem:[%s3 + $0x38] sm:$0xff]
        %v1509 = vmul.f32 %v1501, %v1500
        %v1510 = vmul.f32 %v1502, %v1500
        %v1511 = vmul.f32 %v1503, %v1500
        %v1512 = vmul.f32 %v1504, %v1500
        %v1513 = vmul.f32 %v1505, %v1500
        %v1514 = vmul.f32 %v1506, %v1500
        %v1515 = vmul.f32 %v1507, %v1500
        %v1516 = vmul.f32 %v1508, %v1500
        %v1517 = vadd.f32 %v1492, %v1509
        %v1518 = vadd.f32 %v1493, %v1510
        %v1519 = vadd.f32 %v1494, %v1511
        %v1520 = vadd.f32 %v1495, %v1512
        %v1521 = vadd.f32 %v1496, %v1513
        %v1522 = vadd.f32 %v1497, %v1514
        %v1523 = vadd.f32 %v1498, %v1515
        %v1524 = vadd.f32 %v1499, %v1516
        %s1525 = scalar_lea.vmem %s3, 64
        %v1526 = vld [vmem:[%s1525] sm:$0xff]
        %v1527 = vld [vmem:[%s1525 + $0x8] sm:$0xff]
        %v1528 = vld [vmem:[%s1525 + $0x10] sm:$0xff]
        %v1529 = vld [vmem:[%s1525 + $0x18] sm:$0xff]
        %v1530 = vld [vmem:[%s1525 + $0x20] sm:$0xff]
        %v1531 = vld [vmem:[%s1525 + $0x28] sm:$0xff]
        %v1532 = vld [vmem:[%s1525 + $0x30] sm:$0xff]
        %v1533 = vld [vmem:[%s1525 + $0x38] sm:$0xff]
        %1535 = vrot.lane.b32.xlu0 %v1500, 127
        %v1536 = vpop.permute.xlu0 %1535
        %v1538 = vmul.f32 %v1526, %v1536
        %v1539 = vmul.f32 %v1527, %v1536
        %v1540 = vmul.f32 %v1528, %v1536
        %v1541 = vmul.f32 %v1529, %v1536
        %v1542 = vmul.f32 %v1530, %v1536
        %v1543 = vmul.f32 %v1531, %v1536
        %v1544 = vmul.f32 %v1532, %v1536
        %v1545 = vmul.f32 %v1533, %v1536
        %v1546 = vadd.f32 %v1517, %v1538
        %v1547 = vadd.f32 %v1518, %v1539
        %v1548 = vadd.f32 %v1519, %v1540
        %v1549 = vadd.f32 %v1520, %v1541
        %v1550 = vadd.f32 %v1521, %v1542
        %v1551 = vadd.f32 %v1522, %v1543
        %v1552 = vadd.f32 %v1523, %v1544
        %v1553 = vadd.f32 %v1524, %v1545
        %s1554 = scalar_lea.vmem %s3, 128
        %v1555 = vld [vmem:[%s1554] sm:$0xff]
        %v1556 = vld [vmem:[%s1554 + $0x8] sm:$0xff]
        %v1557 = vld [vmem:[%s1554 + $0x10] sm:$0xff]
        %v1558 = vld [vmem:[%s1554 + $0x18] sm:$0xff]
        %v1559 = vld [vmem:[%s1554 + $0x20] sm:$0xff]
        %v1560 = vld [vmem:[%s1554 + $0x28] sm:$0xff]
        %v1561 = vld [vmem:[%s1554 + $0x30] sm:$0xff]
        %v1562 = vld [vmem:[%s1554 + $0x38] sm:$0xff]
        %1563 = vrot.lane.b32.xlu0 %v1500, 126
        %v1564 = vpop.permute.xlu0 %1563
        %v1566 = vmul.f32 %v1555, %v1564
        %v1567 = vmul.f32 %v1556, %v1564
        %v1568 = vmul.f32 %v1557, %v1564
        %v1569 = vmul.f32 %v1558, %v1564
        %v1570 = vmul.f32 %v1559, %v1564
        %v1571 = vmul.f32 %v1560, %v1564
        %v1572 = vmul.f32 %v1561, %v1564
        %v1573 = vmul.f32 %v1562, %v1564
        %v1574 = vadd.f32 %v1546, %v1566
        %v1575 = vadd.f32 %v1547, %v1567
        %v1576 = vadd.f32 %v1548, %v1568
        %v1577 = vadd.f32 %v1549, %v1569
        %v1578 = vadd.f32 %v1550, %v1570
        %v1579 = vadd.f32 %v1551, %v1571
        %v1580 = vadd.f32 %v1552, %v1572
        %v1581 = vadd.f32 %v1553, %v1573
        %v1582 = vld [vmem:[#allocation2 + $0x1] sm:$0xff]
        %s1583 = scalar_lea.vmem %s3, 192
        %v1584 = vld [vmem:[%s1583] sm:$0xff]
        %v1585 = vld [vmem:[%s1583 + $0x8] sm:$0xff]
        %v1586 = vld [vmem:[%s1583 + $0x10] sm:$0xff]
        %v1587 = vld [vmem:[%s1583 + $0x18] sm:$0xff]
        %v1588 = vld [vmem:[%s1583 + $0x20] sm:$0xff]
        %v1589 = vld [vmem:[%s1583 + $0x28] sm:$0xff]
        %v1590 = vld [vmem:[%s1583 + $0x30] sm:$0xff]
        %v1591 = vld [vmem:[%s1583 + $0x38] sm:$0xff]
        %v1592 = vmul.f32 %v1584, %v1582
        %v1593 = vmul.f32 %v1585, %v1582
        %v1594 = vmul.f32 %v1586, %v1582
        %v1595 = vmul.f32 %v1587, %v1582
        %v1596 = vmul.f32 %v1588, %v1582
        %v1597 = vmul.f32 %v1589, %v1582
        %v1598 = vmul.f32 %v1590, %v1582
        %v1599 = vmul.f32 %v1591, %v1582
        %v1600 = vadd.f32 %v1574, %v1592
        %v1601 = vadd.f32 %v1575, %v1593
        %v1602 = vadd.f32 %v1576, %v1594
        %v1603 = vadd.f32 %v1577, %v1595
        %v1604 = vadd.f32 %v1578, %v1596
        %v1605 = vadd.f32 %v1579, %v1597
        %v1606 = vadd.f32 %v1580, %v1598
        %v1607 = vadd.f32 %v1581, %v1599
        %s1608 = scalar_lea.vmem %s3, 256
        %v1609 = vld [vmem:[%s1608] sm:$0xff]
        %v1610 = vld [vmem:[%s1608 + $0x8] sm:$0xff]
        %v1611 = vld [vmem:[%s1608 + $0x10] sm:$0xff]
        %v1612 = vld [vmem:[%s1608 + $0x18] sm:$0xff]
        %v1613 = vld [vmem:[%s1608 + $0x20] sm:$0xff]
        %v1614 = vld [vmem:[%s1608 + $0x28] sm:$0xff]
        %v1615 = vld [vmem:[%s1608 + $0x30] sm:$0xff]
        %v1616 = vld [vmem:[%s1608 + $0x38] sm:$0xff]
        %1618 = vrot.lane.b32.xlu0 %v1582, 127
        %v1619 = vpop.permute.xlu0 %1618
        %v1621 = vmul.f32 %v1609, %v1619
        %v1622 = vmul.f32 %v1610, %v1619
        %v1623 = vmul.f32 %v1611, %v1619
        %v1624 = vmul.f32 %v1612, %v1619
        %v1625 = vmul.f32 %v1613, %v1619
        %v1626 = vmul.f32 %v1614, %v1619
        %v1627 = vmul.f32 %v1615, %v1619
        %v1628 = vmul.f32 %v1616, %v1619
        %v1629 = vadd.f32 %v1600, %v1621
        %v1630 = vadd.f32 %v1601, %v1622
        %v1631 = vadd.f32 %v1602, %v1623
        %v1632 = vadd.f32 %v1603, %v1624
        %v1633 = vadd.f32 %v1604, %v1625
        %v1634 = vadd.f32 %v1605, %v1626
        %v1635 = vadd.f32 %v1606, %v1627
        %v1636 = vadd.f32 %v1607, %v1628
        %s1637 = scalar_lea.vmem %s3, 320
        %v1638 = vld [vmem:[%s1637] sm:$0xff]
        %v1639 = vld [vmem:[%s1637 + $0x8] sm:$0xff]
        %v1640 = vld [vmem:[%s1637 + $0x10] sm:$0xff]
        %v1641 = vld [vmem:[%s1637 + $0x18] sm:$0xff]
        %v1642 = vld [vmem:[%s1637 + $0x20] sm:$0xff]
        %v1643 = vld [vmem:[%s1637 + $0x28] sm:$0xff]
        %v1644 = vld [vmem:[%s1637 + $0x30] sm:$0xff]
        %v1645 = vld [vmem:[%s1637 + $0x38] sm:$0xff]
        %1646 = vrot.lane.b32.xlu0 %v1582, 126
        %v1647 = vpop.permute.xlu0 %1646
        %v1649 = vmul.f32 %v1638, %v1647
        %v1650 = vmul.f32 %v1639, %v1647
        %v1651 = vmul.f32 %v1640, %v1647
        %v1652 = vmul.f32 %v1641, %v1647
        %v1653 = vmul.f32 %v1642, %v1647
        %v1654 = vmul.f32 %v1643, %v1647
        %v1655 = vmul.f32 %v1644, %v1647
        %v1656 = vmul.f32 %v1645, %v1647
        %v1657 = vadd.f32 %v1629, %v1649
        %v1658 = vadd.f32 %v1630, %v1650
        %v1659 = vadd.f32 %v1631, %v1651
        %v1660 = vadd.f32 %v1632, %v1652
        %v1661 = vadd.f32 %v1633, %v1653
        %v1662 = vadd.f32 %v1634, %v1654
        %v1663 = vadd.f32 %v1635, %v1655
        %v1664 = vadd.f32 %v1636, %v1656
        %v1665 = vld [vmem:[#allocation2 + $0x2] sm:$0xff]
        %s1666 = scalar_lea.vmem %s3, 384
        %v1667 = vld [vmem:[%s1666] sm:$0xff]
        %v1668 = vld [vmem:[%s1666 + $0x8] sm:$0xff]
        %v1669 = vld [vmem:[%s1666 + $0x10] sm:$0xff]
        %v1670 = vld [vmem:[%s1666 + $0x18] sm:$0xff]
        %v1671 = vld [vmem:[%s1666 + $0x20] sm:$0xff]
        %v1672 = vld [vmem:[%s1666 + $0x28] sm:$0xff]
        %v1673 = vld [vmem:[%s1666 + $0x30] sm:$0xff]
        %v1674 = vld [vmem:[%s1666 + $0x38] sm:$0xff]
        %v1675 = vmul.f32 %v1667, %v1665
        %v1676 = vmul.f32 %v1668, %v1665
        %v1677 = vmul.f32 %v1669, %v1665
        %v1678 = vmul.f32 %v1670, %v1665
        %v1679 = vmul.f32 %v1671, %v1665
        %v1680 = vmul.f32 %v1672, %v1665
        %v1681 = vmul.f32 %v1673, %v1665
        %v1682 = vmul.f32 %v1674, %v1665
        %v1683 = vadd.f32 %v1657, %v1675
        %v1684 = vadd.f32 %v1658, %v1676
        %v1685 = vadd.f32 %v1659, %v1677
        %v1686 = vadd.f32 %v1660, %v1678
        %v1687 = vadd.f32 %v1661, %v1679
        %v1688 = vadd.f32 %v1662, %v1680
        %v1689 = vadd.f32 %v1663, %v1681
        %v1690 = vadd.f32 %v1664, %v1682
        %s1691 = scalar_lea.vmem %s3, 448
        %v1692 = vld [vmem:[%s1691] sm:$0xff]
        %v1693 = vld [vmem:[%s1691 + $0x8] sm:$0xff]
        %v1694 = vld [vmem:[%s1691 + $0x10] sm:$0xff]
        %v1695 = vld [vmem:[%s1691 + $0x18] sm:$0xff]
        %v1696 = vld [vmem:[%s1691 + $0x20] sm:$0xff]
        %v1697 = vld [vmem:[%s1691 + $0x28] sm:$0xff]
        %v1698 = vld [vmem:[%s1691 + $0x30] sm:$0xff]
        %v1699 = vld [vmem:[%s1691 + $0x38] sm:$0xff]
        %1701 = vrot.lane.b32.xlu0 %v1665, 127
        %v1702 = vpop.permute.xlu0 %1701
        %v1704 = vmul.f32 %v1692, %v1702
        %v1705 = vmul.f32 %v1693, %v1702
        %v1706 = vmul.f32 %v1694, %v1702
        %v1707 = vmul.f32 %v1695, %v1702
        %v1708 = vmul.f32 %v1696, %v1702
        %v1709 = vmul.f32 %v1697, %v1702
        %v1710 = vmul.f32 %v1698, %v1702
        %v1711 = vmul.f32 %v1699, %v1702
        %v1712 = vadd.f32 %v1683, %v1704
        %v1713 = vadd.f32 %v1684, %v1705
        %v1714 = vadd.f32 %v1685, %v1706
        %v1715 = vadd.f32 %v1686, %v1707
        %v1716 = vadd.f32 %v1687, %v1708
        %v1717 = vadd.f32 %v1688, %v1709
        %v1718 = vadd.f32 %v1689, %v1710
        %v1719 = vadd.f32 %v1690, %v1711
        %s1720 = scalar_lea.vmem %s3, 512
        %v1721 = vld [vmem:[%s1720] sm:$0xff]
        %v1722 = vld [vmem:[%s1720 + $0x8] sm:$0xff]
        %v1723 = vld [vmem:[%s1720 + $0x10] sm:$0xff]
        %v1724 = vld [vmem:[%s1720 + $0x18] sm:$0xff]
        %v1725 = vld [vmem:[%s1720 + $0x20] sm:$0xff]
        %v1726 = vld [vmem:[%s1720 + $0x28] sm:$0xff]
        %v1727 = vld [vmem:[%s1720 + $0x30] sm:$0xff]
        %v1728 = vld [vmem:[%s1720 + $0x38] sm:$0xff]
        %1729 = vrot.lane.b32.xlu0 %v1665, 126
        %v1730 = vpop.permute.xlu0 %1729
        %v1732 = vmul.f32 %v1721, %v1730
        %v1733 = vmul.f32 %v1722, %v1730
        %v1734 = vmul.f32 %v1723, %v1730
        %v1735 = vmul.f32 %v1724, %v1730
        %v1736 = vmul.f32 %v1725, %v1730
        %v1737 = vmul.f32 %v1726, %v1730
        %v1738 = vmul.f32 %v1727, %v1730
        %v1739 = vmul.f32 %v1728, %v1730
        %v1740 = vadd.f32 %v1712, %v1732
        %v1741 = vadd.f32 %v1713, %v1733
        %v1742 = vadd.f32 %v1714, %v1734
        %v1743 = vadd.f32 %v1715, %v1735
        %v1744 = vadd.f32 %v1716, %v1736
        %v1745 = vadd.f32 %v1717, %v1737
        %v1746 = vadd.f32 %v1718, %v1738
        %v1747 = vadd.f32 %v1719, %v1739
        %s1748 = scalar_lea.vmem [#allocation2], 16
        %v1749 = vld [vmem:[%s1748] sm:$0xff]
        %s1750 = scalar_lea.vmem %s3, 576
        %v1751 = vld [vmem:[%s1750] sm:$0xff]
        %v1752 = vld [vmem:[%s1750 + $0x8] sm:$0xff]
        %v1753 = vld [vmem:[%s1750 + $0x10] sm:$0xff]
        %v1754 = vld [vmem:[%s1750 + $0x18] sm:$0xff]
        %v1755 = vld [vmem:[%s1750 + $0x20] sm:$0xff]
        %v1756 = vld [vmem:[%s1750 + $0x28] sm:$0xff]
        %v1757 = vld [vmem:[%s1750 + $0x30] sm:$0xff]
        %v1758 = vld [vmem:[%s1750 + $0x38] sm:$0xff]
        %v1759 = vmul.f32 %v1751, %v1749
        %v1760 = vmul.f32 %v1752, %v1749
        %v1761 = vmul.f32 %v1753, %v1749
        %v1762 = vmul.f32 %v1754, %v1749
        %v1763 = vmul.f32 %v1755, %v1749
        %v1764 = vmul.f32 %v1756, %v1749
        %v1765 = vmul.f32 %v1757, %v1749
        %v1766 = vmul.f32 %v1758, %v1749
        %v1767 = vadd.f32 %v1740, %v1759
        %v1768 = vadd.f32 %v1741, %v1760
        %v1769 = vadd.f32 %v1742, %v1761
        %v1770 = vadd.f32 %v1743, %v1762
        %v1771 = vadd.f32 %v1744, %v1763
        %v1772 = vadd.f32 %v1745, %v1764
        %v1773 = vadd.f32 %v1746, %v1765
        %v1774 = vadd.f32 %v1747, %v1766
        %s1775 = scalar_lea.vmem %s3, 640
        %v1776 = vld [vmem:[%s1775] sm:$0xff]
        %v1777 = vld [vmem:[%s1775 + $0x8] sm:$0xff]
        %v1778 = vld [vmem:[%s1775 + $0x10] sm:$0xff]
        %v1779 = vld [vmem:[%s1775 + $0x18] sm:$0xff]
        %v1780 = vld [vmem:[%s1775 + $0x20] sm:$0xff]
        %v1781 = vld [vmem:[%s1775 + $0x28] sm:$0xff]
        %v1782 = vld [vmem:[%s1775 + $0x30] sm:$0xff]
        %v1783 = vld [vmem:[%s1775 + $0x38] sm:$0xff]
        %1785 = vrot.lane.b32.xlu0 %v1749, 127
        %v1786 = vpop.permute.xlu0 %1785
        %v1788 = vmul.f32 %v1776, %v1786
        %v1789 = vmul.f32 %v1777, %v1786
        %v1790 = vmul.f32 %v1778, %v1786
        %v1791 = vmul.f32 %v1779, %v1786
        %v1792 = vmul.f32 %v1780, %v1786
        %v1793 = vmul.f32 %v1781, %v1786
        %v1794 = vmul.f32 %v1782, %v1786
        %v1795 = vmul.f32 %v1783, %v1786
        %v1796 = vadd.f32 %v1767, %v1788
        %v1797 = vadd.f32 %v1768, %v1789
        %v1798 = vadd.f32 %v1769, %v1790
        %v1799 = vadd.f32 %v1770, %v1791
        %v1800 = vadd.f32 %v1771, %v1792
        %v1801 = vadd.f32 %v1772, %v1793
        %v1802 = vadd.f32 %v1773, %v1794
        %v1803 = vadd.f32 %v1774, %v1795
        %s1804 = scalar_lea.vmem %s3, 704
        %v1805 = vld [vmem:[%s1804] sm:$0xff]
        %v1806 = vld [vmem:[%s1804 + $0x8] sm:$0xff]
        %v1807 = vld [vmem:[%s1804 + $0x10] sm:$0xff]
        %v1808 = vld [vmem:[%s1804 + $0x18] sm:$0xff]
        %v1809 = vld [vmem:[%s1804 + $0x20] sm:$0xff]
        %v1810 = vld [vmem:[%s1804 + $0x28] sm:$0xff]
        %v1811 = vld [vmem:[%s1804 + $0x30] sm:$0xff]
        %v1812 = vld [vmem:[%s1804 + $0x38] sm:$0xff]
        %1813 = vrot.lane.b32.xlu0 %v1749, 126
        %v1814 = vpop.permute.xlu0 %1813
        %v1816 = vmul.f32 %v1805, %v1814
        %v1817 = vmul.f32 %v1806, %v1814
        %v1818 = vmul.f32 %v1807, %v1814
        %v1819 = vmul.f32 %v1808, %v1814
        %v1820 = vmul.f32 %v1809, %v1814
        %v1821 = vmul.f32 %v1810, %v1814
        %v1822 = vmul.f32 %v1811, %v1814
        %v1823 = vmul.f32 %v1812, %v1814
        %v1824 = vadd.f32 %v1796, %v1816
        %v1825 = vadd.f32 %v1797, %v1817
        %v1826 = vadd.f32 %v1798, %v1818
        %v1827 = vadd.f32 %v1799, %v1819
        %v1828 = vadd.f32 %v1800, %v1820
        %v1829 = vadd.f32 %v1801, %v1821
        %v1830 = vadd.f32 %v1802, %v1822
        %v1831 = vadd.f32 %v1803, %v1823
        %v1832 = vld [vmem:[%s1748 + $0x1] sm:$0xff]
        %s1833 = scalar_lea.vmem %s3, 768
        %v1834 = vld [vmem:[%s1833] sm:$0xff]
        %v1835 = vld [vmem:[%s1833 + $0x8] sm:$0xff]
        %v1836 = vld [vmem:[%s1833 + $0x10] sm:$0xff]
        %v1837 = vld [vmem:[%s1833 + $0x18] sm:$0xff]
        %v1838 = vld [vmem:[%s1833 + $0x20] sm:$0xff]
        %v1839 = vld [vmem:[%s1833 + $0x28] sm:$0xff]
        %v1840 = vld [vmem:[%s1833 + $0x30] sm:$0xff]
        %v1841 = vld [vmem:[%s1833 + $0x38] sm:$0xff]
        %v1842 = vmul.f32 %v1834, %v1832
        %v1843 = vmul.f32 %v1835, %v1832
        %v1844 = vmul.f32 %v1836, %v1832
        %v1845 = vmul.f32 %v1837, %v1832
        %v1846 = vmul.f32 %v1838, %v1832
        %v1847 = vmul.f32 %v1839, %v1832
        %v1848 = vmul.f32 %v1840, %v1832
        %v1849 = vmul.f32 %v1841, %v1832
        %v1850 = vadd.f32 %v1824, %v1842
        %v1851 = vadd.f32 %v1825, %v1843
        %v1852 = vadd.f32 %v1826, %v1844
        %v1853 = vadd.f32 %v1827, %v1845
        %v1854 = vadd.f32 %v1828, %v1846
        %v1855 = vadd.f32 %v1829, %v1847
        %v1856 = vadd.f32 %v1830, %v1848
        %v1857 = vadd.f32 %v1831, %v1849
        %s1858 = scalar_lea.vmem %s3, 832
        %v1859 = vld [vmem:[%s1858] sm:$0xff]
        %v1860 = vld [vmem:[%s1858 + $0x8] sm:$0xff]
        %v1861 = vld [vmem:[%s1858 + $0x10] sm:$0xff]
        %v1862 = vld [vmem:[%s1858 + $0x18] sm:$0xff]
        %v1863 = vld [vmem:[%s1858 + $0x20] sm:$0xff]
        %v1864 = vld [vmem:[%s1858 + $0x28] sm:$0xff]
        %v1865 = vld [vmem:[%s1858 + $0x30] sm:$0xff]
        %v1866 = vld [vmem:[%s1858 + $0x38] sm:$0xff]
        %1868 = vrot.lane.b32.xlu0 %v1832, 127
        %v1869 = vpop.permute.xlu0 %1868
        %v1871 = vmul.f32 %v1859, %v1869
        %v1872 = vmul.f32 %v1860, %v1869
        %v1873 = vmul.f32 %v1861, %v1869
        %v1874 = vmul.f32 %v1862, %v1869
        %v1875 = vmul.f32 %v1863, %v1869
        %v1876 = vmul.f32 %v1864, %v1869
        %v1877 = vmul.f32 %v1865, %v1869
        %v1878 = vmul.f32 %v1866, %v1869
        %v1879 = vadd.f32 %v1850, %v1871
        %v1880 = vadd.f32 %v1851, %v1872
        %v1881 = vadd.f32 %v1852, %v1873
        %v1882 = vadd.f32 %v1853, %v1874
        %v1883 = vadd.f32 %v1854, %v1875
        %v1884 = vadd.f32 %v1855, %v1876
        %v1885 = vadd.f32 %v1856, %v1877
        %v1886 = vadd.f32 %v1857, %v1878
        %s1887 = scalar_lea.vmem %s3, 896
        %v1888 = vld [vmem:[%s1887] sm:$0xff]
        %v1889 = vld [vmem:[%s1887 + $0x8] sm:$0xff]
        %v1890 = vld [vmem:[%s1887 + $0x10] sm:$0xff]
        %v1891 = vld [vmem:[%s1887 + $0x18] sm:$0xff]
        %v1892 = vld [vmem:[%s1887 + $0x20] sm:$0xff]
        %v1893 = vld [vmem:[%s1887 + $0x28] sm:$0xff]
        %v1894 = vld [vmem:[%s1887 + $0x30] sm:$0xff]
        %v1895 = vld [vmem:[%s1887 + $0x38] sm:$0xff]
        %1896 = vrot.lane.b32.xlu0 %v1832, 126
        %v1897 = vpop.permute.xlu0 %1896
        %v1899 = vmul.f32 %v1888, %v1897
        %v1900 = vmul.f32 %v1889, %v1897
        %v1901 = vmul.f32 %v1890, %v1897
        %v1902 = vmul.f32 %v1891, %v1897
        %v1903 = vmul.f32 %v1892, %v1897
        %v1904 = vmul.f32 %v1893, %v1897
        %v1905 = vmul.f32 %v1894, %v1897
        %v1906 = vmul.f32 %v1895, %v1897
        %v1907 = vadd.f32 %v1879, %v1899
        %v1908 = vadd.f32 %v1880, %v1900
        %v1909 = vadd.f32 %v1881, %v1901
        %v1910 = vadd.f32 %v1882, %v1902
        %v1911 = vadd.f32 %v1883, %v1903
        %v1912 = vadd.f32 %v1884, %v1904
        %v1913 = vadd.f32 %v1885, %v1905
        %v1914 = vadd.f32 %v1886, %v1906
        %v1915 = vld [vmem:[%s1748 + $0x2] sm:$0xff]
        %s1916 = scalar_lea.vmem %s3, 960
        %v1917 = vld [vmem:[%s1916] sm:$0xff]
        %v1918 = vld [vmem:[%s1916 + $0x8] sm:$0xff]
        %v1919 = vld [vmem:[%s1916 + $0x10] sm:$0xff]
        %v1920 = vld [vmem:[%s1916 + $0x18] sm:$0xff]
        %v1921 = vld [vmem:[%s1916 + $0x20] sm:$0xff]
        %v1922 = vld [vmem:[%s1916 + $0x28] sm:$0xff]
        %v1923 = vld [vmem:[%s1916 + $0x30] sm:$0xff]
        %v1924 = vld [vmem:[%s1916 + $0x38] sm:$0xff]
        %v1925 = vmul.f32 %v1917, %v1915
        %v1926 = vmul.f32 %v1918, %v1915
        %v1927 = vmul.f32 %v1919, %v1915
        %v1928 = vmul.f32 %v1920, %v1915
        %v1929 = vmul.f32 %v1921, %v1915
        %v1930 = vmul.f32 %v1922, %v1915
        %v1931 = vmul.f32 %v1923, %v1915
        %v1932 = vmul.f32 %v1924, %v1915
        %v1933 = vadd.f32 %v1907, %v1925
        %v1934 = vadd.f32 %v1908, %v1926
        %v1935 = vadd.f32 %v1909, %v1927
        %v1936 = vadd.f32 %v1910, %v1928
        %v1937 = vadd.f32 %v1911, %v1929
        %v1938 = vadd.f32 %v1912, %v1930
        %v1939 = vadd.f32 %v1913, %v1931
        %v1940 = vadd.f32 %v1914, %v1932
        %s1941 = scalar_lea.vmem %s3, 1024
        %v1942 = vld [vmem:[%s1941] sm:$0xff]
        %v1943 = vld [vmem:[%s1941 + $0x8] sm:$0xff]
        %v1944 = vld [vmem:[%s1941 + $0x10] sm:$0xff]
        %v1945 = vld [vmem:[%s1941 + $0x18] sm:$0xff]
        %v1946 = vld [vmem:[%s1941 + $0x20] sm:$0xff]
        %v1947 = vld [vmem:[%s1941 + $0x28] sm:$0xff]
        %v1948 = vld [vmem:[%s1941 + $0x30] sm:$0xff]
        %v1949 = vld [vmem:[%s1941 + $0x38] sm:$0xff]
        %1951 = vrot.lane.b32.xlu0 %v1915, 127
        %v1952 = vpop.permute.xlu0 %1951
        %v1954 = vmul.f32 %v1942, %v1952
        %v1955 = vmul.f32 %v1943, %v1952
        %v1956 = vmul.f32 %v1944, %v1952
        %v1957 = vmul.f32 %v1945, %v1952
        %v1958 = vmul.f32 %v1946, %v1952
        %v1959 = vmul.f32 %v1947, %v1952
        %v1960 = vmul.f32 %v1948, %v1952
        %v1961 = vmul.f32 %v1949, %v1952
        %v1962 = vadd.f32 %v1933, %v1954
        %v1963 = vadd.f32 %v1934, %v1955
        %v1964 = vadd.f32 %v1935, %v1956
        %v1965 = vadd.f32 %v1936, %v1957
        %v1966 = vadd.f32 %v1937, %v1958
        %v1967 = vadd.f32 %v1938, %v1959
        %v1968 = vadd.f32 %v1939, %v1960
        %v1969 = vadd.f32 %v1940, %v1961
        %s1970 = scalar_lea.vmem %s3, 1088
        %v1971 = vld [vmem:[%s1970] sm:$0xff]
        %v1972 = vld [vmem:[%s1970 + $0x8] sm:$0xff]
        %v1973 = vld [vmem:[%s1970 + $0x10] sm:$0xff]
        %v1974 = vld [vmem:[%s1970 + $0x18] sm:$0xff]
        %v1975 = vld [vmem:[%s1970 + $0x20] sm:$0xff]
        %v1976 = vld [vmem:[%s1970 + $0x28] sm:$0xff]
        %v1977 = vld [vmem:[%s1970 + $0x30] sm:$0xff]
        %v1978 = vld [vmem:[%s1970 + $0x38] sm:$0xff]
        %1979 = vrot.lane.b32.xlu0 %v1915, 126
        %v1980 = vpop.permute.xlu0 %1979
        %v1982 = vmul.f32 %v1971, %v1980
        %v1983 = vmul.f32 %v1972, %v1980
        %v1984 = vmul.f32 %v1973, %v1980
        %v1985 = vmul.f32 %v1974, %v1980
        %v1986 = vmul.f32 %v1975, %v1980
        %v1987 = vmul.f32 %v1976, %v1980
        %v1988 = vmul.f32 %v1977, %v1980
        %v1989 = vmul.f32 %v1978, %v1980
        %v1990 = vadd.f32 %v1962, %v1982
        %v1991 = vadd.f32 %v1963, %v1983
        %v1992 = vadd.f32 %v1964, %v1984
        %v1993 = vadd.f32 %v1965, %v1985
        %v1994 = vadd.f32 %v1966, %v1986
        %v1995 = vadd.f32 %v1967, %v1987
        %v1996 = vadd.f32 %v1968, %v1988
        %v1997 = vadd.f32 %v1969, %v1989
        %s1998 = scalar_lea.vmem [#allocation2], 32
        %v1999 = vld [vmem:[%s1998] sm:$0xff]
        %s2000 = scalar_lea.vmem %s3, 1152
        %v2001 = vld [vmem:[%s2000] sm:$0xff]
        %v2002 = vld [vmem:[%s2000 + $0x8] sm:$0xff]
        %v2003 = vld [vmem:[%s2000 + $0x10] sm:$0xff]
        %v2004 = vld [vmem:[%s2000 + $0x18] sm:$0xff]
        %v2005 = vld [vmem:[%s2000 + $0x20] sm:$0xff]
        %v2006 = vld [vmem:[%s2000 + $0x28] sm:$0xff]
        %v2007 = vld [vmem:[%s2000 + $0x30] sm:$0xff]
        %v2008 = vld [vmem:[%s2000 + $0x38] sm:$0xff]
        %v2009 = vmul.f32 %v2001, %v1999
        %v2010 = vmul.f32 %v2002, %v1999
        %v2011 = vmul.f32 %v2003, %v1999
        %v2012 = vmul.f32 %v2004, %v1999
        %v2013 = vmul.f32 %v2005, %v1999
        %v2014 = vmul.f32 %v2006, %v1999
        %v2015 = vmul.f32 %v2007, %v1999
        %v2016 = vmul.f32 %v2008, %v1999
        %v2017 = vadd.f32 %v1990, %v2009
        %v2018 = vadd.f32 %v1991, %v2010
        %v2019 = vadd.f32 %v1992, %v2011
        %v2020 = vadd.f32 %v1993, %v2012
        %v2021 = vadd.f32 %v1994, %v2013
        %v2022 = vadd.f32 %v1995, %v2014
        %v2023 = vadd.f32 %v1996, %v2015
        %v2024 = vadd.f32 %v1997, %v2016
        %s2025 = scalar_lea.vmem %s3, 1216
        %v2026 = vld [vmem:[%s2025] sm:$0xff]
        %v2027 = vld [vmem:[%s2025 + $0x8] sm:$0xff]
        %v2028 = vld [vmem:[%s2025 + $0x10] sm:$0xff]
        %v2029 = vld [vmem:[%s2025 + $0x18] sm:$0xff]
        %v2030 = vld [vmem:[%s2025 + $0x20] sm:$0xff]
        %v2031 = vld [vmem:[%s2025 + $0x28] sm:$0xff]
        %v2032 = vld [vmem:[%s2025 + $0x30] sm:$0xff]
        %v2033 = vld [vmem:[%s2025 + $0x38] sm:$0xff]
        %2035 = vrot.lane.b32.xlu0 %v1999, 127
        %v2036 = vpop.permute.xlu0 %2035
        %v2038 = vmul.f32 %v2026, %v2036
        %v2039 = vmul.f32 %v2027, %v2036
        %v2040 = vmul.f32 %v2028, %v2036
        %v2041 = vmul.f32 %v2029, %v2036
        %v2042 = vmul.f32 %v2030, %v2036
        %v2043 = vmul.f32 %v2031, %v2036
        %v2044 = vmul.f32 %v2032, %v2036
        %v2045 = vmul.f32 %v2033, %v2036
        %v2046 = vadd.f32 %v2017, %v2038
        %v2047 = vadd.f32 %v2018, %v2039
        %v2048 = vadd.f32 %v2019, %v2040
        %v2049 = vadd.f32 %v2020, %v2041
        %v2050 = vadd.f32 %v2021, %v2042
        %v2051 = vadd.f32 %v2022, %v2043
        %v2052 = vadd.f32 %v2023, %v2044
        %v2053 = vadd.f32 %v2024, %v2045
        %s2054 = scalar_lea.vmem %s3, 1280
        %v2055 = vld [vmem:[%s2054] sm:$0xff]
        %v2056 = vld [vmem:[%s2054 + $0x8] sm:$0xff]
        %v2057 = vld [vmem:[%s2054 + $0x10] sm:$0xff]
        %v2058 = vld [vmem:[%s2054 + $0x18] sm:$0xff]
        %v2059 = vld [vmem:[%s2054 + $0x20] sm:$0xff]
        %v2060 = vld [vmem:[%s2054 + $0x28] sm:$0xff]
        %v2061 = vld [vmem:[%s2054 + $0x30] sm:$0xff]
        %v2062 = vld [vmem:[%s2054 + $0x38] sm:$0xff]
        %2063 = vrot.lane.b32.xlu0 %v1999, 126
        %v2064 = vpop.permute.xlu0 %2063
        %v2066 = vmul.f32 %v2055, %v2064
        %v2067 = vmul.f32 %v2056, %v2064
        %v2068 = vmul.f32 %v2057, %v2064
        %v2069 = vmul.f32 %v2058, %v2064
        %v2070 = vmul.f32 %v2059, %v2064
        %v2071 = vmul.f32 %v2060, %v2064
        %v2072 = vmul.f32 %v2061, %v2064
        %v2073 = vmul.f32 %v2062, %v2064
        %v2074 = vadd.f32 %v2046, %v2066
        %v2075 = vadd.f32 %v2047, %v2067
        %v2076 = vadd.f32 %v2048, %v2068
        %v2077 = vadd.f32 %v2049, %v2069
        %v2078 = vadd.f32 %v2050, %v2070
        %v2079 = vadd.f32 %v2051, %v2071
        %v2080 = vadd.f32 %v2052, %v2072
        %v2081 = vadd.f32 %v2053, %v2073
        %v2082 = vld [vmem:[%s1998 + $0x1] sm:$0xff]
        %s2083 = scalar_lea.vmem %s3, 1344
        %v2084 = vld [vmem:[%s2083] sm:$0xff]
        %v2085 = vld [vmem:[%s2083 + $0x8] sm:$0xff]
        %v2086 = vld [vmem:[%s2083 + $0x10] sm:$0xff]
        %v2087 = vld [vmem:[%s2083 + $0x18] sm:$0xff]
        %v2088 = vld [vmem:[%s2083 + $0x20] sm:$0xff]
        %v2089 = vld [vmem:[%s2083 + $0x28] sm:$0xff]
        %v2090 = vld [vmem:[%s2083 + $0x30] sm:$0xff]
        %v2091 = vld [vmem:[%s2083 + $0x38] sm:$0xff]
        %v2092 = vmul.f32 %v2084, %v2082
        %v2093 = vmul.f32 %v2085, %v2082
        %v2094 = vmul.f32 %v2086, %v2082
        %v2095 = vmul.f32 %v2087, %v2082
        %v2096 = vmul.f32 %v2088, %v2082
        %v2097 = vmul.f32 %v2089, %v2082
        %v2098 = vmul.f32 %v2090, %v2082
        %v2099 = vmul.f32 %v2091, %v2082
        %v2100 = vadd.f32 %v2074, %v2092
        %v2101 = vadd.f32 %v2075, %v2093
        %v2102 = vadd.f32 %v2076, %v2094
        %v2103 = vadd.f32 %v2077, %v2095
        %v2104 = vadd.f32 %v2078, %v2096
        %v2105 = vadd.f32 %v2079, %v2097
        %v2106 = vadd.f32 %v2080, %v2098
        %v2107 = vadd.f32 %v2081, %v2099
        %s2108 = scalar_lea.vmem %s3, 1408
        %v2109 = vld [vmem:[%s2108] sm:$0xff]
        %v2110 = vld [vmem:[%s2108 + $0x8] sm:$0xff]
        %v2111 = vld [vmem:[%s2108 + $0x10] sm:$0xff]
        %v2112 = vld [vmem:[%s2108 + $0x18] sm:$0xff]
        %v2113 = vld [vmem:[%s2108 + $0x20] sm:$0xff]
        %v2114 = vld [vmem:[%s2108 + $0x28] sm:$0xff]
        %v2115 = vld [vmem:[%s2108 + $0x30] sm:$0xff]
        %v2116 = vld [vmem:[%s2108 + $0x38] sm:$0xff]
        %2118 = vrot.lane.b32.xlu0 %v2082, 127
        %v2119 = vpop.permute.xlu0 %2118
        %v2121 = vmul.f32 %v2109, %v2119
        %v2122 = vmul.f32 %v2110, %v2119
        %v2123 = vmul.f32 %v2111, %v2119
        %v2124 = vmul.f32 %v2112, %v2119
        %v2125 = vmul.f32 %v2113, %v2119
        %v2126 = vmul.f32 %v2114, %v2119
        %v2127 = vmul.f32 %v2115, %v2119
        %v2128 = vmul.f32 %v2116, %v2119
        %v2129 = vadd.f32 %v2100, %v2121
        %v2130 = vadd.f32 %v2101, %v2122
        %v2131 = vadd.f32 %v2102, %v2123
        %v2132 = vadd.f32 %v2103, %v2124
        %v2133 = vadd.f32 %v2104, %v2125
        %v2134 = vadd.f32 %v2105, %v2126
        %v2135 = vadd.f32 %v2106, %v2127
        %v2136 = vadd.f32 %v2107, %v2128
        %s2137 = scalar_lea.vmem %s3, 1472
        %v2138 = vld [vmem:[%s2137] sm:$0xff]
        %v2139 = vld [vmem:[%s2137 + $0x8] sm:$0xff]
        %v2140 = vld [vmem:[%s2137 + $0x10] sm:$0xff]
        %v2141 = vld [vmem:[%s2137 + $0x18] sm:$0xff]
        %v2142 = vld [vmem:[%s2137 + $0x20] sm:$0xff]
        %v2143 = vld [vmem:[%s2137 + $0x28] sm:$0xff]
        %v2144 = vld [vmem:[%s2137 + $0x30] sm:$0xff]
        %v2145 = vld [vmem:[%s2137 + $0x38] sm:$0xff]
        %2146 = vrot.lane.b32.xlu0 %v2082, 126
        %v2147 = vpop.permute.xlu0 %2146
        %v2149 = vmul.f32 %v2138, %v2147
        %v2150 = vmul.f32 %v2139, %v2147
        %v2151 = vmul.f32 %v2140, %v2147
        %v2152 = vmul.f32 %v2141, %v2147
        %v2153 = vmul.f32 %v2142, %v2147
        %v2154 = vmul.f32 %v2143, %v2147
        %v2155 = vmul.f32 %v2144, %v2147
        %v2156 = vmul.f32 %v2145, %v2147
        %v2157 = vadd.f32 %v2129, %v2149
        %v2158 = vadd.f32 %v2130, %v2150
        %v2159 = vadd.f32 %v2131, %v2151
        %v2160 = vadd.f32 %v2132, %v2152
        %v2161 = vadd.f32 %v2133, %v2153
        %v2162 = vadd.f32 %v2134, %v2154
        %v2163 = vadd.f32 %v2135, %v2155
        %v2164 = vadd.f32 %v2136, %v2156
        %v2165 = vld [vmem:[%s1998 + $0x2] sm:$0xff]
        %s2166 = scalar_lea.vmem %s3, 1536
        %v2167 = vld [vmem:[%s2166] sm:$0xff]
        %v2168 = vld [vmem:[%s2166 + $0x8] sm:$0xff]
        %v2169 = vld [vmem:[%s2166 + $0x10] sm:$0xff]
        %v2170 = vld [vmem:[%s2166 + $0x18] sm:$0xff]
        %v2171 = vld [vmem:[%s2166 + $0x20] sm:$0xff]
        %v2172 = vld [vmem:[%s2166 + $0x28] sm:$0xff]
        %v2173 = vld [vmem:[%s2166 + $0x30] sm:$0xff]
        %v2174 = vld [vmem:[%s2166 + $0x38] sm:$0xff]
        %v2175 = vmul.f32 %v2167, %v2165
        %v2176 = vmul.f32 %v2168, %v2165
        %v2177 = vmul.f32 %v2169, %v2165
        %v2178 = vmul.f32 %v2170, %v2165
        %v2179 = vmul.f32 %v2171, %v2165
        %v2180 = vmul.f32 %v2172, %v2165
        %v2181 = vmul.f32 %v2173, %v2165
        %v2182 = vmul.f32 %v2174, %v2165
        %v2183 = vadd.f32 %v2157, %v2175
        %v2184 = vadd.f32 %v2158, %v2176
        %v2185 = vadd.f32 %v2159, %v2177
        %v2186 = vadd.f32 %v2160, %v2178
        %v2187 = vadd.f32 %v2161, %v2179
        %v2188 = vadd.f32 %v2162, %v2180
        %v2189 = vadd.f32 %v2163, %v2181
        %v2190 = vadd.f32 %v2164, %v2182
        %s2191 = scalar_lea.vmem %s3, 1600
        %v2192 = vld [vmem:[%s2191] sm:$0xff]
        %v2193 = vld [vmem:[%s2191 + $0x8] sm:$0xff]
        %v2194 = vld [vmem:[%s2191 + $0x10] sm:$0xff]
        %v2195 = vld [vmem:[%s2191 + $0x18] sm:$0xff]
        %v2196 = vld [vmem:[%s2191 + $0x20] sm:$0xff]
        %v2197 = vld [vmem:[%s2191 + $0x28] sm:$0xff]
        %v2198 = vld [vmem:[%s2191 + $0x30] sm:$0xff]
        %v2199 = vld [vmem:[%s2191 + $0x38] sm:$0xff]
        %2201 = vrot.lane.b32.xlu0 %v2165, 127
        %v2202 = vpop.permute.xlu0 %2201
        %v2204 = vmul.f32 %v2192, %v2202
        %v2205 = vmul.f32 %v2193, %v2202
        %v2206 = vmul.f32 %v2194, %v2202
        %v2207 = vmul.f32 %v2195, %v2202
        %v2208 = vmul.f32 %v2196, %v2202
        %v2209 = vmul.f32 %v2197, %v2202
        %v2210 = vmul.f32 %v2198, %v2202
        %v2211 = vmul.f32 %v2199, %v2202
        %v2212 = vadd.f32 %v2183, %v2204
        %v2213 = vadd.f32 %v2184, %v2205
        %v2214 = vadd.f32 %v2185, %v2206
        %v2215 = vadd.f32 %v2186, %v2207
        %v2216 = vadd.f32 %v2187, %v2208
        %v2217 = vadd.f32 %v2188, %v2209
        %v2218 = vadd.f32 %v2189, %v2210
        %v2219 = vadd.f32 %v2190, %v2211
        %s2220 = scalar_lea.vmem %s3, 1664
        %v2221 = vld [vmem:[%s2220] sm:$0xff]
        %v2222 = vld [vmem:[%s2220 + $0x8] sm:$0xff]
        %v2223 = vld [vmem:[%s2220 + $0x10] sm:$0xff]
        %v2224 = vld [vmem:[%s2220 + $0x18] sm:$0xff]
        %v2225 = vld [vmem:[%s2220 + $0x20] sm:$0xff]
        %v2226 = vld [vmem:[%s2220 + $0x28] sm:$0xff]
        %v2227 = vld [vmem:[%s2220 + $0x30] sm:$0xff]
        %v2228 = vld [vmem:[%s2220 + $0x38] sm:$0xff]
        %2229 = vrot.lane.b32.xlu0 %v2165, 126
        %v2230 = vpop.permute.xlu0 %2229
        %v2232 = vmul.f32 %v2221, %v2230
        %v2233 = vmul.f32 %v2222, %v2230
        %v2234 = vmul.f32 %v2223, %v2230
        %v2235 = vmul.f32 %v2224, %v2230
        %v2236 = vmul.f32 %v2225, %v2230
        %v2237 = vmul.f32 %v2226, %v2230
        %v2238 = vmul.f32 %v2227, %v2230
        %v2239 = vmul.f32 %v2228, %v2230
        %v2240 = vadd.f32 %v2212, %v2232
        %v2241 = vadd.f32 %v2213, %v2233
        %v2242 = vadd.f32 %v2214, %v2234
        %v2243 = vadd.f32 %v2215, %v2235
        %v2244 = vadd.f32 %v2216, %v2236
        %v2245 = vadd.f32 %v2217, %v2237
        %v2246 = vadd.f32 %v2218, %v2238
        %v2247 = vadd.f32 %v2219, %v2239
        %s2248 = scalar_lea.vmem [#allocation2], 48
        %v2249 = vld [vmem:[%s2248] sm:$0xff]
        %s2250 = scalar_lea.vmem %s3, 1728
        %v2251 = vld [vmem:[%s2250] sm:$0xff]
        %v2252 = vld [vmem:[%s2250 + $0x8] sm:$0xff]
        %v2253 = vld [vmem:[%s2250 + $0x10] sm:$0xff]
        %v2254 = vld [vmem:[%s2250 + $0x18] sm:$0xff]
        %v2255 = vld [vmem:[%s2250 + $0x20] sm:$0xff]
        %v2256 = vld [vmem:[%s2250 + $0x28] sm:$0xff]
        %v2257 = vld [vmem:[%s2250 + $0x30] sm:$0xff]
        %v2258 = vld [vmem:[%s2250 + $0x38] sm:$0xff]
        %v2259 = vmul.f32 %v2251, %v2249
        %v2260 = vmul.f32 %v2252, %v2249
        %v2261 = vmul.f32 %v2253, %v2249
        %v2262 = vmul.f32 %v2254, %v2249
        %v2263 = vmul.f32 %v2255, %v2249
        %v2264 = vmul.f32 %v2256, %v2249
        %v2265 = vmul.f32 %v2257, %v2249
        %v2266 = vmul.f32 %v2258, %v2249
        %v2267 = vadd.f32 %v2240, %v2259
        %v2268 = vadd.f32 %v2241, %v2260
        %v2269 = vadd.f32 %v2242, %v2261
        %v2270 = vadd.f32 %v2243, %v2262
        %v2271 = vadd.f32 %v2244, %v2263
        %v2272 = vadd.f32 %v2245, %v2264
        %v2273 = vadd.f32 %v2246, %v2265
        %v2274 = vadd.f32 %v2247, %v2266
        %s2275 = scalar_lea.vmem %s3, 1792
        %v2276 = vld [vmem:[%s2275] sm:$0xff]
        %v2277 = vld [vmem:[%s2275 + $0x8] sm:$0xff]
        %v2278 = vld [vmem:[%s2275 + $0x10] sm:$0xff]
        %v2279 = vld [vmem:[%s2275 + $0x18] sm:$0xff]
        %v2280 = vld [vmem:[%s2275 + $0x20] sm:$0xff]
        %v2281 = vld [vmem:[%s2275 + $0x28] sm:$0xff]
        %v2282 = vld [vmem:[%s2275 + $0x30] sm:$0xff]
        %v2283 = vld [vmem:[%s2275 + $0x38] sm:$0xff]
        %2285 = vrot.lane.b32.xlu0 %v2249, 127
        %v2286 = vpop.permute.xlu0 %2285
        %v2288 = vmul.f32 %v2276, %v2286
        %v2289 = vmul.f32 %v2277, %v2286
        %v2290 = vmul.f32 %v2278, %v2286
        %v2291 = vmul.f32 %v2279, %v2286
        %v2292 = vmul.f32 %v2280, %v2286
        %v2293 = vmul.f32 %v2281, %v2286
        %v2294 = vmul.f32 %v2282, %v2286
        %v2295 = vmul.f32 %v2283, %v2286
        %v2296 = vadd.f32 %v2267, %v2288
        %v2297 = vadd.f32 %v2268, %v2289
        %v2298 = vadd.f32 %v2269, %v2290
        %v2299 = vadd.f32 %v2270, %v2291
        %v2300 = vadd.f32 %v2271, %v2292
        %v2301 = vadd.f32 %v2272, %v2293
        %v2302 = vadd.f32 %v2273, %v2294
        %v2303 = vadd.f32 %v2274, %v2295
        %s2304 = scalar_lea.vmem %s3, 1856
        %v2305 = vld [vmem:[%s2304] sm:$0xff]
        %v2306 = vld [vmem:[%s2304 + $0x8] sm:$0xff]
        %v2307 = vld [vmem:[%s2304 + $0x10] sm:$0xff]
        %v2308 = vld [vmem:[%s2304 + $0x18] sm:$0xff]
        %v2309 = vld [vmem:[%s2304 + $0x20] sm:$0xff]
        %v2310 = vld [vmem:[%s2304 + $0x28] sm:$0xff]
        %v2311 = vld [vmem:[%s2304 + $0x30] sm:$0xff]
        %v2312 = vld [vmem:[%s2304 + $0x38] sm:$0xff]
        %2313 = vrot.lane.b32.xlu0 %v2249, 126
        %v2314 = vpop.permute.xlu0 %2313
        %v2316 = vmul.f32 %v2305, %v2314
        %v2317 = vmul.f32 %v2306, %v2314
        %v2318 = vmul.f32 %v2307, %v2314
        %v2319 = vmul.f32 %v2308, %v2314
        %v2320 = vmul.f32 %v2309, %v2314
        %v2321 = vmul.f32 %v2310, %v2314
        %v2322 = vmul.f32 %v2311, %v2314
        %v2323 = vmul.f32 %v2312, %v2314
        %v2324 = vadd.f32 %v2296, %v2316
        %v2325 = vadd.f32 %v2297, %v2317
        %v2326 = vadd.f32 %v2298, %v2318
        %v2327 = vadd.f32 %v2299, %v2319
        %v2328 = vadd.f32 %v2300, %v2320
        %v2329 = vadd.f32 %v2301, %v2321
        %v2330 = vadd.f32 %v2302, %v2322
        %v2331 = vadd.f32 %v2303, %v2323
        %v2332 = vld [vmem:[%s2248 + $0x1] sm:$0xff]
        %s2333 = scalar_lea.vmem %s3, 1920
        %v2334 = vld [vmem:[%s2333] sm:$0xff]
        %v2335 = vld [vmem:[%s2333 + $0x8] sm:$0xff]
        %v2336 = vld [vmem:[%s2333 + $0x10] sm:$0xff]
        %v2337 = vld [vmem:[%s2333 + $0x18] sm:$0xff]
        %v2338 = vld [vmem:[%s2333 + $0x20] sm:$0xff]
        %v2339 = vld [vmem:[%s2333 + $0x28] sm:$0xff]
        %v2340 = vld [vmem:[%s2333 + $0x30] sm:$0xff]
        %v2341 = vld [vmem:[%s2333 + $0x38] sm:$0xff]
        %v2342 = vmul.f32 %v2334, %v2332
        %v2343 = vmul.f32 %v2335, %v2332
        %v2344 = vmul.f32 %v2336, %v2332
        %v2345 = vmul.f32 %v2337, %v2332
        %v2346 = vmul.f32 %v2338, %v2332
        %v2347 = vmul.f32 %v2339, %v2332
        %v2348 = vmul.f32 %v2340, %v2332
        %v2349 = vmul.f32 %v2341, %v2332
        %v2350 = vadd.f32 %v2324, %v2342
        %v2351 = vadd.f32 %v2325, %v2343
        %v2352 = vadd.f32 %v2326, %v2344
        %v2353 = vadd.f32 %v2327, %v2345
        %v2354 = vadd.f32 %v2328, %v2346
        %v2355 = vadd.f32 %v2329, %v2347
        %v2356 = vadd.f32 %v2330, %v2348
        %v2357 = vadd.f32 %v2331, %v2349
        %s2358 = scalar_lea.vmem %s3, 1984
        %v2359 = vld [vmem:[%s2358] sm:$0xff]
        %v2360 = vld [vmem:[%s2358 + $0x8] sm:$0xff]
        %v2361 = vld [vmem:[%s2358 + $0x10] sm:$0xff]
        %v2362 = vld [vmem:[%s2358 + $0x18] sm:$0xff]
        %v2363 = vld [vmem:[%s2358 + $0x20] sm:$0xff]
        %v2364 = vld [vmem:[%s2358 + $0x28] sm:$0xff]
        %v2365 = vld [vmem:[%s2358 + $0x30] sm:$0xff]
        %v2366 = vld [vmem:[%s2358 + $0x38] sm:$0xff]
        %2368 = vrot.lane.b32.xlu0 %v2332, 127
        %v2369 = vpop.permute.xlu0 %2368
        %v2371 = vmul.f32 %v2359, %v2369
        %v2372 = vmul.f32 %v2360, %v2369
        %v2373 = vmul.f32 %v2361, %v2369
        %v2374 = vmul.f32 %v2362, %v2369
        %v2375 = vmul.f32 %v2363, %v2369
        %v2376 = vmul.f32 %v2364, %v2369
        %v2377 = vmul.f32 %v2365, %v2369
        %v2378 = vmul.f32 %v2366, %v2369
        %v2379 = vadd.f32 %v2350, %v2371
        %v2380 = vadd.f32 %v2351, %v2372
        %v2381 = vadd.f32 %v2352, %v2373
        %v2382 = vadd.f32 %v2353, %v2374
        %v2383 = vadd.f32 %v2354, %v2375
        %v2384 = vadd.f32 %v2355, %v2376
        %v2385 = vadd.f32 %v2356, %v2377
        %v2386 = vadd.f32 %v2357, %v2378
        %s2387 = scalar_lea.vmem %s3, 2048
        %v2388 = vld [vmem:[%s2387] sm:$0xff]
        %v2389 = vld [vmem:[%s2387 + $0x8] sm:$0xff]
        %v2390 = vld [vmem:[%s2387 + $0x10] sm:$0xff]
        %v2391 = vld [vmem:[%s2387 + $0x18] sm:$0xff]
        %v2392 = vld [vmem:[%s2387 + $0x20] sm:$0xff]
        %v2393 = vld [vmem:[%s2387 + $0x28] sm:$0xff]
        %v2394 = vld [vmem:[%s2387 + $0x30] sm:$0xff]
        %v2395 = vld [vmem:[%s2387 + $0x38] sm:$0xff]
        %2396 = vrot.lane.b32.xlu0 %v2332, 126
        %v2397 = vpop.permute.xlu0 %2396
        %v2399 = vmul.f32 %v2388, %v2397
        %v2400 = vmul.f32 %v2389, %v2397
        %v2401 = vmul.f32 %v2390, %v2397
        %v2402 = vmul.f32 %v2391, %v2397
        %v2403 = vmul.f32 %v2392, %v2397
        %v2404 = vmul.f32 %v2393, %v2397
        %v2405 = vmul.f32 %v2394, %v2397
        %v2406 = vmul.f32 %v2395, %v2397
        %v2407 = vadd.f32 %v2379, %v2399
        %v2408 = vadd.f32 %v2380, %v2400
        %v2409 = vadd.f32 %v2381, %v2401
        %v2410 = vadd.f32 %v2382, %v2402
        %v2411 = vadd.f32 %v2383, %v2403
        %v2412 = vadd.f32 %v2384, %v2404
        %v2413 = vadd.f32 %v2385, %v2405
        %v2414 = vadd.f32 %v2386, %v2406
        %v2415 = vld [vmem:[%s2248 + $0x2] sm:$0xff]
        %s2416 = scalar_lea.vmem %s3, 2112
        %v2417 = vld [vmem:[%s2416] sm:$0xff]
        %v2418 = vld [vmem:[%s2416 + $0x8] sm:$0xff]
        %v2419 = vld [vmem:[%s2416 + $0x10] sm:$0xff]
        %v2420 = vld [vmem:[%s2416 + $0x18] sm:$0xff]
        %v2421 = vld [vmem:[%s2416 + $0x20] sm:$0xff]
        %v2422 = vld [vmem:[%s2416 + $0x28] sm:$0xff]
        %v2423 = vld [vmem:[%s2416 + $0x30] sm:$0xff]
        %v2424 = vld [vmem:[%s2416 + $0x38] sm:$0xff]
        %v2425 = vmul.f32 %v2417, %v2415
        %v2426 = vmul.f32 %v2418, %v2415
        %v2427 = vmul.f32 %v2419, %v2415
        %v2428 = vmul.f32 %v2420, %v2415
        %v2429 = vmul.f32 %v2421, %v2415
        %v2430 = vmul.f32 %v2422, %v2415
        %v2431 = vmul.f32 %v2423, %v2415
        %v2432 = vmul.f32 %v2424, %v2415
        %v2433 = vadd.f32 %v2407, %v2425
        %v2434 = vadd.f32 %v2408, %v2426
        %v2435 = vadd.f32 %v2409, %v2427
        %v2436 = vadd.f32 %v2410, %v2428
        %v2437 = vadd.f32 %v2411, %v2429
        %v2438 = vadd.f32 %v2412, %v2430
        %v2439 = vadd.f32 %v2413, %v2431
        %v2440 = vadd.f32 %v2414, %v2432
        %s2441 = scalar_lea.vmem %s3, 2176
        %v2442 = vld [vmem:[%s2441] sm:$0xff]
        %v2443 = vld [vmem:[%s2441 + $0x8] sm:$0xff]
        %v2444 = vld [vmem:[%s2441 + $0x10] sm:$0xff]
        %v2445 = vld [vmem:[%s2441 + $0x18] sm:$0xff]
        %v2446 = vld [vmem:[%s2441 + $0x20] sm:$0xff]
        %v2447 = vld [vmem:[%s2441 + $0x28] sm:$0xff]
        %v2448 = vld [vmem:[%s2441 + $0x30] sm:$0xff]
        %v2449 = vld [vmem:[%s2441 + $0x38] sm:$0xff]
        %2451 = vrot.lane.b32.xlu0 %v2415, 127
        %v2452 = vpop.permute.xlu0 %2451
        %v2454 = vmul.f32 %v2442, %v2452
        %v2455 = vmul.f32 %v2443, %v2452
        %v2456 = vmul.f32 %v2444, %v2452
        %v2457 = vmul.f32 %v2445, %v2452
        %v2458 = vmul.f32 %v2446, %v2452
        %v2459 = vmul.f32 %v2447, %v2452
        %v2460 = vmul.f32 %v2448, %v2452
        %v2461 = vmul.f32 %v2449, %v2452
        %v2462 = vadd.f32 %v2433, %v2454
        %v2463 = vadd.f32 %v2434, %v2455
        %v2464 = vadd.f32 %v2435, %v2456
        %v2465 = vadd.f32 %v2436, %v2457
        %v2466 = vadd.f32 %v2437, %v2458
        %v2467 = vadd.f32 %v2438, %v2459
        %v2468 = vadd.f32 %v2439, %v2460
        %v2469 = vadd.f32 %v2440, %v2461
        %s2470 = scalar_lea.vmem %s3, 2240
        %v2471 = vld [vmem:[%s2470] sm:$0xff]
        %v2472 = vld [vmem:[%s2470 + $0x8] sm:$0xff]
        %v2473 = vld [vmem:[%s2470 + $0x10] sm:$0xff]
        %v2474 = vld [vmem:[%s2470 + $0x18] sm:$0xff]
        %v2475 = vld [vmem:[%s2470 + $0x20] sm:$0xff]
        %v2476 = vld [vmem:[%s2470 + $0x28] sm:$0xff]
        %v2477 = vld [vmem:[%s2470 + $0x30] sm:$0xff]
        %v2478 = vld [vmem:[%s2470 + $0x38] sm:$0xff]
        %2479 = vrot.lane.b32.xlu0 %v2415, 126
        %v2480 = vpop.permute.xlu0 %2479
        %v2482 = vmul.f32 %v2471, %v2480
        %v2483 = vmul.f32 %v2472, %v2480
        %v2484 = vmul.f32 %v2473, %v2480
        %v2485 = vmul.f32 %v2474, %v2480
        %v2486 = vmul.f32 %v2475, %v2480
        %v2487 = vmul.f32 %v2476, %v2480
        %v2488 = vmul.f32 %v2477, %v2480
        %v2489 = vmul.f32 %v2478, %v2480
        %v2490 = vadd.f32 %v2462, %v2482
        %v2491 = vadd.f32 %v2463, %v2483
        %v2492 = vadd.f32 %v2464, %v2484
        %v2493 = vadd.f32 %v2465, %v2485
        %v2494 = vadd.f32 %v2466, %v2486
        %v2495 = vadd.f32 %v2467, %v2487
        %v2496 = vadd.f32 %v2468, %v2488
        %v2497 = vadd.f32 %v2469, %v2489
        %s2498 = scalar_lea.vmem [#allocation2], 64
        %v2499 = vld [vmem:[%s2498] sm:$0xff]
        %s2500 = scalar_lea.vmem %s3, 2304
        %v2501 = vld [vmem:[%s2500] sm:$0xff]
        %v2502 = vld [vmem:[%s2500 + $0x8] sm:$0xff]
        %v2503 = vld [vmem:[%s2500 + $0x10] sm:$0xff]
        %v2504 = vld [vmem:[%s2500 + $0x18] sm:$0xff]
        %v2505 = vld [vmem:[%s2500 + $0x20] sm:$0xff]
        %v2506 = vld [vmem:[%s2500 + $0x28] sm:$0xff]
        %v2507 = vld [vmem:[%s2500 + $0x30] sm:$0xff]
        %v2508 = vld [vmem:[%s2500 + $0x38] sm:$0xff]
        %v2509 = vmul.f32 %v2501, %v2499
        %v2510 = vmul.f32 %v2502, %v2499
        %v2511 = vmul.f32 %v2503, %v2499
        %v2512 = vmul.f32 %v2504, %v2499
        %v2513 = vmul.f32 %v2505, %v2499
        %v2514 = vmul.f32 %v2506, %v2499
        %v2515 = vmul.f32 %v2507, %v2499
        %v2516 = vmul.f32 %v2508, %v2499
        %v2517 = vadd.f32 %v2490, %v2509
        %v2518 = vadd.f32 %v2491, %v2510
        %v2519 = vadd.f32 %v2492, %v2511
        %v2520 = vadd.f32 %v2493, %v2512
        %v2521 = vadd.f32 %v2494, %v2513
        %v2522 = vadd.f32 %v2495, %v2514
        %v2523 = vadd.f32 %v2496, %v2515
        %v2524 = vadd.f32 %v2497, %v2516
        %s2525 = scalar_lea.vmem %s3, 2368
        %v2526 = vld [vmem:[%s2525] sm:$0xff]
        %v2527 = vld [vmem:[%s2525 + $0x8] sm:$0xff]
        %v2528 = vld [vmem:[%s2525 + $0x10] sm:$0xff]
        %v2529 = vld [vmem:[%s2525 + $0x18] sm:$0xff]
        %v2530 = vld [vmem:[%s2525 + $0x20] sm:$0xff]
        %v2531 = vld [vmem:[%s2525 + $0x28] sm:$0xff]
        %v2532 = vld [vmem:[%s2525 + $0x30] sm:$0xff]
        %v2533 = vld [vmem:[%s2525 + $0x38] sm:$0xff]
        %2535 = vrot.lane.b32.xlu0 %v2499, 127
        %v2536 = vpop.permute.xlu0 %2535
        %v2538 = vmul.f32 %v2526, %v2536
        %v2539 = vmul.f32 %v2527, %v2536
        %v2540 = vmul.f32 %v2528, %v2536
        %v2541 = vmul.f32 %v2529, %v2536
        %v2542 = vmul.f32 %v2530, %v2536
        %v2543 = vmul.f32 %v2531, %v2536
        %v2544 = vmul.f32 %v2532, %v2536
        %v2545 = vmul.f32 %v2533, %v2536
        %v2546 = vadd.f32 %v2517, %v2538
        %v2547 = vadd.f32 %v2518, %v2539
        %v2548 = vadd.f32 %v2519, %v2540
        %v2549 = vadd.f32 %v2520, %v2541
        %v2550 = vadd.f32 %v2521, %v2542
        %v2551 = vadd.f32 %v2522, %v2543
        %v2552 = vadd.f32 %v2523, %v2544
        %v2553 = vadd.f32 %v2524, %v2545
        %s2554 = scalar_lea.vmem %s3, 2432
        %v2555 = vld [vmem:[%s2554] sm:$0xff]
        %v2556 = vld [vmem:[%s2554 + $0x8] sm:$0xff]
        %v2557 = vld [vmem:[%s2554 + $0x10] sm:$0xff]
        %v2558 = vld [vmem:[%s2554 + $0x18] sm:$0xff]
        %v2559 = vld [vmem:[%s2554 + $0x20] sm:$0xff]
        %v2560 = vld [vmem:[%s2554 + $0x28] sm:$0xff]
        %v2561 = vld [vmem:[%s2554 + $0x30] sm:$0xff]
        %v2562 = vld [vmem:[%s2554 + $0x38] sm:$0xff]
        %2563 = vrot.lane.b32.xlu0 %v2499, 126
        %v2564 = vpop.permute.xlu0 %2563
        %v2566 = vmul.f32 %v2555, %v2564
        %v2567 = vmul.f32 %v2556, %v2564
        %v2568 = vmul.f32 %v2557, %v2564
        %v2569 = vmul.f32 %v2558, %v2564
        %v2570 = vmul.f32 %v2559, %v2564
        %v2571 = vmul.f32 %v2560, %v2564
        %v2572 = vmul.f32 %v2561, %v2564
        %v2573 = vmul.f32 %v2562, %v2564
        %v2574 = vadd.f32 %v2546, %v2566
        %v2575 = vadd.f32 %v2547, %v2567
        %v2576 = vadd.f32 %v2548, %v2568
        %v2577 = vadd.f32 %v2549, %v2569
        %v2578 = vadd.f32 %v2550, %v2570
        %v2579 = vadd.f32 %v2551, %v2571
        %v2580 = vadd.f32 %v2552, %v2572
        %v2581 = vadd.f32 %v2553, %v2573
        %v2582 = vld [vmem:[%s2498 + $0x1] sm:$0xff]
        %s2583 = scalar_lea.vmem %s3, 2496
        %v2584 = vld [vmem:[%s2583] sm:$0xff]
        %v2585 = vld [vmem:[%s2583 + $0x8] sm:$0xff]
        %v2586 = vld [vmem:[%s2583 + $0x10] sm:$0xff]
        %v2587 = vld [vmem:[%s2583 + $0x18] sm:$0xff]
        %v2588 = vld [vmem:[%s2583 + $0x20] sm:$0xff]
        %v2589 = vld [vmem:[%s2583 + $0x28] sm:$0xff]
        %v2590 = vld [vmem:[%s2583 + $0x30] sm:$0xff]
        %v2591 = vld [vmem:[%s2583 + $0x38] sm:$0xff]
        %v2592 = vmul.f32 %v2584, %v2582
        %v2593 = vmul.f32 %v2585, %v2582
        %v2594 = vmul.f32 %v2586, %v2582
        %v2595 = vmul.f32 %v2587, %v2582
        %v2596 = vmul.f32 %v2588, %v2582
        %v2597 = vmul.f32 %v2589, %v2582
        %v2598 = vmul.f32 %v2590, %v2582
        %v2599 = vmul.f32 %v2591, %v2582
        %v2600 = vadd.f32 %v2574, %v2592
        %v2601 = vadd.f32 %v2575, %v2593
        %v2602 = vadd.f32 %v2576, %v2594
        %v2603 = vadd.f32 %v2577, %v2595
        %v2604 = vadd.f32 %v2578, %v2596
        %v2605 = vadd.f32 %v2579, %v2597
        %v2606 = vadd.f32 %v2580, %v2598
        %v2607 = vadd.f32 %v2581, %v2599
        %s2608 = scalar_lea.vmem %s3, 2560
        %v2609 = vld [vmem:[%s2608] sm:$0xff]
        %v2610 = vld [vmem:[%s2608 + $0x8] sm:$0xff]
        %v2611 = vld [vmem:[%s2608 + $0x10] sm:$0xff]
        %v2612 = vld [vmem:[%s2608 + $0x18] sm:$0xff]
        %v2613 = vld [vmem:[%s2608 + $0x20] sm:$0xff]
        %v2614 = vld [vmem:[%s2608 + $0x28] sm:$0xff]
        %v2615 = vld [vmem:[%s2608 + $0x30] sm:$0xff]
        %v2616 = vld [vmem:[%s2608 + $0x38] sm:$0xff]
        %2618 = vrot.lane.b32.xlu0 %v2582, 127
        %v2619 = vpop.permute.xlu0 %2618
        %v2621 = vmul.f32 %v2609, %v2619
        %v2622 = vmul.f32 %v2610, %v2619
        %v2623 = vmul.f32 %v2611, %v2619
        %v2624 = vmul.f32 %v2612, %v2619
        %v2625 = vmul.f32 %v2613, %v2619
        %v2626 = vmul.f32 %v2614, %v2619
        %v2627 = vmul.f32 %v2615, %v2619
        %v2628 = vmul.f32 %v2616, %v2619
        %v2629 = vadd.f32 %v2600, %v2621
        %v2630 = vadd.f32 %v2601, %v2622
        %v2631 = vadd.f32 %v2602, %v2623
        %v2632 = vadd.f32 %v2603, %v2624
        %v2633 = vadd.f32 %v2604, %v2625
        %v2634 = vadd.f32 %v2605, %v2626
        %v2635 = vadd.f32 %v2606, %v2627
        %v2636 = vadd.f32 %v2607, %v2628
        %s2637 = scalar_lea.vmem %s3, 2624
        %v2638 = vld [vmem:[%s2637] sm:$0xff]
        %v2639 = vld [vmem:[%s2637 + $0x8] sm:$0xff]
        %v2640 = vld [vmem:[%s2637 + $0x10] sm:$0xff]
        %v2641 = vld [vmem:[%s2637 + $0x18] sm:$0xff]
        %v2642 = vld [vmem:[%s2637 + $0x20] sm:$0xff]
        %v2643 = vld [vmem:[%s2637 + $0x28] sm:$0xff]
        %v2644 = vld [vmem:[%s2637 + $0x30] sm:$0xff]
        %v2645 = vld [vmem:[%s2637 + $0x38] sm:$0xff]
        %2646 = vrot.lane.b32.xlu0 %v2582, 126
        %v2647 = vpop.permute.xlu0 %2646
        %v2649 = vmul.f32 %v2638, %v2647
        %v2650 = vmul.f32 %v2639, %v2647
        %v2651 = vmul.f32 %v2640, %v2647
        %v2652 = vmul.f32 %v2641, %v2647
        %v2653 = vmul.f32 %v2642, %v2647
        %v2654 = vmul.f32 %v2643, %v2647
        %v2655 = vmul.f32 %v2644, %v2647
        %v2656 = vmul.f32 %v2645, %v2647
        %v2657 = vadd.f32 %v2629, %v2649
        %v2658 = vadd.f32 %v2630, %v2650
        %v2659 = vadd.f32 %v2631, %v2651
        %v2660 = vadd.f32 %v2632, %v2652
        %v2661 = vadd.f32 %v2633, %v2653
        %v2662 = vadd.f32 %v2634, %v2654
        %v2663 = vadd.f32 %v2635, %v2655
        %v2664 = vadd.f32 %v2636, %v2656
        %v2665 = vld [vmem:[%s2498 + $0x2] sm:$0xff]
        %s2666 = scalar_lea.vmem %s3, 2688
        %v2667 = vld [vmem:[%s2666] sm:$0xff]
        %v2668 = vld [vmem:[%s2666 + $0x8] sm:$0xff]
        %v2669 = vld [vmem:[%s2666 + $0x10] sm:$0xff]
        %v2670 = vld [vmem:[%s2666 + $0x18] sm:$0xff]
        %v2671 = vld [vmem:[%s2666 + $0x20] sm:$0xff]
        %v2672 = vld [vmem:[%s2666 + $0x28] sm:$0xff]
        %v2673 = vld [vmem:[%s2666 + $0x30] sm:$0xff]
        %v2674 = vld [vmem:[%s2666 + $0x38] sm:$0xff]
        %v2675 = vmul.f32 %v2667, %v2665
        %v2676 = vmul.f32 %v2668, %v2665
        %v2677 = vmul.f32 %v2669, %v2665
        %v2678 = vmul.f32 %v2670, %v2665
        %v2679 = vmul.f32 %v2671, %v2665
        %v2680 = vmul.f32 %v2672, %v2665
        %v2681 = vmul.f32 %v2673, %v2665
        %v2682 = vmul.f32 %v2674, %v2665
        %v2683 = vadd.f32 %v2657, %v2675
        %v2684 = vadd.f32 %v2658, %v2676
        %v2685 = vadd.f32 %v2659, %v2677
        %v2686 = vadd.f32 %v2660, %v2678
        %v2687 = vadd.f32 %v2661, %v2679
        %v2688 = vadd.f32 %v2662, %v2680
        %v2689 = vadd.f32 %v2663, %v2681
        %v2690 = vadd.f32 %v2664, %v2682
        %s2691 = scalar_lea.vmem %s3, 2752
        %v2692 = vld [vmem:[%s2691] sm:$0xff]
        %v2693 = vld [vmem:[%s2691 + $0x8] sm:$0xff]
        %v2694 = vld [vmem:[%s2691 + $0x10] sm:$0xff]
        %v2695 = vld [vmem:[%s2691 + $0x18] sm:$0xff]
        %v2696 = vld [vmem:[%s2691 + $0x20] sm:$0xff]
        %v2697 = vld [vmem:[%s2691 + $0x28] sm:$0xff]
        %v2698 = vld [vmem:[%s2691 + $0x30] sm:$0xff]
        %v2699 = vld [vmem:[%s2691 + $0x38] sm:$0xff]
        %2701 = vrot.lane.b32.xlu0 %v2665, 127
        %v2702 = vpop.permute.xlu0 %2701
        %v2704 = vmul.f32 %v2692, %v2702
        %v2705 = vmul.f32 %v2693, %v2702
        %v2706 = vmul.f32 %v2694, %v2702
        %v2707 = vmul.f32 %v2695, %v2702
        %v2708 = vmul.f32 %v2696, %v2702
        %v2709 = vmul.f32 %v2697, %v2702
        %v2710 = vmul.f32 %v2698, %v2702
        %v2711 = vmul.f32 %v2699, %v2702
        %v2712 = vadd.f32 %v2683, %v2704
        %v2713 = vadd.f32 %v2684, %v2705
        %v2714 = vadd.f32 %v2685, %v2706
        %v2715 = vadd.f32 %v2686, %v2707
        %v2716 = vadd.f32 %v2687, %v2708
        %v2717 = vadd.f32 %v2688, %v2709
        %v2718 = vadd.f32 %v2689, %v2710
        %v2719 = vadd.f32 %v2690, %v2711
        %s2720 = scalar_lea.vmem %s3, 2816
        %v2721 = vld [vmem:[%s2720] sm:$0xff]
        %v2722 = vld [vmem:[%s2720 + $0x8] sm:$0xff]
        %v2723 = vld [vmem:[%s2720 + $0x10] sm:$0xff]
        %v2724 = vld [vmem:[%s2720 + $0x18] sm:$0xff]
        %v2725 = vld [vmem:[%s2720 + $0x20] sm:$0xff]
        %v2726 = vld [vmem:[%s2720 + $0x28] sm:$0xff]
        %v2727 = vld [vmem:[%s2720 + $0x30] sm:$0xff]
        %v2728 = vld [vmem:[%s2720 + $0x38] sm:$0xff]
        %2729 = vrot.lane.b32.xlu0 %v2665, 126
        %v2730 = vpop.permute.xlu0 %2729
        %v2732 = vmul.f32 %v2721, %v2730
        %v2733 = vmul.f32 %v2722, %v2730
        %v2734 = vmul.f32 %v2723, %v2730
        %v2735 = vmul.f32 %v2724, %v2730
        %v2736 = vmul.f32 %v2725, %v2730
        %v2737 = vmul.f32 %v2726, %v2730
        %v2738 = vmul.f32 %v2727, %v2730
        %v2739 = vmul.f32 %v2728, %v2730
        %v2740 = vadd.f32 %v2712, %v2732
        %v2741 = vadd.f32 %v2713, %v2733
        %v2742 = vadd.f32 %v2714, %v2734
        %v2743 = vadd.f32 %v2715, %v2735
        %v2744 = vadd.f32 %v2716, %v2736
        %v2745 = vadd.f32 %v2717, %v2737
        %v2746 = vadd.f32 %v2718, %v2738
        %v2747 = vadd.f32 %v2719, %v2739
        %s2748 = scalar_lea.vmem [#allocation2], 80
        %v2749 = vld [vmem:[%s2748] sm:$0xff]
        %s2750 = scalar_lea.vmem %s3, 2880
        %v2751 = vld [vmem:[%s2750] sm:$0xff]
        %v2752 = vld [vmem:[%s2750 + $0x8] sm:$0xff]
        %v2753 = vld [vmem:[%s2750 + $0x10] sm:$0xff]
        %v2754 = vld [vmem:[%s2750 + $0x18] sm:$0xff]
        %v2755 = vld [vmem:[%s2750 + $0x20] sm:$0xff]
        %v2756 = vld [vmem:[%s2750 + $0x28] sm:$0xff]
        %v2757 = vld [vmem:[%s2750 + $0x30] sm:$0xff]
        %v2758 = vld [vmem:[%s2750 + $0x38] sm:$0xff]
        %v2759 = vmul.f32 %v2751, %v2749
        %v2760 = vmul.f32 %v2752, %v2749
        %v2761 = vmul.f32 %v2753, %v2749
        %v2762 = vmul.f32 %v2754, %v2749
        %v2763 = vmul.f32 %v2755, %v2749
        %v2764 = vmul.f32 %v2756, %v2749
        %v2765 = vmul.f32 %v2757, %v2749
        %v2766 = vmul.f32 %v2758, %v2749
        %v2767 = vadd.f32 %v2740, %v2759
        %v2768 = vadd.f32 %v2741, %v2760
        %v2769 = vadd.f32 %v2742, %v2761
        %v2770 = vadd.f32 %v2743, %v2762
        %v2771 = vadd.f32 %v2744, %v2763
        %v2772 = vadd.f32 %v2745, %v2764
        %v2773 = vadd.f32 %v2746, %v2765
        %v2774 = vadd.f32 %v2747, %v2766
        %s2775 = scalar_lea.vmem %s3, 2944
        %v2776 = vld [vmem:[%s2775] sm:$0xff]
        %v2777 = vld [vmem:[%s2775 + $0x8] sm:$0xff]
        %v2778 = vld [vmem:[%s2775 + $0x10] sm:$0xff]
        %v2779 = vld [vmem:[%s2775 + $0x18] sm:$0xff]
        %v2780 = vld [vmem:[%s2775 + $0x20] sm:$0xff]
        %v2781 = vld [vmem:[%s2775 + $0x28] sm:$0xff]
        %v2782 = vld [vmem:[%s2775 + $0x30] sm:$0xff]
        %v2783 = vld [vmem:[%s2775 + $0x38] sm:$0xff]
        %2785 = vrot.lane.b32.xlu0 %v2749, 127
        %v2786 = vpop.permute.xlu0 %2785
        %v2788 = vmul.f32 %v2776, %v2786
        %v2789 = vmul.f32 %v2777, %v2786
        %v2790 = vmul.f32 %v2778, %v2786
        %v2791 = vmul.f32 %v2779, %v2786
        %v2792 = vmul.f32 %v2780, %v2786
        %v2793 = vmul.f32 %v2781, %v2786
        %v2794 = vmul.f32 %v2782, %v2786
        %v2795 = vmul.f32 %v2783, %v2786
        %v2796 = vadd.f32 %v2767, %v2788
        %v2797 = vadd.f32 %v2768, %v2789
        %v2798 = vadd.f32 %v2769, %v2790
        %v2799 = vadd.f32 %v2770, %v2791
        %v2800 = vadd.f32 %v2771, %v2792
        %v2801 = vadd.f32 %v2772, %v2793
        %v2802 = vadd.f32 %v2773, %v2794
        %v2803 = vadd.f32 %v2774, %v2795
        %s2804 = scalar_lea.vmem %s3, 3008
        %v2805 = vld [vmem:[%s2804] sm:$0xff]
        %v2806 = vld [vmem:[%s2804 + $0x8] sm:$0xff]
        %v2807 = vld [vmem:[%s2804 + $0x10] sm:$0xff]
        %v2808 = vld [vmem:[%s2804 + $0x18] sm:$0xff]
        %v2809 = vld [vmem:[%s2804 + $0x20] sm:$0xff]
        %v2810 = vld [vmem:[%s2804 + $0x28] sm:$0xff]
        %v2811 = vld [vmem:[%s2804 + $0x30] sm:$0xff]
        %v2812 = vld [vmem:[%s2804 + $0x38] sm:$0xff]
        %2813 = vrot.lane.b32.xlu0 %v2749, 126
        %v2814 = vpop.permute.xlu0 %2813
        %v2816 = vmul.f32 %v2805, %v2814
        %v2817 = vmul.f32 %v2806, %v2814
        %v2818 = vmul.f32 %v2807, %v2814
        %v2819 = vmul.f32 %v2808, %v2814
        %v2820 = vmul.f32 %v2809, %v2814
        %v2821 = vmul.f32 %v2810, %v2814
        %v2822 = vmul.f32 %v2811, %v2814
        %v2823 = vmul.f32 %v2812, %v2814
        %v2824 = vadd.f32 %v2796, %v2816
        %v2825 = vadd.f32 %v2797, %v2817
        %v2826 = vadd.f32 %v2798, %v2818
        %v2827 = vadd.f32 %v2799, %v2819
        %v2828 = vadd.f32 %v2800, %v2820
        %v2829 = vadd.f32 %v2801, %v2821
        %v2830 = vadd.f32 %v2802, %v2822
        %v2831 = vadd.f32 %v2803, %v2823
        %v2832 = vld [vmem:[%s2748 + $0x1] sm:$0xff]
        %s2833 = scalar_lea.vmem %s3, 3072
        %v2834 = vld [vmem:[%s2833] sm:$0xff]
        %v2835 = vld [vmem:[%s2833 + $0x8] sm:$0xff]
        %v2836 = vld [vmem:[%s2833 + $0x10] sm:$0xff]
        %v2837 = vld [vmem:[%s2833 + $0x18] sm:$0xff]
        %v2838 = vld [vmem:[%s2833 + $0x20] sm:$0xff]
        %v2839 = vld [vmem:[%s2833 + $0x28] sm:$0xff]
        %v2840 = vld [vmem:[%s2833 + $0x30] sm:$0xff]
        %v2841 = vld [vmem:[%s2833 + $0x38] sm:$0xff]
        %v2842 = vmul.f32 %v2834, %v2832
        %v2843 = vmul.f32 %v2835, %v2832
        %v2844 = vmul.f32 %v2836, %v2832
        %v2845 = vmul.f32 %v2837, %v2832
        %v2846 = vmul.f32 %v2838, %v2832
        %v2847 = vmul.f32 %v2839, %v2832
        %v2848 = vmul.f32 %v2840, %v2832
        %v2849 = vmul.f32 %v2841, %v2832
        %v2850 = vadd.f32 %v2824, %v2842
        %v2851 = vadd.f32 %v2825, %v2843
        %v2852 = vadd.f32 %v2826, %v2844
        %v2853 = vadd.f32 %v2827, %v2845
        %v2854 = vadd.f32 %v2828, %v2846
        %v2855 = vadd.f32 %v2829, %v2847
        %v2856 = vadd.f32 %v2830, %v2848
        %v2857 = vadd.f32 %v2831, %v2849
        %s2858 = scalar_lea.vmem %s3, 3136
        %v2859 = vld [vmem:[%s2858] sm:$0xff]
        %v2860 = vld [vmem:[%s2858 + $0x8] sm:$0xff]
        %v2861 = vld [vmem:[%s2858 + $0x10] sm:$0xff]
        %v2862 = vld [vmem:[%s2858 + $0x18] sm:$0xff]
        %v2863 = vld [vmem:[%s2858 + $0x20] sm:$0xff]
        %v2864 = vld [vmem:[%s2858 + $0x28] sm:$0xff]
        %v2865 = vld [vmem:[%s2858 + $0x30] sm:$0xff]
        %v2866 = vld [vmem:[%s2858 + $0x38] sm:$0xff]
        %2868 = vrot.lane.b32.xlu0 %v2832, 127
        %v2869 = vpop.permute.xlu0 %2868
        %v2871 = vmul.f32 %v2859, %v2869
        %v2872 = vmul.f32 %v2860, %v2869
        %v2873 = vmul.f32 %v2861, %v2869
        %v2874 = vmul.f32 %v2862, %v2869
        %v2875 = vmul.f32 %v2863, %v2869
        %v2876 = vmul.f32 %v2864, %v2869
        %v2877 = vmul.f32 %v2865, %v2869
        %v2878 = vmul.f32 %v2866, %v2869
        %v2879 = vadd.f32 %v2850, %v2871
        %v2880 = vadd.f32 %v2851, %v2872
        %v2881 = vadd.f32 %v2852, %v2873
        %v2882 = vadd.f32 %v2853, %v2874
        %v2883 = vadd.f32 %v2854, %v2875
        %v2884 = vadd.f32 %v2855, %v2876
        %v2885 = vadd.f32 %v2856, %v2877
        %v2886 = vadd.f32 %v2857, %v2878
        %s2887 = scalar_lea.vmem %s3, 3200
        %v2888 = vld [vmem:[%s2887] sm:$0xff]
        %v2889 = vld [vmem:[%s2887 + $0x8] sm:$0xff]
        %v2890 = vld [vmem:[%s2887 + $0x10] sm:$0xff]
        %v2891 = vld [vmem:[%s2887 + $0x18] sm:$0xff]
        %v2892 = vld [vmem:[%s2887 + $0x20] sm:$0xff]
        %v2893 = vld [vmem:[%s2887 + $0x28] sm:$0xff]
        %v2894 = vld [vmem:[%s2887 + $0x30] sm:$0xff]
        %v2895 = vld [vmem:[%s2887 + $0x38] sm:$0xff]
        %2896 = vrot.lane.b32.xlu0 %v2832, 126
        %v2897 = vpop.permute.xlu0 %2896
        %v2899 = vmul.f32 %v2888, %v2897
        %v2900 = vmul.f32 %v2889, %v2897
        %v2901 = vmul.f32 %v2890, %v2897
        %v2902 = vmul.f32 %v2891, %v2897
        %v2903 = vmul.f32 %v2892, %v2897
        %v2904 = vmul.f32 %v2893, %v2897
        %v2905 = vmul.f32 %v2894, %v2897
        %v2906 = vmul.f32 %v2895, %v2897
        %v2907 = vadd.f32 %v2879, %v2899
        %v2908 = vadd.f32 %v2880, %v2900
        %v2909 = vadd.f32 %v2881, %v2901
        %v2910 = vadd.f32 %v2882, %v2902
        %v2911 = vadd.f32 %v2883, %v2903
        %v2912 = vadd.f32 %v2884, %v2904
        %v2913 = vadd.f32 %v2885, %v2905
        %v2914 = vadd.f32 %v2886, %v2906
        %v2915 = vld [vmem:[%s2748 + $0x2] sm:$0xff]
        %s2916 = scalar_lea.vmem %s3, 3264
        %v2917 = vld [vmem:[%s2916] sm:$0xff]
        %v2918 = vld [vmem:[%s2916 + $0x8] sm:$0xff]
        %v2919 = vld [vmem:[%s2916 + $0x10] sm:$0xff]
        %v2920 = vld [vmem:[%s2916 + $0x18] sm:$0xff]
        %v2921 = vld [vmem:[%s2916 + $0x20] sm:$0xff]
        %v2922 = vld [vmem:[%s2916 + $0x28] sm:$0xff]
        %v2923 = vld [vmem:[%s2916 + $0x30] sm:$0xff]
        %v2924 = vld [vmem:[%s2916 + $0x38] sm:$0xff]
        %v2925 = vmul.f32 %v2917, %v2915
        %v2926 = vmul.f32 %v2918, %v2915
        %v2927 = vmul.f32 %v2919, %v2915
        %v2928 = vmul.f32 %v2920, %v2915
        %v2929 = vmul.f32 %v2921, %v2915
        %v2930 = vmul.f32 %v2922, %v2915
        %v2931 = vmul.f32 %v2923, %v2915
        %v2932 = vmul.f32 %v2924, %v2915
        %v2933 = vadd.f32 %v2907, %v2925
        %v2934 = vadd.f32 %v2908, %v2926
        %v2935 = vadd.f32 %v2909, %v2927
        %v2936 = vadd.f32 %v2910, %v2928
        %v2937 = vadd.f32 %v2911, %v2929
        %v2938 = vadd.f32 %v2912, %v2930
        %v2939 = vadd.f32 %v2913, %v2931
        %v2940 = vadd.f32 %v2914, %v2932
        %s2941 = scalar_lea.vmem %s3, 3328
        %v2942 = vld [vmem:[%s2941] sm:$0xff]
        %v2943 = vld [vmem:[%s2941 + $0x8] sm:$0xff]
        %v2944 = vld [vmem:[%s2941 + $0x10] sm:$0xff]
        %v2945 = vld [vmem:[%s2941 + $0x18] sm:$0xff]
        %v2946 = vld [vmem:[%s2941 + $0x20] sm:$0xff]
        %v2947 = vld [vmem:[%s2941 + $0x28] sm:$0xff]
        %v2948 = vld [vmem:[%s2941 + $0x30] sm:$0xff]
        %v2949 = vld [vmem:[%s2941 + $0x38] sm:$0xff]
        %2951 = vrot.lane.b32.xlu0 %v2915, 127
        %v2952 = vpop.permute.xlu0 %2951
        %v2954 = vmul.f32 %v2942, %v2952
        %v2955 = vmul.f32 %v2943, %v2952
        %v2956 = vmul.f32 %v2944, %v2952
        %v2957 = vmul.f32 %v2945, %v2952
        %v2958 = vmul.f32 %v2946, %v2952
        %v2959 = vmul.f32 %v2947, %v2952
        %v2960 = vmul.f32 %v2948, %v2952
        %v2961 = vmul.f32 %v2949, %v2952
        %v2962 = vadd.f32 %v2933, %v2954
        %v2963 = vadd.f32 %v2934, %v2955
        %v2964 = vadd.f32 %v2935, %v2956
        %v2965 = vadd.f32 %v2936, %v2957
        %v2966 = vadd.f32 %v2937, %v2958
        %v2967 = vadd.f32 %v2938, %v2959
        %v2968 = vadd.f32 %v2939, %v2960
        %v2969 = vadd.f32 %v2940, %v2961
        %s2970 = scalar_lea.vmem %s3, 3392
        %v2971 = vld [vmem:[%s2970] sm:$0xff]
        %v2972 = vld [vmem:[%s2970 + $0x8] sm:$0xff]
        %v2973 = vld [vmem:[%s2970 + $0x10] sm:$0xff]
        %v2974 = vld [vmem:[%s2970 + $0x18] sm:$0xff]
        %v2975 = vld [vmem:[%s2970 + $0x20] sm:$0xff]
        %v2976 = vld [vmem:[%s2970 + $0x28] sm:$0xff]
        %v2977 = vld [vmem:[%s2970 + $0x30] sm:$0xff]
        %v2978 = vld [vmem:[%s2970 + $0x38] sm:$0xff]
        %2979 = vrot.lane.b32.xlu0 %v2915, 126
        %v2980 = vpop.permute.xlu0 %2979
        %v2982 = vmul.f32 %v2971, %v2980
        %v2983 = vmul.f32 %v2972, %v2980
        %v2984 = vmul.f32 %v2973, %v2980
        %v2985 = vmul.f32 %v2974, %v2980
        %v2986 = vmul.f32 %v2975, %v2980
        %v2987 = vmul.f32 %v2976, %v2980
        %v2988 = vmul.f32 %v2977, %v2980
        %v2989 = vmul.f32 %v2978, %v2980
        %v2990 = vadd.f32 %v2962, %v2982
        %v2991 = vadd.f32 %v2963, %v2983
        %v2992 = vadd.f32 %v2964, %v2984
        %v2993 = vadd.f32 %v2965, %v2985
        %v2994 = vadd.f32 %v2966, %v2986
        %v2995 = vadd.f32 %v2967, %v2987
        %v2996 = vadd.f32 %v2968, %v2988
        %v2997 = vadd.f32 %v2969, %v2989
        %s2998 = scalar_lea.vmem [#allocation2], 96
        %v2999 = vld [vmem:[%s2998] sm:$0xff]
        %s3000 = scalar_lea.vmem %s3, 3456
        %v3001 = vld [vmem:[%s3000] sm:$0xff]
        %v3002 = vld [vmem:[%s3000 + $0x8] sm:$0xff]
        %v3003 = vld [vmem:[%s3000 + $0x10] sm:$0xff]
        %v3004 = vld [vmem:[%s3000 + $0x18] sm:$0xff]
        %v3005 = vld [vmem:[%s3000 + $0x20] sm:$0xff]
        %v3006 = vld [vmem:[%s3000 + $0x28] sm:$0xff]
        %v3007 = vld [vmem:[%s3000 + $0x30] sm:$0xff]
        %v3008 = vld [vmem:[%s3000 + $0x38] sm:$0xff]
        %v3009 = vmul.f32 %v3001, %v2999
        %v3010 = vmul.f32 %v3002, %v2999
        %v3011 = vmul.f32 %v3003, %v2999
        %v3012 = vmul.f32 %v3004, %v2999
        %v3013 = vmul.f32 %v3005, %v2999
        %v3014 = vmul.f32 %v3006, %v2999
        %v3015 = vmul.f32 %v3007, %v2999
        %v3016 = vmul.f32 %v3008, %v2999
        %v3017 = vadd.f32 %v2990, %v3009
        %v3018 = vadd.f32 %v2991, %v3010
        %v3019 = vadd.f32 %v2992, %v3011
        %v3020 = vadd.f32 %v2993, %v3012
        %v3021 = vadd.f32 %v2994, %v3013
        %v3022 = vadd.f32 %v2995, %v3014
        %v3023 = vadd.f32 %v2996, %v3015
        %v3024 = vadd.f32 %v2997, %v3016
        %s3025 = scalar_lea.vmem %s3, 3520
        %v3026 = vld [vmem:[%s3025] sm:$0xff]
        %v3027 = vld [vmem:[%s3025 + $0x8] sm:$0xff]
        %v3028 = vld [vmem:[%s3025 + $0x10] sm:$0xff]
        %v3029 = vld [vmem:[%s3025 + $0x18] sm:$0xff]
        %v3030 = vld [vmem:[%s3025 + $0x20] sm:$0xff]
        %v3031 = vld [vmem:[%s3025 + $0x28] sm:$0xff]
        %v3032 = vld [vmem:[%s3025 + $0x30] sm:$0xff]
        %v3033 = vld [vmem:[%s3025 + $0x38] sm:$0xff]
        %3035 = vrot.lane.b32.xlu0 %v2999, 127
        %v3036 = vpop.permute.xlu0 %3035
        %v3038 = vmul.f32 %v3026, %v3036
        %v3039 = vmul.f32 %v3027, %v3036
        %v3040 = vmul.f32 %v3028, %v3036
        %v3041 = vmul.f32 %v3029, %v3036
        %v3042 = vmul.f32 %v3030, %v3036
        %v3043 = vmul.f32 %v3031, %v3036
        %v3044 = vmul.f32 %v3032, %v3036
        %v3045 = vmul.f32 %v3033, %v3036
        %v3046 = vadd.f32 %v3017, %v3038
        %v3047 = vadd.f32 %v3018, %v3039
        %v3048 = vadd.f32 %v3019, %v3040
        %v3049 = vadd.f32 %v3020, %v3041
        %v3050 = vadd.f32 %v3021, %v3042
        %v3051 = vadd.f32 %v3022, %v3043
        %v3052 = vadd.f32 %v3023, %v3044
        %v3053 = vadd.f32 %v3024, %v3045
        %s3054 = scalar_lea.vmem %s3, 3584
        %v3055 = vld [vmem:[%s3054] sm:$0xff]
        %v3056 = vld [vmem:[%s3054 + $0x8] sm:$0xff]
        %v3057 = vld [vmem:[%s3054 + $0x10] sm:$0xff]
        %v3058 = vld [vmem:[%s3054 + $0x18] sm:$0xff]
        %v3059 = vld [vmem:[%s3054 + $0x20] sm:$0xff]
        %v3060 = vld [vmem:[%s3054 + $0x28] sm:$0xff]
        %v3061 = vld [vmem:[%s3054 + $0x30] sm:$0xff]
        %v3062 = vld [vmem:[%s3054 + $0x38] sm:$0xff]
        %3063 = vrot.lane.b32.xlu0 %v2999, 126
        %v3064 = vpop.permute.xlu0 %3063
        %v3066 = vmul.f32 %v3055, %v3064
        %v3067 = vmul.f32 %v3056, %v3064
        %v3068 = vmul.f32 %v3057, %v3064
        %v3069 = vmul.f32 %v3058, %v3064
        %v3070 = vmul.f32 %v3059, %v3064
        %v3071 = vmul.f32 %v3060, %v3064
        %v3072 = vmul.f32 %v3061, %v3064
        %v3073 = vmul.f32 %v3062, %v3064
        %v3074 = vadd.f32 %v3046, %v3066
        %v3075 = vadd.f32 %v3047, %v3067
        %v3076 = vadd.f32 %v3048, %v3068
        %v3077 = vadd.f32 %v3049, %v3069
        %v3078 = vadd.f32 %v3050, %v3070
        %v3079 = vadd.f32 %v3051, %v3071
        %v3080 = vadd.f32 %v3052, %v3072
        %v3081 = vadd.f32 %v3053, %v3073
        %v3082 = vld [vmem:[%s2998 + $0x1] sm:$0xff]
        %s3083 = scalar_lea.vmem %s3, 3648
        %v3084 = vld [vmem:[%s3083] sm:$0xff]
        %v3085 = vld [vmem:[%s3083 + $0x8] sm:$0xff]
        %v3086 = vld [vmem:[%s3083 + $0x10] sm:$0xff]
        %v3087 = vld [vmem:[%s3083 + $0x18] sm:$0xff]
        %v3088 = vld [vmem:[%s3083 + $0x20] sm:$0xff]
        %v3089 = vld [vmem:[%s3083 + $0x28] sm:$0xff]
        %v3090 = vld [vmem:[%s3083 + $0x30] sm:$0xff]
        %v3091 = vld [vmem:[%s3083 + $0x38] sm:$0xff]
        %v3092 = vmul.f32 %v3084, %v3082
        %v3093 = vmul.f32 %v3085, %v3082
        %v3094 = vmul.f32 %v3086, %v3082
        %v3095 = vmul.f32 %v3087, %v3082
        %v3096 = vmul.f32 %v3088, %v3082
        %v3097 = vmul.f32 %v3089, %v3082
        %v3098 = vmul.f32 %v3090, %v3082
        %v3099 = vmul.f32 %v3091, %v3082
        %v3100 = vadd.f32 %v3074, %v3092
        %v3101 = vadd.f32 %v3075, %v3093
        %v3102 = vadd.f32 %v3076, %v3094
        %v3103 = vadd.f32 %v3077, %v3095
        %v3104 = vadd.f32 %v3078, %v3096
        %v3105 = vadd.f32 %v3079, %v3097
        %v3106 = vadd.f32 %v3080, %v3098
        %v3107 = vadd.f32 %v3081, %v3099
        %s3108 = scalar_lea.vmem %s3, 3712
        %v3109 = vld [vmem:[%s3108] sm:$0xff]
        %v3110 = vld [vmem:[%s3108 + $0x8] sm:$0xff]
        %v3111 = vld [vmem:[%s3108 + $0x10] sm:$0xff]
        %v3112 = vld [vmem:[%s3108 + $0x18] sm:$0xff]
        %v3113 = vld [vmem:[%s3108 + $0x20] sm:$0xff]
        %v3114 = vld [vmem:[%s3108 + $0x28] sm:$0xff]
        %v3115 = vld [vmem:[%s3108 + $0x30] sm:$0xff]
        %v3116 = vld [vmem:[%s3108 + $0x38] sm:$0xff]
        %3118 = vrot.lane.b32.xlu0 %v3082, 127
        %v3119 = vpop.permute.xlu0 %3118
        %v3121 = vmul.f32 %v3109, %v3119
        %v3122 = vmul.f32 %v3110, %v3119
        %v3123 = vmul.f32 %v3111, %v3119
        %v3124 = vmul.f32 %v3112, %v3119
        %v3125 = vmul.f32 %v3113, %v3119
        %v3126 = vmul.f32 %v3114, %v3119
        %v3127 = vmul.f32 %v3115, %v3119
        %v3128 = vmul.f32 %v3116, %v3119
        %v3129 = vadd.f32 %v3100, %v3121
        %v3130 = vadd.f32 %v3101, %v3122
        %v3131 = vadd.f32 %v3102, %v3123
        %v3132 = vadd.f32 %v3103, %v3124
        %v3133 = vadd.f32 %v3104, %v3125
        %v3134 = vadd.f32 %v3105, %v3126
        %v3135 = vadd.f32 %v3106, %v3127
        %v3136 = vadd.f32 %v3107, %v3128
        %s3137 = scalar_lea.vmem %s3, 3776
        %v3138 = vld [vmem:[%s3137] sm:$0xff]
        %v3139 = vld [vmem:[%s3137 + $0x8] sm:$0xff]
        %v3140 = vld [vmem:[%s3137 + $0x10] sm:$0xff]
        %v3141 = vld [vmem:[%s3137 + $0x18] sm:$0xff]
        %v3142 = vld [vmem:[%s3137 + $0x20] sm:$0xff]
        %v3143 = vld [vmem:[%s3137 + $0x28] sm:$0xff]
        %v3144 = vld [vmem:[%s3137 + $0x30] sm:$0xff]
        %v3145 = vld [vmem:[%s3137 + $0x38] sm:$0xff]
        %3146 = vrot.lane.b32.xlu0 %v3082, 126
        %v3147 = vpop.permute.xlu0 %3146
        %v3149 = vmul.f32 %v3138, %v3147
        %v3150 = vmul.f32 %v3139, %v3147
        %v3151 = vmul.f32 %v3140, %v3147
        %v3152 = vmul.f32 %v3141, %v3147
        %v3153 = vmul.f32 %v3142, %v3147
        %v3154 = vmul.f32 %v3143, %v3147
        %v3155 = vmul.f32 %v3144, %v3147
        %v3156 = vmul.f32 %v3145, %v3147
        %v3157 = vadd.f32 %v3129, %v3149
        %v3158 = vadd.f32 %v3130, %v3150
        %v3159 = vadd.f32 %v3131, %v3151
        %v3160 = vadd.f32 %v3132, %v3152
        %v3161 = vadd.f32 %v3133, %v3153
        %v3162 = vadd.f32 %v3134, %v3154
        %v3163 = vadd.f32 %v3135, %v3155
        %v3164 = vadd.f32 %v3136, %v3156
        %v3165 = vld [vmem:[%s2998 + $0x2] sm:$0xff]
        %s3166 = scalar_lea.vmem %s3, 3840
        %v3167 = vld [vmem:[%s3166] sm:$0xff]
        %v3168 = vld [vmem:[%s3166 + $0x8] sm:$0xff]
        %v3169 = vld [vmem:[%s3166 + $0x10] sm:$0xff]
        %v3170 = vld [vmem:[%s3166 + $0x18] sm:$0xff]
        %v3171 = vld [vmem:[%s3166 + $0x20] sm:$0xff]
        %v3172 = vld [vmem:[%s3166 + $0x28] sm:$0xff]
        %v3173 = vld [vmem:[%s3166 + $0x30] sm:$0xff]
        %v3174 = vld [vmem:[%s3166 + $0x38] sm:$0xff]
        %v3175 = vmul.f32 %v3167, %v3165
        %v3176 = vmul.f32 %v3168, %v3165
        %v3177 = vmul.f32 %v3169, %v3165
        %v3178 = vmul.f32 %v3170, %v3165
        %v3179 = vmul.f32 %v3171, %v3165
        %v3180 = vmul.f32 %v3172, %v3165
        %v3181 = vmul.f32 %v3173, %v3165
        %v3182 = vmul.f32 %v3174, %v3165
        %v3183 = vadd.f32 %v3157, %v3175
        %v3184 = vadd.f32 %v3158, %v3176
        %v3185 = vadd.f32 %v3159, %v3177
        %v3186 = vadd.f32 %v3160, %v3178
        %v3187 = vadd.f32 %v3161, %v3179
        %v3188 = vadd.f32 %v3162, %v3180
        %v3189 = vadd.f32 %v3163, %v3181
        %v3190 = vadd.f32 %v3164, %v3182
        %s3191 = scalar_lea.vmem %s3, 3904
        %v3192 = vld [vmem:[%s3191] sm:$0xff]
        %v3193 = vld [vmem:[%s3191 + $0x8] sm:$0xff]
        %v3194 = vld [vmem:[%s3191 + $0x10] sm:$0xff]
        %v3195 = vld [vmem:[%s3191 + $0x18] sm:$0xff]
        %v3196 = vld [vmem:[%s3191 + $0x20] sm:$0xff]
        %v3197 = vld [vmem:[%s3191 + $0x28] sm:$0xff]
        %v3198 = vld [vmem:[%s3191 + $0x30] sm:$0xff]
        %v3199 = vld [vmem:[%s3191 + $0x38] sm:$0xff]
        %3201 = vrot.lane.b32.xlu0 %v3165, 127
        %v3202 = vpop.permute.xlu0 %3201
        %v3204 = vmul.f32 %v3192, %v3202
        %v3205 = vmul.f32 %v3193, %v3202
        %v3206 = vmul.f32 %v3194, %v3202
        %v3207 = vmul.f32 %v3195, %v3202
        %v3208 = vmul.f32 %v3196, %v3202
        %v3209 = vmul.f32 %v3197, %v3202
        %v3210 = vmul.f32 %v3198, %v3202
        %v3211 = vmul.f32 %v3199, %v3202
        %v3212 = vadd.f32 %v3183, %v3204
        %v3213 = vadd.f32 %v3184, %v3205
        %v3214 = vadd.f32 %v3185, %v3206
        %v3215 = vadd.f32 %v3186, %v3207
        %v3216 = vadd.f32 %v3187, %v3208
        %v3217 = vadd.f32 %v3188, %v3209
        %v3218 = vadd.f32 %v3189, %v3210
        %v3219 = vadd.f32 %v3190, %v3211
        %s3220 = scalar_lea.vmem %s3, 3968
        %v3221 = vld [vmem:[%s3220] sm:$0xff]
        %v3222 = vld [vmem:[%s3220 + $0x8] sm:$0xff]
        %v3223 = vld [vmem:[%s3220 + $0x10] sm:$0xff]
        %v3224 = vld [vmem:[%s3220 + $0x18] sm:$0xff]
        %v3225 = vld [vmem:[%s3220 + $0x20] sm:$0xff]
        %v3226 = vld [vmem:[%s3220 + $0x28] sm:$0xff]
        %v3227 = vld [vmem:[%s3220 + $0x30] sm:$0xff]
        %v3228 = vld [vmem:[%s3220 + $0x38] sm:$0xff]
        %3229 = vrot.lane.b32.xlu0 %v3165, 126
        %v3230 = vpop.permute.xlu0 %3229
        %v3232 = vmul.f32 %v3221, %v3230
        %v3233 = vmul.f32 %v3222, %v3230
        %v3234 = vmul.f32 %v3223, %v3230
        %v3235 = vmul.f32 %v3224, %v3230
        %v3236 = vmul.f32 %v3225, %v3230
        %v3237 = vmul.f32 %v3226, %v3230
        %v3238 = vmul.f32 %v3227, %v3230
        %v3239 = vmul.f32 %v3228, %v3230
        %v3240 = vadd.f32 %v3212, %v3232
        %v3241 = vadd.f32 %v3213, %v3233
        %v3242 = vadd.f32 %v3214, %v3234
        %v3243 = vadd.f32 %v3215, %v3235
        %v3244 = vadd.f32 %v3216, %v3236
        %v3245 = vadd.f32 %v3217, %v3237
        %v3246 = vadd.f32 %v3218, %v3238
        %v3247 = vadd.f32 %v3219, %v3239
        %s3248 = scalar_lea.vmem [#allocation2], 112
        %v3249 = vld [vmem:[%s3248] sm:$0xff]
        %s3250 = scalar_lea.vmem %s3, 4032
        %v3251 = vld [vmem:[%s3250] sm:$0xff]
        %v3252 = vld [vmem:[%s3250 + $0x8] sm:$0xff]
        %v3253 = vld [vmem:[%s3250 + $0x10] sm:$0xff]
        %v3254 = vld [vmem:[%s3250 + $0x18] sm:$0xff]
        %v3255 = vld [vmem:[%s3250 + $0x20] sm:$0xff]
        %v3256 = vld [vmem:[%s3250 + $0x28] sm:$0xff]
        %v3257 = vld [vmem:[%s3250 + $0x30] sm:$0xff]
        %v3258 = vld [vmem:[%s3250 + $0x38] sm:$0xff]
        %v3259 = vmul.f32 %v3251, %v3249
        %v3260 = vmul.f32 %v3252, %v3249
        %v3261 = vmul.f32 %v3253, %v3249
        %v3262 = vmul.f32 %v3254, %v3249
        %v3263 = vmul.f32 %v3255, %v3249
        %v3264 = vmul.f32 %v3256, %v3249
        %v3265 = vmul.f32 %v3257, %v3249
        %v3266 = vmul.f32 %v3258, %v3249
        %v3267 = vadd.f32 %v3240, %v3259
        %v3268 = vadd.f32 %v3241, %v3260
        %v3269 = vadd.f32 %v3242, %v3261
        %v3270 = vadd.f32 %v3243, %v3262
        %v3271 = vadd.f32 %v3244, %v3263
        %v3272 = vadd.f32 %v3245, %v3264
        %v3273 = vadd.f32 %v3246, %v3265
        %v3274 = vadd.f32 %v3247, %v3266
        %s3275 = scalar_lea.vmem %s3, 4096
        %v3276 = vld [vmem:[%s3275] sm:$0xff]
        %v3277 = vld [vmem:[%s3275 + $0x8] sm:$0xff]
        %v3278 = vld [vmem:[%s3275 + $0x10] sm:$0xff]
        %v3279 = vld [vmem:[%s3275 + $0x18] sm:$0xff]
        %v3280 = vld [vmem:[%s3275 + $0x20] sm:$0xff]
        %v3281 = vld [vmem:[%s3275 + $0x28] sm:$0xff]
        %v3282 = vld [vmem:[%s3275 + $0x30] sm:$0xff]
        %v3283 = vld [vmem:[%s3275 + $0x38] sm:$0xff]
        %3285 = vrot.lane.b32.xlu0 %v3249, 127
        %v3286 = vpop.permute.xlu0 %3285
        %v3288 = vmul.f32 %v3276, %v3286
        %v3289 = vmul.f32 %v3277, %v3286
        %v3290 = vmul.f32 %v3278, %v3286
        %v3291 = vmul.f32 %v3279, %v3286
        %v3292 = vmul.f32 %v3280, %v3286
        %v3293 = vmul.f32 %v3281, %v3286
        %v3294 = vmul.f32 %v3282, %v3286
        %v3295 = vmul.f32 %v3283, %v3286
        %v3296 = vadd.f32 %v3267, %v3288
        %v3297 = vadd.f32 %v3268, %v3289
        %v3298 = vadd.f32 %v3269, %v3290
        %v3299 = vadd.f32 %v3270, %v3291
        %v3300 = vadd.f32 %v3271, %v3292
        %v3301 = vadd.f32 %v3272, %v3293
        %v3302 = vadd.f32 %v3273, %v3294
        %v3303 = vadd.f32 %v3274, %v3295
        %s3304 = scalar_lea.vmem %s3, 4160
        %v3305 = vld [vmem:[%s3304] sm:$0xff]
        %v3306 = vld [vmem:[%s3304 + $0x8] sm:$0xff]
        %v3307 = vld [vmem:[%s3304 + $0x10] sm:$0xff]
        %v3308 = vld [vmem:[%s3304 + $0x18] sm:$0xff]
        %v3309 = vld [vmem:[%s3304 + $0x20] sm:$0xff]
        %v3310 = vld [vmem:[%s3304 + $0x28] sm:$0xff]
        %v3311 = vld [vmem:[%s3304 + $0x30] sm:$0xff]
        %v3312 = vld [vmem:[%s3304 + $0x38] sm:$0xff]
        %3313 = vrot.lane.b32.xlu0 %v3249, 126
        %v3314 = vpop.permute.xlu0 %3313
        %v3316 = vmul.f32 %v3305, %v3314
        %v3317 = vmul.f32 %v3306, %v3314
        %v3318 = vmul.f32 %v3307, %v3314
        %v3319 = vmul.f32 %v3308, %v3314
        %v3320 = vmul.f32 %v3309, %v3314
        %v3321 = vmul.f32 %v3310, %v3314
        %v3322 = vmul.f32 %v3311, %v3314
        %v3323 = vmul.f32 %v3312, %v3314
        %v3324 = vadd.f32 %v3296, %v3316
        %v3325 = vadd.f32 %v3297, %v3317
        %v3326 = vadd.f32 %v3298, %v3318
        %v3327 = vadd.f32 %v3299, %v3319
        %v3328 = vadd.f32 %v3300, %v3320
        %v3329 = vadd.f32 %v3301, %v3321
        %v3330 = vadd.f32 %v3302, %v3322
        %v3331 = vadd.f32 %v3303, %v3323
        %v3332 = vld [vmem:[%s3248 + $0x1] sm:$0xff]
        %s3333 = scalar_lea.vmem %s3, 4224
        %v3334 = vld [vmem:[%s3333] sm:$0xff]
        %v3335 = vld [vmem:[%s3333 + $0x8] sm:$0xff]
        %v3336 = vld [vmem:[%s3333 + $0x10] sm:$0xff]
        %v3337 = vld [vmem:[%s3333 + $0x18] sm:$0xff]
        %v3338 = vld [vmem:[%s3333 + $0x20] sm:$0xff]
        %v3339 = vld [vmem:[%s3333 + $0x28] sm:$0xff]
        %v3340 = vld [vmem:[%s3333 + $0x30] sm:$0xff]
        %v3341 = vld [vmem:[%s3333 + $0x38] sm:$0xff]
        %v3342 = vmul.f32 %v3334, %v3332
        %v3343 = vmul.f32 %v3335, %v3332
        %v3344 = vmul.f32 %v3336, %v3332
        %v3345 = vmul.f32 %v3337, %v3332
        %v3346 = vmul.f32 %v3338, %v3332
        %v3347 = vmul.f32 %v3339, %v3332
        %v3348 = vmul.f32 %v3340, %v3332
        %v3349 = vmul.f32 %v3341, %v3332
        %v3350 = vadd.f32 %v3324, %v3342
        %v3351 = vadd.f32 %v3325, %v3343
        %v3352 = vadd.f32 %v3326, %v3344
        %v3353 = vadd.f32 %v3327, %v3345
        %v3354 = vadd.f32 %v3328, %v3346
        %v3355 = vadd.f32 %v3329, %v3347
        %v3356 = vadd.f32 %v3330, %v3348
        %v3357 = vadd.f32 %v3331, %v3349
        %s3358 = scalar_lea.vmem %s3, 4288
        %v3359 = vld [vmem:[%s3358] sm:$0xff]
        %v3360 = vld [vmem:[%s3358 + $0x8] sm:$0xff]
        %v3361 = vld [vmem:[%s3358 + $0x10] sm:$0xff]
        %v3362 = vld [vmem:[%s3358 + $0x18] sm:$0xff]
        %v3363 = vld [vmem:[%s3358 + $0x20] sm:$0xff]
        %v3364 = vld [vmem:[%s3358 + $0x28] sm:$0xff]
        %v3365 = vld [vmem:[%s3358 + $0x30] sm:$0xff]
        %v3366 = vld [vmem:[%s3358 + $0x38] sm:$0xff]
        %3368 = vrot.lane.b32.xlu0 %v3332, 127
        %v3369 = vpop.permute.xlu0 %3368
        %v3371 = vmul.f32 %v3359, %v3369
        %v3372 = vmul.f32 %v3360, %v3369
        %v3373 = vmul.f32 %v3361, %v3369
        %v3374 = vmul.f32 %v3362, %v3369
        %v3375 = vmul.f32 %v3363, %v3369
        %v3376 = vmul.f32 %v3364, %v3369
        %v3377 = vmul.f32 %v3365, %v3369
        %v3378 = vmul.f32 %v3366, %v3369
        %v3379 = vadd.f32 %v3350, %v3371
        %v3380 = vadd.f32 %v3351, %v3372
        %v3381 = vadd.f32 %v3352, %v3373
        %v3382 = vadd.f32 %v3353, %v3374
        %v3383 = vadd.f32 %v3354, %v3375
        %v3384 = vadd.f32 %v3355, %v3376
        %v3385 = vadd.f32 %v3356, %v3377
        %v3386 = vadd.f32 %v3357, %v3378
        %s3387 = scalar_lea.vmem %s3, 4352
        %v3388 = vld [vmem:[%s3387] sm:$0xff]
        %v3389 = vld [vmem:[%s3387 + $0x8] sm:$0xff]
        %v3390 = vld [vmem:[%s3387 + $0x10] sm:$0xff]
        %v3391 = vld [vmem:[%s3387 + $0x18] sm:$0xff]
        %v3392 = vld [vmem:[%s3387 + $0x20] sm:$0xff]
        %v3393 = vld [vmem:[%s3387 + $0x28] sm:$0xff]
        %v3394 = vld [vmem:[%s3387 + $0x30] sm:$0xff]
        %v3395 = vld [vmem:[%s3387 + $0x38] sm:$0xff]
        %3396 = vrot.lane.b32.xlu0 %v3332, 126
        %v3397 = vpop.permute.xlu0 %3396
        %v3399 = vmul.f32 %v3388, %v3397
        %v3400 = vmul.f32 %v3389, %v3397
        %v3401 = vmul.f32 %v3390, %v3397
        %v3402 = vmul.f32 %v3391, %v3397
        %v3403 = vmul.f32 %v3392, %v3397
        %v3404 = vmul.f32 %v3393, %v3397
        %v3405 = vmul.f32 %v3394, %v3397
        %v3406 = vmul.f32 %v3395, %v3397
        %v3407 = vadd.f32 %v3379, %v3399
        %v3408 = vadd.f32 %v3380, %v3400
        %v3409 = vadd.f32 %v3381, %v3401
        %v3410 = vadd.f32 %v3382, %v3402
        %v3411 = vadd.f32 %v3383, %v3403
        %v3412 = vadd.f32 %v3384, %v3404
        %v3413 = vadd.f32 %v3385, %v3405
        %v3414 = vadd.f32 %v3386, %v3406
        %v3415 = vld [vmem:[%s3248 + $0x2] sm:$0xff]
        %s3416 = scalar_lea.vmem %s3, 4416
        %v3417 = vld [vmem:[%s3416] sm:$0xff]
        %v3418 = vld [vmem:[%s3416 + $0x8] sm:$0xff]
        %v3419 = vld [vmem:[%s3416 + $0x10] sm:$0xff]
        %v3420 = vld [vmem:[%s3416 + $0x18] sm:$0xff]
        %v3421 = vld [vmem:[%s3416 + $0x20] sm:$0xff]
        %v3422 = vld [vmem:[%s3416 + $0x28] sm:$0xff]
        %v3423 = vld [vmem:[%s3416 + $0x30] sm:$0xff]
        %v3424 = vld [vmem:[%s3416 + $0x38] sm:$0xff]
        %v3425 = vmul.f32 %v3417, %v3415
        %v3426 = vmul.f32 %v3418, %v3415
        %v3427 = vmul.f32 %v3419, %v3415
        %v3428 = vmul.f32 %v3420, %v3415
        %v3429 = vmul.f32 %v3421, %v3415
        %v3430 = vmul.f32 %v3422, %v3415
        %v3431 = vmul.f32 %v3423, %v3415
        %v3432 = vmul.f32 %v3424, %v3415
        %v3433 = vadd.f32 %v3407, %v3425
        %v3434 = vadd.f32 %v3408, %v3426
        %v3435 = vadd.f32 %v3409, %v3427
        %v3436 = vadd.f32 %v3410, %v3428
        %v3437 = vadd.f32 %v3411, %v3429
        %v3438 = vadd.f32 %v3412, %v3430
        %v3439 = vadd.f32 %v3413, %v3431
        %v3440 = vadd.f32 %v3414, %v3432
        %s3441 = scalar_lea.vmem %s3, 4480
        %v3442 = vld [vmem:[%s3441] sm:$0xff]
        %v3443 = vld [vmem:[%s3441 + $0x8] sm:$0xff]
        %v3444 = vld [vmem:[%s3441 + $0x10] sm:$0xff]
        %v3445 = vld [vmem:[%s3441 + $0x18] sm:$0xff]
        %v3446 = vld [vmem:[%s3441 + $0x20] sm:$0xff]
        %v3447 = vld [vmem:[%s3441 + $0x28] sm:$0xff]
        %v3448 = vld [vmem:[%s3441 + $0x30] sm:$0xff]
        %v3449 = vld [vmem:[%s3441 + $0x38] sm:$0xff]
        %3451 = vrot.lane.b32.xlu0 %v3415, 127
        %v3452 = vpop.permute.xlu0 %3451
        %v3454 = vmul.f32 %v3442, %v3452
        %v3455 = vmul.f32 %v3443, %v3452
        %v3456 = vmul.f32 %v3444, %v3452
        %v3457 = vmul.f32 %v3445, %v3452
        %v3458 = vmul.f32 %v3446, %v3452
        %v3459 = vmul.f32 %v3447, %v3452
        %v3460 = vmul.f32 %v3448, %v3452
        %v3461 = vmul.f32 %v3449, %v3452
        %v3462 = vadd.f32 %v3433, %v3454
        %v3463 = vadd.f32 %v3434, %v3455
        %v3464 = vadd.f32 %v3435, %v3456
        %v3465 = vadd.f32 %v3436, %v3457
        %v3466 = vadd.f32 %v3437, %v3458
        %v3467 = vadd.f32 %v3438, %v3459
        %v3468 = vadd.f32 %v3439, %v3460
        %v3469 = vadd.f32 %v3440, %v3461
        %s3470 = scalar_lea.vmem %s3, 4544
        %v3471 = vld [vmem:[%s3470] sm:$0xff]
        %v3472 = vld [vmem:[%s3470 + $0x8] sm:$0xff]
        %v3473 = vld [vmem:[%s3470 + $0x10] sm:$0xff]
        %v3474 = vld [vmem:[%s3470 + $0x18] sm:$0xff]
        %v3475 = vld [vmem:[%s3470 + $0x20] sm:$0xff]
        %v3476 = vld [vmem:[%s3470 + $0x28] sm:$0xff]
        %v3477 = vld [vmem:[%s3470 + $0x30] sm:$0xff]
        %v3478 = vld [vmem:[%s3470 + $0x38] sm:$0xff]
        %3479 = vrot.lane.b32.xlu0 %v3415, 126
        %v3480 = vpop.permute.xlu0 %3479
        %v3482 = vmul.f32 %v3471, %v3480
        %v3483 = vmul.f32 %v3472, %v3480
        %v3484 = vmul.f32 %v3473, %v3480
        %v3485 = vmul.f32 %v3474, %v3480
        %v3486 = vmul.f32 %v3475, %v3480
        %v3487 = vmul.f32 %v3476, %v3480
        %v3488 = vmul.f32 %v3477, %v3480
        %v3489 = vmul.f32 %v3478, %v3480
        %v3490 = vadd.f32 %v3462, %v3482
        %v3491 = vadd.f32 %v3463, %v3483
        %v3492 = vadd.f32 %v3464, %v3484
        %v3493 = vadd.f32 %v3465, %v3485
        %v3494 = vadd.f32 %v3466, %v3486
        %v3495 = vadd.f32 %v3467, %v3487
        %v3496 = vadd.f32 %v3468, %v3488
        %v3497 = vadd.f32 %v3469, %v3489
        %v3498 = vmax.f32 %v3490, 0.0
        %v3499 = vmax.f32 %v3491, 0.0
        %v3500 = vmax.f32 %v3492, 0.0
        %v3501 = vmax.f32 %v3493, 0.0
        %v3502 = vmax.f32 %v3494, 0.0
        %v3503 = vmax.f32 %v3495, 0.0
        %v3504 = vmax.f32 %v3496, 0.0
        %v3505 = vmax.f32 %v3497, 0.0
        %vm3506 = vcmask 64512
        %3507 = vst.msk [vmem:[%s217] sm:$0xff] %vm3506, %v3498
        %3508 = vst.msk [vmem:[%s217 + $0x8] sm:$0xff] %vm3506, %v3499
        %3509 = vst.msk [vmem:[%s217 + $0x10] sm:$0xff] %vm3506, %v3500
        %3510 = vst.msk [vmem:[%s217 + $0x18] sm:$0xff] %vm3506, %v3501
        %3511 = vst.msk [vmem:[%s217 + $0x20] sm:$0xff] %vm3506, %v3502
        %3512 = vst.msk [vmem:[%s217 + $0x28] sm:$0xff] %vm3506, %v3503
        %3513 = vst.msk [vmem:[%s217 + $0x30] sm:$0xff] %vm3506, %v3504
        %3514 = vst.msk [vmem:[%s217 + $0x38] sm:$0xff] %vm3506, %v3505
        %s3515 = sand.u32 %s137, 1
        %s3516 = scalar_lea.sflag [#allocation4], %s3515
        %s3517 = sand.u32 %s137, 1
        %s3518 = smul.addr %s3517, 64
        %s3519 = scalar_lea.vmem [#allocation3], %s3518
        // Predicated region
        $region41: #{down_forward.1} parent=39 // pred_check
          %p3520 = pneg %p147
        $region42: #{down_forward.1} parent=39 // pred_check_branch
          %3522 = sbr.rel (%p3520) target = $region44
        $region43: #{down_forward.1} parent=39 // pred_region
          %s3524 = ssub.s32 1024, 1024
          %3525 = vsyncadd %s3516, %s3524
          %s3526 = smul.addr %s19, 8
          %s3527 = smul.addr %s3526, 128
          %s3528 = scalar_lea.hbm %s5, %s3527
          %s3529 = sshll.u32 %s3519, 4
          %s3530 = int_to_ptr.vmem [resolvable:$true] %s3529
          %3535 = dma.vmem_to_hbm [thread:$0]  %s3530, 1024, %s3528, %s3516, 128, 128, 8
        $region44: #{down_forward.1} parent=39 // pred_fallthru
          _
      $region40: #{down_forward.1} parent=5 // pred_fallthru
        _
      %p3536 = scmp.le.s32.totalorder 2, %s14
      // Predicated region
      $region45: #{down_forward.1} parent=5 // pred_check
        %p3537 = pneg %p3536
      $region46: #{down_forward.1} parent=5 // pred_check_branch
        %3539 = sbr.rel (%p3537) target = $region48
      $region47: #{down_forward.1} parent=5 // pred_region
        %s3540 = ssub.s32 %s14, 2
        // Predicated region
        $region49: #{down_forward.1} parent=47 // pred_check
          %p3541 = pneg %p153
        $region50: #{down_forward.1} parent=47 // pred_check_branch
          %3543 = sbr.rel (%p3541) target = $region52
        $region51: #{down_forward.1} parent=47 // pred_region
          %s3544 = sand.u32 %s138, 1
          %s3545 = scalar_lea.sflag [#allocation4], %s3544
          %s3546 = sand.u32 %s138, 1
          %s3547 = smul.addr %s3546, 64
          %s3548 = scalar_lea.vmem [#allocation3], %s3547
          %3549 = dma.done %s3545, 1024
        $region52: #{down_forward.1} parent=47 // pred_fallthru
          _
      $region48: #{down_forward.1} parent=5 // pred_fallthru
        _
    $region6: #{down_forward.1} parent=1 // loop_footer
      %s18 = sadd.s32 1, %s14
    $region7: #{down_forward.1} parent=1 // loop_footer_branch
      %13 = sbr.rel target = $region3
    $region8: #{down_forward.1} parent=1 // loop_exit
      _
    %3550 = vsyncpa [#allocation4], 1
    %s3551 = scalar_lea.sflag [#allocation4], 1
    %3552 = vsyncpa %s3551, 1

</llo_original>
